<compile_context>
chip_gen: v7x
topology: tpu7x:2x2x1
jax: 0.10.0
libtpu: 0.0.40
codegen_flags: <defaults>
</compile_context>

<pallas_src>
import math
import functools

import jax
import jax.numpy as jnp
from jax import lax
from jax.experimental import pallas as pl
from jax.experimental.pallas import tpu as pltpu


# ---------------------------------------------------------------------------
# Per-generation tiling / VMEM configuration
# ---------------------------------------------------------------------------

def _hw_defaults():
    """v5e/v6e (128 MiB VMEM) get larger row tiles and a higher scoped-VMEM
    limit; v7x (64 MiB / TC) keeps the conservative, known-good setting."""
    vmem_bytes = 64 << 20
    try:
        info = pltpu.get_tpu_info()
        vmem_bytes = int(getattr(info, "vmem_capacity_bytes", vmem_bytes))
    except Exception:
        pass
    tm_target = 1024 if vmem_bytes >= (96 << 20) else 512
    vmem_limit = max(16 << 20, min((vmem_bytes * 3) // 4, 96 << 20))
    return tm_target, vmem_limit


_TM_TARGET, _VMEM_LIMIT = _hw_defaults()


def _pick_tm(M, target):
    """Row tile for kernel A: multiple of 8 (or == M), and >=2 grid steps
    whenever possible so both v7x TensorCores get work under 'parallel'."""
    tm = min(target, M)
    if M >= 16 and pl.cdiv(M, tm) < 2:
        tm = (((M + 1) // 2) + 7) // 8 * 8       # split into two halves, 8-aligned
    if tm != M:
        tm = max(8, (tm // 8) * 8)
    return tm


# ---------------------------------------------------------------------------
# Kernel A: fused backbone  relu(relu(x @ W1 + b1) @ W2 + b2), tiled over rows
# ---------------------------------------------------------------------------

def _backbone_kernel(x_ref, w1_ref, b1_ref, w2_ref, b2_ref, o_ref):
    # MXU operands in bf16, f32 accumulation; the 512-wide intermediate stays on-chip.
    xb = x_ref[...].astype(jnp.bfloat16)
    h = jnp.dot(xb, w1_ref[...], preferred_element_type=jnp.float32)
    h = jnp.maximum(h + b1_ref[...], 0.0)
    y = jnp.dot(h.astype(jnp.bfloat16), w2_ref[...], preferred_element_type=jnp.float32)
    o_ref[...] = jnp.maximum(y + b2_ref[...], 0.0).astype(o_ref.dtype)


def fused_backbone(x2d, w1, b1, w2, b2):
    M, F = x2d.shape
    H1, H2 = w1.shape[1], w2.shape[1]
    tm = _pick_tm(M, _TM_TARGET)
    # TODO(synk): fold the (1,N) biases into the matmul (ones-column) / SMEM to
    # drop the padded (8,128) bias tiles; negligible at these sizes.
    return pl.pallas_call(
        _backbone_kernel,
        out_shape=jax.ShapeDtypeStruct((M, H2), jnp.float32),
        grid=(pl.cdiv(M, tm),),
        in_specs=[pl.BlockSpec((tm, F), lambda i: (i, 0)),
                  pl.BlockSpec((F, H1), lambda i: (0, 0)),
                  pl.BlockSpec((1, H1), lambda i: (0, 0)),
                  pl.BlockSpec((H1, H2), lambda i: (0, 0)),
                  pl.BlockSpec((1, H2), lambda i: (0, 0))],
        out_specs=pl.BlockSpec((tm, H2), lambda i: (i, 0)),
        compiler_params=pltpu.CompilerParams(
            dimension_semantics=("parallel",),
            vmem_limit_bytes=_VMEM_LIMIT),
    )(x2d, w1, b1, w2, b2)


# ---------------------------------------------------------------------------
# Kernel B: fused per-batch head
#   approximator + causal conv + both adjacencies + 2-stage GCN + classifier.
#   adj / sadj never leave VMEM (previously a full HBM round trip).
# ---------------------------------------------------------------------------

def _row_softmax(m):
    mmax = jnp.max(m, axis=-1, keepdims=True)
    e = jnp.exp(m - mmax)
    return e / jnp.sum(e, axis=-1, keepdims=True)


def _fused_head_kernel(xin_ref, feat_ref, dadj_ref,
                       wa1_ref, ba1_ref, wa2_ref, ba2_ref, wc_ref, bc_ref,
                       w1_ref, r1_ref, w2_ref, wcls_ref, bcls_ref,
                       logit_ref, o_ref):
    T = feat_ref.shape[1]
    f = feat_ref[0]                                                     # (T, 128)

    # --- approximator (128->64->32, k=1 convs) -------------------------------
    h = jnp.maximum(jnp.dot(f, wa1_ref[...], preferred_element_type=jnp.float32)
                    + ba1_ref[...], 0.0)                                # (T, 64)
    a = jnp.maximum(jnp.dot(h, wa2_ref[...], preferred_element_type=jnp.float32)
                    + ba2_ref[...], 0.0)                                # (T, 32)

    # --- causal 5-tap conv (F.pad(4,0) + Conv1d(32->1,5)):
    #     one tiny (T,32)@(32,5) matmul, then 5 sublane-shifted column adds
    #     (VPU/XLU work, instead of im2col driving the MXU at N=1).
    m = jnp.dot(a, wc_ref[...], preferred_element_type=jnp.float32)    # (T, 5)
    mp = jnp.concatenate([jnp.zeros((4, 5), jnp.float32), m], axis=0)  # (T+4, 5)
    logit = (mp[0:T, 0:1] + mp[1:T + 1, 1:2] + mp[2:T + 2, 2:3]
             + mp[3:T + 3, 3:4] + mp[4:T + 4, 4:5]) + bc_ref[...]      # (T, 1)
    logit_ref[0] = logit

    # --- score adjacency (Model.sadj); Softmax(1) on a 2-D (T,T) slice == last axis
    s = jax.nn.sigmoid(logit)                                           # (T, 1)
    dd = 1.0 - jnp.abs(s - jnp.transpose(s))                            # (T, T)
    dd = jax.nn.sigmoid((dd - 0.5) * 10.0)
    sadj = _row_softmax(dd)

    # --- cosine adjacency (Model.adj): cos sim -> threshold(0.7) -> row softmax
    x = xin_ref[0]                                                      # (T, F)
    xb = x.astype(jnp.bfloat16)
    gram = lax.dot_general(xb, xb, (((1,), (1,)), ((), ())),            # x @ x.T, no
                           preferred_element_type=jnp.float32)          # explicit transpose
    xn = jnp.sqrt(jnp.sum(x * x, axis=-1, keepdims=True))               # (T, 1)
    cos = gram / (xn * jnp.transpose(xn) + 1e-20)
    thr = jnp.where(cos > 0.7, cos, 0.0)
    adj = _row_softmax(thr)

    # distance adjacency exp(-|i-j|/e): batch-invariant, resident constant block
    dadj = dadj_ref[...]

    # --- GCN stage 1: three 128->32 branch weights as one 128->96 matmul ------
    sup = jnp.dot(f, w1_ref[...], preferred_element_type=jnp.float32)   # (T, 96)
    res = jnp.dot(f, r1_ref[...], preferred_element_type=jnp.float32)   # (T, 96)
    h1 = jnp.maximum(jnp.dot(adj,  sup[:, 0:32],  preferred_element_type=jnp.float32) + res[:, 0:32], 0.0)
    h2 = jnp.maximum(jnp.dot(dadj, sup[:, 32:64], preferred_element_type=jnp.float32) + res[:, 32:64], 0.0)
    h3 = jnp.maximum(jnp.dot(sadj, sup[:, 64:96], preferred_element_type=jnp.float32) + res[:, 64:96], 0.0)
    hcat = jnp.concatenate([h1, h2, h3], axis=1)                         # (T, 96)

    # --- GCN stage 2: block-diagonal 96->96 weight; identity residual ---------
    sup2 = jnp.dot(hcat, w2_ref[...], preferred_element_type=jnp.float32)
    y1 = jnp.maximum(jnp.dot(adj,  sup2[:, 0:32],  preferred_element_type=jnp.float32) + hcat[:, 0:32], 0.0)
    y2 = jnp.maximum(jnp.dot(dadj, sup2[:, 32:64], preferred_element_type=jnp.float32) + hcat[:, 32:64], 0.0)
    y3 = jnp.maximum(jnp.dot(sadj, sup2[:, 64:96], preferred_element_type=jnp.float32) + hcat[:, 64:96], 0.0)
    y = jnp.concatenate([y1, y2, y3], axis=1)                            # (T, 96)

    out = jnp.dot(y, wcls_ref[...], preferred_element_type=jnp.float32) + bcls_ref[...]
    o_ref[0] = out.astype(o_ref.dtype)


def fused_head(inputs, feat, dadj, p):
    B, T, F = inputs.shape
    C = feat.shape[2]
    ncls = p["wcls"].shape[1]
    return pl.pallas_call(
        _fused_head_kernel,
        out_shape=(jax.ShapeDtypeStruct((B, T, 1), jnp.float32),
                   jax.ShapeDtypeStruct((B, T, ncls), jnp.float32)),
        grid=(B,),
        in_specs=[pl.BlockSpec((1, T, F), lambda b: (b, 0, 0)),
                  pl.BlockSpec((1, T, C), lambda b: (b, 0, 0)),
                  pl.BlockSpec((T, T), lambda b: (0, 0)),
                  pl.BlockSpec((C, 64), lambda b: (0, 0)),
                  pl.BlockSpec((1, 64), lambda b: (0, 0)),
                  pl.BlockSpec((64, 32), lambda b: (0, 0)),
                  pl.BlockSpec((1, 32), lambda b: (0, 0)),
                  pl.BlockSpec((32, 5), lambda b: (0, 0)),
                  pl.BlockSpec((1, 1), lambda b: (0, 0)),
                  pl.BlockSpec((C, 96), lambda b: (0, 0)),
                  pl.BlockSpec((C, 96), lambda b: (0, 0)),
                  pl.BlockSpec((96, 96), lambda b: (0, 0)),
                  pl.BlockSpec((96, ncls), lambda b: (0, 0)),
                  pl.BlockSpec((1, ncls), lambda b: (0, 0))],
        out_specs=(pl.BlockSpec((1, T, 1), lambda b: (b, 0, 0)),
                   pl.BlockSpec((1, T, ncls), lambda b: (b, 0, 0))),
        compiler_params=pltpu.CompilerParams(
            dimension_semantics=("parallel",),
            vmem_limit_bytes=_VMEM_LIMIT),
    )(inputs, feat, dadj, p["wa1"], p["ba1"], p["wa2"], p["ba2"], p["wc"], p["bc"],
      p["gcn_w1"], p["gcn_r1"], p["gcn_w2"], p["wcls"], p["bcls"])


# ---------------------------------------------------------------------------
# Parameters (deterministic xavier-uniform, mirroring weight_init)
# ---------------------------------------------------------------------------

def _xavier(key, fan_in, fan_out, shape=None):
    if shape is None:
        shape = (fan_in, fan_out)
    limit = math.sqrt(6.0 / (fan_in + fan_out))
    return jax.random.uniform(key, shape, jnp.float32, -limit, limit)


def init_params(key, n_features, n_class):
    ks = iter(jax.random.split(key, 24))
    p = {}
    p["w1"], p["b1"] = _xavier(next(ks), n_features, 512), jnp.zeros((1, 512), jnp.float32)
    p["w2"], p["b2"] = _xavier(next(ks), 512, 128), jnp.zeros((1, 128), jnp.float32)
    p["wa1"], p["ba1"] = _xavier(next(ks), 128, 64), jnp.zeros((1, 64), jnp.float32)
    p["wa2"], p["ba2"] = _xavier(next(ks), 64, 32), jnp.zeros((1, 32), jnp.float32)
    # conv1d_approximator weight, PyTorch shape (1, 32, 5): stored (channel, tap).
    # TODO(synk): when loading real PyTorch weights, permute (1,32,5) -> (32,5).
    p["wc"] = _xavier(next(ks), 32 * 5, 5, shape=(32, 5))
    p["bc"] = jnp.zeros((1, 1), jnp.float32)
    for name in ("gc1", "gc3", "gc5"):             # GraphConvolution(128, 32, residual=True)
        p[name + "_w"] = _xavier(next(ks), 128, 32)
        p[name + "_r"] = _xavier(next(ks), 128, 32)   # residual projection (no bias)
    for name in ("gc2", "gc4", "gc6"):             # GraphConvolution(32, 32) -> identity residual
        p[name + "_w"] = _xavier(next(ks), 32, 32)
    p["wcls"], p["bcls"] = _xavier(next(ks), 96, n_class), jnp.zeros((1, n_class), jnp.float32)
    return p


def fuse_params(p):
    """Pre-concatenate GCN weights (stage 1 -> one 128->96 matmul, stage 2 -> one
    block-diagonal 96->96 matmul) and cast backbone MXU weights to bf16."""
    f = dict(p)
    f["w1"] = p["w1"].astype(jnp.bfloat16)
    f["w2"] = p["w2"].astype(jnp.bfloat16)
    f["gcn_w1"] = jnp.concatenate([p["gc1_w"], p["gc3_w"], p["gc5_w"]], axis=1)   # (128, 96)
    f["gcn_r1"] = jnp.concatenate([p["gc1_r"], p["gc3_r"], p["gc5_r"]], axis=1)   # (128, 96)
    w2 = jnp.zeros((96, 96), jnp.float32)
    w2 = w2.at[0:32, 0:32].set(p["gc2_w"])
    w2 = w2.at[32:64, 32:64].set(p["gc4_w"])
    w2 = w2.at[64:96, 64:96].set(p["gc6_w"])
    f["gcn_w2"] = w2
    return f


# ---------------------------------------------------------------------------
# Forward pass
# ---------------------------------------------------------------------------

def distance_adjacency(T):
    # DistanceAdj: exp(-|i-j| / e); batch-invariant, computed once.
    idx = jnp.arange(T, dtype=jnp.float32)
    return jnp.exp(-jnp.abs(idx[:, None] - idx[None, :]) / math.e)


def model_forward(params, inputs, seq_len=None):
    # TODO(synk): per-sample seq_len masking inside the adjacency/GCN kernel
    # (only the seq_len=None / full-length path is implemented).
    assert seq_len is None
    B, T, F = inputs.shape

    # conv1d1 (F->512) + relu, conv1d2 (512->128) + relu, fused & row-tiled.
    feat = fused_backbone(inputs.reshape(B * T, F), params["w1"], params["b1"],
                          params["w2"], params["b2"])
    feat = feat.reshape(B, T, feat.shape[-1])

    dadj = distance_adjacency(T)

    # approximator + causal conv + adjacencies + 2-stage GCN + classifier, one kernel.
    logits, out = fused_head(inputs, feat, dadj, params)
    return out, logits


# ---------------------------------------------------------------------------
# Demo
# ---------------------------------------------------------------------------

if __name__ == "__main__":
    B, T, FEAT, NCLS = 2, 16, 64, 2
    key = jax.random.PRNGKey(0)
    k_in, k_par = jax.random.split(key)
    inputs = jax.random.normal(k_in, (B, T, FEAT), jnp.float32)
    params = fuse_params(init_params(k_par, FEAT, NCLS))

    fwd = jax.jit(functools.partial(model_forward, seq_len=None))
    scores, logits = fwd(params, inputs)
    jax.block_until_ready((scores, logits))
    assert scores.shape == (B, T, NCLS) and logits.shape == (B, T, 1)
    print("KERNEL_OK")
</pallas_src>

<mosaic_0001>
module attributes {stable_mosaic.version = 11 : i64} {
  func.func @_backbone_kernel(%arg0: i32, %arg1: memref<16x64xf32, #tpu.memory_space<vmem>>, %arg2: memref<64x512xbf16, #tpu.memory_space<vmem>>, %arg3: memref<1x512xf32, #tpu.memory_space<vmem>>, %arg4: memref<512x128xbf16, #tpu.memory_space<vmem>>, %arg5: memref<1x128xf32, #tpu.memory_space<vmem>>, %arg6: memref<16x128xf32, #tpu.memory_space<vmem>>) attributes {dimension_semantics = [#tpu.dimension_semantics<parallel>], iteration_bounds = array<i64: 2>, scalar_prefetch = 0 : i64, scratch_operands = 0 : i64, tpu.core_type = #tpu.core_type<tc>, window_params = [{transform_indices = @transform_0, window_bounds = array<i64: 16, 64>}, {pipeline_mode = #tpu.pipeline_mode<synchronous>, transform_indices = @transform_1, window_bounds = array<i64: 64, 512>}, {pipeline_mode = #tpu.pipeline_mode<synchronous>, transform_indices = @transform_2, window_bounds = array<i64: 1, 512>}, {pipeline_mode = #tpu.pipeline_mode<synchronous>, transform_indices = @transform_3, window_bounds = array<i64: 512, 128>}, {pipeline_mode = #tpu.pipeline_mode<synchronous>, transform_indices = @transform_4, window_bounds = array<i64: 1, 128>}, {transform_indices = @transform_5, window_bounds = array<i64: 16, 128>}]} {
    %c0 = arith.constant 0 : index
    %c0_0 = arith.constant 0 : index
    %0 = vector.load %arg1[%c0, %c0_0] : memref<16x64xf32, #tpu.memory_space<vmem>>, vector<16x64xf32>
    %1 = arith.truncf %0 : vector<16x64xf32> to vector<16x64xbf16>
    %c0_1 = arith.constant 0 : index
    %c0_2 = arith.constant 0 : index
    %2 = vector.load %arg2[%c0_1, %c0_2] : memref<64x512xbf16, #tpu.memory_space<vmem>>, vector<64x512xbf16>
    %cst = arith.constant dense<0.000000e+00> : vector<16x512xf32>
    %3 = tpu.matmul %1, %2, %cst {dimension_numbers = #tpu.dot_dimension_numbers<[1], [0], [0], [1], [0, 0, 1, 1], [], []>} : vector<16x64xbf16>, vector<64x512xbf16>, vector<16x512xf32> -> vector<16x512xf32>
    %c0_3 = arith.constant 0 : index
    %c0_4 = arith.constant 0 : index
    %4 = vector.load %arg3[%c0_3, %c0_4] : memref<1x512xf32, #tpu.memory_space<vmem>>, vector<1x512xf32>
    %5 = vector.broadcast %4 : vector<1x512xf32> to vector<16x512xf32>
    %6 = arith.addf %3, %5 : vector<16x512xf32>
    %cst_5 = arith.constant 0.000000e+00 : f32
    %7 = vector.broadcast %cst_5 : f32 to vector<16x512xf32>
    %8 = arith.maximumf %6, %7 : vector<16x512xf32>
    %9 = arith.truncf %8 : vector<16x512xf32> to vector<16x512xbf16>
    %c0_6 = arith.constant 0 : index
    %c0_7 = arith.constant 0 : index
    %10 = vector.load %arg4[%c0_6, %c0_7] : memref<512x128xbf16, #tpu.memory_space<vmem>>, vector<512x128xbf16>
    %cst_8 = arith.constant dense<0.000000e+00> : vector<16x128xf32>
    %11 = tpu.matmul %9, %10, %cst_8 {dimension_numbers = #tpu.dot_dimension_numbers<[1], [0], [0], [1], [0, 0, 1, 1], [], []>} : vector<16x512xbf16>, vector<512x128xbf16>, vector<16x128xf32> -> vector<16x128xf32>
    %c0_9 = arith.constant 0 : index
    %c0_10 = arith.constant 0 : index
    %12 = vector.load %arg5[%c0_9, %c0_10] : memref<1x128xf32, #tpu.memory_space<vmem>>, vector<1x128xf32>
    %13 = vector.broadcast %12 : vector<1x128xf32> to vector<16x128xf32>
    %14 = arith.addf %11, %13 : vector<16x128xf32>
    %cst_11 = arith.constant 0.000000e+00 : f32
    %15 = vector.broadcast %cst_11 : f32 to vector<16x128xf32>
    %16 = arith.maximumf %14, %15 : vector<16x128xf32>
    %c0_12 = arith.constant 0 : index
    %c0_13 = arith.constant 0 : index
    %17 = vector.load %arg6[%c0_12, %c0_13] : memref<16x128xf32, #tpu.memory_space<vmem>>, vector<16x128xf32>
    tpu.vector_store %arg6[%c0_12, %c0_13], %16 {strides = array<i32>} : memref<16x128xf32, #tpu.memory_space<vmem>>, vector<16x128xf32>,
    return
  }
  func.func @transform_0(%arg0: i32) -> (i32, i32) {
    %c0_i32 = arith.constant 0 : i32
    %c0_i32_0 = arith.constant 0 : i32
    return %arg0, %c0_i32 : i32, i32
  }
  func.func @transform_1(%arg0: i32) -> (i32, i32) {
    %c0_i32 = arith.constant 0 : i32
    %c0_i32_0 = arith.constant 0 : i32
    %c0_i32_1 = arith.constant 0 : i32
    return %c0_i32, %c0_i32_0 : i32, i32
  }
  func.func @transform_2(%arg0: i32) -> (i32, i32) {
    %c0_i32 = arith.constant 0 : i32
    %c0_i32_0 = arith.constant 0 : i32
    %c0_i32_1 = arith.constant 0 : i32
    return %c0_i32, %c0_i32_0 : i32, i32
  }
  func.func @transform_3(%arg0: i32) -> (i32, i32) {
    %c0_i32 = arith.constant 0 : i32
    %c0_i32_0 = arith.constant 0 : i32
    %c0_i32_1 = arith.constant 0 : i32
    return %c0_i32, %c0_i32_0 : i32, i32
  }
  func.func @transform_4(%arg0: i32) -> (i32, i32) {
    %c0_i32 = arith.constant 0 : i32
    %c0_i32_0 = arith.constant 0 : i32
    %c0_i32_1 = arith.constant 0 : i32
    return %c0_i32, %c0_i32_0 : i32, i32
  }
  func.func @transform_5(%arg0: i32) -> (i32, i32) {
    %c0_i32 = arith.constant 0 : i32
    %c0_i32_0 = arith.constant 0 : i32
    return %arg0, %c0_i32 : i32, i32
  }
}

module attributes {stable_mosaic.version = 11 : i64} {
  func.func @_fused_head_kernel(%arg0: i32, %arg1: memref<1x16x64xf32, #tpu.memory_space<vmem>>, %arg2: memref<1x16x128xf32, #tpu.memory_space<vmem>>, %arg3: memref<16x16xf32, #tpu.memory_space<vmem>>, %arg4: memref<128x64xf32, #tpu.memory_space<vmem>>, %arg5: memref<1x64xf32, #tpu.memory_space<vmem>>, %arg6: memref<64x32xf32, #tpu.memory_space<vmem>>, %arg7: memref<1x32xf32, #tpu.memory_space<vmem>>, %arg8: memref<32x5xf32, #tpu.memory_space<vmem>>, %arg9: memref<1x1xf32, #tpu.memory_space<vmem>>, %arg10: memref<128x96xf32, #tpu.memory_space<vmem>>, %arg11: memref<128x96xf32, #tpu.memory_space<vmem>>, %arg12: memref<96x96xf32, #tpu.memory_space<vmem>>, %arg13: memref<96x2xf32, #tpu.memory_space<vmem>>, %arg14: memref<1x2xf32, #tpu.memory_space<vmem>>, %arg15: memref<1x16x1xf32, #tpu.memory_space<vmem>>, %arg16: memref<1x16x2xf32, #tpu.memory_space<vmem>>) attributes {dimension_semantics = [#tpu.dimension_semantics<parallel>], iteration_bounds = array<i64: 2>, scalar_prefetch = 0 : i64, scratch_operands = 0 : i64, tpu.core_type = #tpu.core_type<tc>, window_params = [{transform_indices = @transform_0, window_bounds = array<i64: 1, 16, 64>}, {transform_indices = @transform_1, window_bounds = array<i64: 1, 16, 128>}, {pipeline_mode = #tpu.pipeline_mode<synchronous>, transform_indices = @transform_2, window_bounds = array<i64: 16, 16>}, {pipeline_mode = #tpu.pipeline_mode<synchronous>, transform_indices = @transform_3, window_bounds = array<i64: 128, 64>}, {pipeline_mode = #tpu.pipeline_mode<synchronous>, transform_indices = @transform_4, window_bounds = array<i64: 1, 64>}, {pipeline_mode = #tpu.pipeline_mode<synchronous>, transform_indices = @transform_5, window_bounds = array<i64: 64, 32>}, {pipeline_mode = #tpu.pipeline_mode<synchronous>, transform_indices = @transform_6, window_bounds = array<i64: 1, 32>}, {pipeline_mode = #tpu.pipeline_mode<synchronous>, transform_indices = @transform_7, window_bounds = array<i64: 32, 5>}, {pipeline_mode = #tpu.pipeline_mode<synchronous>, transform_indices = @transform_8, window_bounds = array<i64: 1, 1>}, {pipeline_mode = #tpu.pipeline_mode<synchronous>, transform_indices = @transform_9, window_bounds = array<i64: 128, 96>}, {pipeline_mode = #tpu.pipeline_mode<synchronous>, transform_indices = @transform_10, window_bounds = array<i64: 128, 96>}, {pipeline_mode = #tpu.pipeline_mode<synchronous>, transform_indices = @transform_11, window_bounds = array<i64: 96, 96>}, {pipeline_mode = #tpu.pipeline_mode<synchronous>, transform_indices = @transform_12, window_bounds = array<i64: 96, 2>}, {pipeline_mode = #tpu.pipeline_mode<synchronous>, transform_indices = @transform_13, window_bounds = array<i64: 1, 2>}, {transform_indices = @transform_14, window_bounds = array<i64: 1, 16, 1>}, {transform_indices = @transform_15, window_bounds = array<i64: 1, 16, 2>}]} {
    %c0 = arith.constant 0 : index
    %c0_0 = arith.constant 0 : index
    %c0_1 = arith.constant 0 : index
    %0 = vector.load %arg2[%c0, %c0_0, %c0_1] : memref<1x16x128xf32, #tpu.memory_space<vmem>>, vector<1x16x128xf32>
    %1 = vector.shape_cast %0 : vector<1x16x128xf32> to vector<16x128xf32>
    %c0_2 = arith.constant 0 : index
    %c0_3 = arith.constant 0 : index
    %2 = vector.load %arg4[%c0_2, %c0_3] : memref<128x64xf32, #tpu.memory_space<vmem>>, vector<128x64xf32>
    %cst = arith.constant dense<0.000000e+00> : vector<16x64xf32>
    %3 = tpu.matmul %1, %2, %cst {dimension_numbers = #tpu.dot_dimension_numbers<[1], [0], [0], [1], [0, 0, 1, 1], [], []>} : vector<16x128xf32>, vector<128x64xf32>, vector<16x64xf32> -> vector<16x64xf32>
    %c0_4 = arith.constant 0 : index
    %c0_5 = arith.constant 0 : index
    %4 = vector.load %arg5[%c0_4, %c0_5] : memref<1x64xf32, #tpu.memory_space<vmem>>, vector<1x64xf32>
    %5 = vector.broadcast %4 : vector<1x64xf32> to vector<16x64xf32>
    %6 = arith.addf %3, %5 : vector<16x64xf32>
    %cst_6 = arith.constant 0.000000e+00 : f32
    %7 = vector.broadcast %cst_6 : f32 to vector<16x64xf32>
    %8 = arith.maximumf %6, %7 : vector<16x64xf32>
    %c0_7 = arith.constant 0 : index
    %c0_8 = arith.constant 0 : index
    %9 = vector.load %arg6[%c0_7, %c0_8] : memref<64x32xf32, #tpu.memory_space<vmem>>, vector<64x32xf32>
    %cst_9 = arith.constant dense<0.000000e+00> : vector<16x32xf32>
    %10 = tpu.matmul %8, %9, %cst_9 {dimension_numbers = #tpu.dot_dimension_numbers<[1], [0], [0], [1], [0, 0, 1, 1], [], []>} : vector<16x64xf32>, vector<64x32xf32>, vector<16x32xf32> -> vector<16x32xf32>
    %c0_10 = arith.constant 0 : index
    %c0_11 = arith.constant 0 : index
    %11 = vector.load %arg7[%c0_10, %c0_11] : memref<1x32xf32, #tpu.memory_space<vmem>>, vector<1x32xf32>
    %12 = vector.broadcast %11 : vector<1x32xf32> to vector<16x32xf32>
    %13 = arith.addf %10, %12 : vector<16x32xf32>
    %cst_12 = arith.constant 0.000000e+00 : f32
    %14 = vector.broadcast %cst_12 : f32 to vector<16x32xf32>
    %15 = arith.maximumf %13, %14 : vector<16x32xf32>
    %c0_13 = arith.constant 0 : index
    %c0_14 = arith.constant 0 : index
    %16 = vector.load %arg8[%c0_13, %c0_14] : memref<32x5xf32, #tpu.memory_space<vmem>>, vector<32x5xf32>
    %cst_15 = arith.constant dense<0.000000e+00> : vector<16x5xf32>
    %17 = tpu.matmul %15, %16, %cst_15 {dimension_numbers = #tpu.dot_dimension_numbers<[1], [0], [0], [1], [0, 0, 1, 1], [], []>} : vector<16x32xf32>, vector<32x5xf32>, vector<16x5xf32> -> vector<16x5xf32>
    %cst_16 = arith.constant 0.000000e+00 : f32
    %18 = vector.broadcast %cst_16 : f32 to vector<4x5xf32>
    %19 = tpu.concatenate %18, %17 in 0 : vector<4x5xf32>, vector<16x5xf32> -> vector<20x5xf32>
    %20 = vector.extract_strided_slice %19 {offsets = [0, 0], sizes = [16, 1], strides = [1, 1]} : vector<20x5xf32> to vector<16x1xf32>
    %21 = vector.extract_strided_slice %19 {offsets = [1, 1], sizes = [16, 1], strides = [1, 1]} : vector<20x5xf32> to vector<16x1xf32>
    %22 = arith.addf %20, %21 : vector<16x1xf32>
    %23 = vector.extract_strided_slice %19 {offsets = [2, 2], sizes = [16, 1], strides = [1, 1]} : vector<20x5xf32> to vector<16x1xf32>
    %24 = arith.addf %22, %23 : vector<16x1xf32>
    %25 = vector.extract_strided_slice %19 {offsets = [3, 3], sizes = [16, 1], strides = [1, 1]} : vector<20x5xf32> to vector<16x1xf32>
    %26 = arith.addf %24, %25 : vector<16x1xf32>
    %27 = vector.extract_strided_slice %19 {offsets = [4, 4], sizes = [16, 1], strides = [1, 1]} : vector<20x5xf32> to vector<16x1xf32>
    %28 = arith.addf %26, %27 : vector<16x1xf32>
    %c0_17 = arith.constant 0 : index
    %c0_18 = arith.constant 0 : index
    %29 = vector.load %arg9[%c0_17, %c0_18] : memref<1x1xf32, #tpu.memory_space<vmem>>, vector<1x1xf32>
    %30 = vector.broadcast %29 : vector<1x1xf32> to vector<16x1xf32>
    %31 = arith.addf %28, %30 : vector<16x1xf32>
    %c0_19 = arith.constant 0 : index
    %c0_20 = arith.constant 0 : index
    %c0_21 = arith.constant 0 : index
    %32 = vector.load %arg15[%c0_19, %c0_20, %c0_21] : memref<1x16x1xf32, #tpu.memory_space<vmem>>, vector<1x16x1xf32>
    %33 = vector.shape_cast %32 : vector<1x16x1xf32> to vector<16x1xf32>
    %34 = vector.shape_cast %31 : vector<16x1xf32> to vector<1x16x1xf32>
    tpu.vector_store %arg15[%c0_19, %c0_20, %c0_21], %34 {strides = array<i32>} : memref<1x16x1xf32, #tpu.memory_space<vmem>>, vector<1x16x1xf32>,
    %35 = arith.negf %31 : vector<16x1xf32>
    %36 = math.exp %35 : vector<16x1xf32>
    %cst_22 = arith.constant 1.000000e+00 : f32
    %37 = vector.broadcast %cst_22 : f32 to vector<16x1xf32>
    %38 = arith.addf %37, %36 : vector<16x1xf32>
    %39 = arith.divf %37, %38 : vector<16x1xf32>
    %40 = tpu.transpose %39, [1, 0] : vector<16x1xf32> -> vector<1x16xf32>
    %41 = vector.broadcast %39 : vector<16x1xf32> to vector<16x16xf32>
    %42 = vector.broadcast %40 : vector<1x16xf32> to vector<16x16xf32>
    %43 = arith.subf %41, %42 : vector<16x16xf32>
    %44 = math.absf %43 : vector<16x16xf32>
    %cst_23 = arith.constant 1.000000e+00 : f32
    %45 = vector.broadcast %cst_23 : f32 to vector<16x16xf32>
    %46 = arith.subf %45, %44 : vector<16x16xf32>
    %cst_24 = arith.constant 5.000000e-01 : f32
    %47 = vector.broadcast %cst_24 : f32 to vector<16x16xf32>
    %48 = arith.subf %46, %47 : vector<16x16xf32>
    %cst_25 = arith.constant 1.000000e+01 : f32
    %49 = vector.broadcast %cst_25 : f32 to vector<16x16xf32>
    %50 = arith.mulf %48, %49 : vector<16x16xf32>
    %51 = arith.negf %50 : vector<16x16xf32>
    %52 = math.exp %51 : vector<16x16xf32>
    %cst_26 = arith.constant 1.000000e+00 : f32
    %53 = vector.broadcast %cst_26 : f32 to vector<16x16xf32>
    %54 = arith.addf %53, %52 : vector<16x16xf32>
    %55 = arith.divf %53, %54 : vector<16x16xf32>
    %cst_27 = arith.constant dense<0xFF800000> : vector<16xf32>
    %56 = vector.multi_reduction <maximumf>, %55, %cst_27 [1] : vector<16x16xf32> to vector<16xf32>
    %57 = vector.shape_cast %56 : vector<16xf32> to vector<16x1xf32>
    %58 = vector.broadcast %57 : vector<16x1xf32> to vector<16x16xf32>
    %59 = arith.subf %55, %58 : vector<16x16xf32>
    %60 = math.exp %59 : vector<16x16xf32>
    %cst_28 = arith.constant dense<0.000000e+00> : vector<16xf32>
    %61 = vector.multi_reduction <add>, %60, %cst_28 [1] : vector<16x16xf32> to vector<16xf32>
    %62 = vector.shape_cast %61 : vector<16xf32> to vector<16x1xf32>
    %63 = vector.broadcast %62 : vector<16x1xf32> to vector<16x16xf32>
    %64 = arith.divf %60, %63 : vector<16x16xf32>
    %c0_29 = arith.constant 0 : index
    %c0_30 = arith.constant 0 : index
    %c0_31 = arith.constant 0 : index
    %65 = vector.load %arg1[%c0_29, %c0_30, %c0_31] : memref<1x16x64xf32, #tpu.memory_space<vmem>>, vector<1x16x64xf32>
    %66 = vector.shape_cast %65 : vector<1x16x64xf32> to vector<16x64xf32>
    %67 = arith.truncf %66 : vector<16x64xf32> to vector<16x64xbf16>
    %cst_32 = arith.constant dense<0.000000e+00> : vector<16x16xf32>
    %68 = tpu.matmul %67, %67, %cst_32 {dimension_numbers = #tpu.dot_dimension_numbers<[1], [1], [0], [0], [0, 0, 1, 0], [], []>} : vector<16x64xbf16>, vector<16x64xbf16>, vector<16x16xf32> -> vector<16x16xf32>
    %69 = arith.mulf %66, %66 : vector<16x64xf32>
    %cst_33 = arith.constant dense<0.000000e+00> : vector<16xf32>
    %70 = vector.multi_reduction <add>, %69, %cst_33 [1] : vector<16x64xf32> to vector<16xf32>
    %71 = vector.shape_cast %70 : vector<16xf32> to vector<16x1xf32>
    %72 = math.sqrt %71 : vector<16x1xf32>
    %73 = tpu.transpose %72, [1, 0] : vector<16x1xf32> -> vector<1x16xf32>
    %74 = vector.broadcast %72 : vector<16x1xf32> to vector<16x16xf32>
    %75 = vector.broadcast %73 : vector<1x16xf32> to vector<16x16xf32>
    %76 = arith.mulf %74, %75 : vector<16x16xf32>
    %cst_34 = arith.constant 9.99999968E-21 : f32
    %77 = vector.broadcast %cst_34 : f32 to vector<16x16xf32>
    %78 = arith.addf %76, %77 : vector<16x16xf32>
    %79 = arith.divf %68, %78 : vector<16x16xf32>
    %cst_35 = arith.constant 0.699999988 : f32
    %80 = vector.broadcast %cst_35 : f32 to vector<16x16xf32>
    %81 = arith.cmpf ogt, %79, %80 : vector<16x16xf32>
    %cst_36 = arith.constant 0.000000e+00 : f32
    %82 = vector.broadcast %cst_36 : f32 to vector<16x16xf32>
    %83 = arith.select %81, %79, %82 : vector<16x16xi1>, vector<16x16xf32>
    %cst_37 = arith.constant dense<0xFF800000> : vector<16xf32>
    %84 = vector.multi_reduction <maximumf>, %83, %cst_37 [1] : vector<16x16xf32> to vector<16xf32>
    %85 = vector.shape_cast %84 : vector<16xf32> to vector<16x1xf32>
    %86 = vector.broadcast %85 : vector<16x1xf32> to vector<16x16xf32>
    %87 = arith.subf %83, %86 : vector<16x16xf32>
    %88 = math.exp %87 : vector<16x16xf32>
    %cst_38 = arith.constant dense<0.000000e+00> : vector<16xf32>
    %89 = vector.multi_reduction <add>, %88, %cst_38 [1] : vector<16x16xf32> to vector<16xf32>
    %90 = vector.shape_cast %89 : vector<16xf32> to vector<16x1xf32>
    %91 = vector.broadcast %90 : vector<16x1xf32> to vector<16x16xf32>
    %92 = arith.divf %88, %91 : vector<16x16xf32>
    %c0_39 = arith.constant 0 : index
    %c0_40 = arith.constant 0 : index
    %93 = vector.load %arg3[%c0_39, %c0_40] : memref<16x16xf32, #tpu.memory_space<vmem>>, vector<16x16xf32>
    %c0_41 = arith.constant 0 : index
    %c0_42 = arith.constant 0 : index
    %94 = vector.load %arg10[%c0_41, %c0_42] : memref<128x96xf32, #tpu.memory_space<vmem>>, vector<128x96xf32>
    %cst_43 = arith.constant dense<0.000000e+00> : vector<16x96xf32>
    %95 = tpu.matmul %1, %94, %cst_43 {dimension_numbers = #tpu.dot_dimension_numbers<[1], [0], [0], [1], [0, 0, 1, 1], [], []>} : vector<16x128xf32>, vector<128x96xf32>, vector<16x96xf32> -> vector<16x96xf32>
    %c0_44 = arith.constant 0 : index
    %c0_45 = arith.constant 0 : index
    %96 = vector.load %arg11[%c0_44, %c0_45] : memref<128x96xf32, #tpu.memory_space<vmem>>, vector<128x96xf32>
    %cst_46 = arith.constant dense<0.000000e+00> : vector<16x96xf32>
    %97 = tpu.matmul %1, %96, %cst_46 {dimension_numbers = #tpu.dot_dimension_numbers<[1], [0], [0], [1], [0, 0, 1, 1], [], []>} : vector<16x128xf32>, vector<128x96xf32>, vector<16x96xf32> -> vector<16x96xf32>
    %98 = vector.extract_strided_slice %95 {offsets = [0, 0], sizes = [16, 32], strides = [1, 1]} : vector<16x96xf32> to vector<16x32xf32>
    %cst_47 = arith.constant dense<0.000000e+00> : vector<16x32xf32>
    %99 = tpu.matmul %92, %98, %cst_47 {dimension_numbers = #tpu.dot_dimension_numbers<[1], [0], [0], [1], [0, 0, 1, 1], [], []>} : vector<16x16xf32>, vector<16x32xf32>, vector<16x32xf32> -> vector<16x32xf32>
    %100 = vector.extract_strided_slice %97 {offsets = [0, 0], sizes = [16, 32], strides = [1, 1]} : vector<16x96xf32> to vector<16x32xf32>
    %101 = arith.addf %99, %100 : vector<16x32xf32>
    %cst_48 = arith.constant 0.000000e+00 : f32
    %102 = vector.broadcast %cst_48 : f32 to vector<16x32xf32>
    %103 = arith.maximumf %101, %102 : vector<16x32xf32>
    %104 = vector.extract_strided_slice %95 {offsets = [0, 32], sizes = [16, 32], strides = [1, 1]} : vector<16x96xf32> to vector<16x32xf32>
    %cst_49 = arith.constant dense<0.000000e+00> : vector<16x32xf32>
    %105 = tpu.matmul %93, %104, %cst_49 {dimension_numbers = #tpu.dot_dimension_numbers<[1], [0], [0], [1], [0, 0, 1, 1], [], []>} : vector<16x16xf32>, vector<16x32xf32>, vector<16x32xf32> -> vector<16x32xf32>
    %106 = vector.extract_strided_slice %97 {offsets = [0, 32], sizes = [16, 32], strides = [1, 1]} : vector<16x96xf32> to vector<16x32xf32>
    %107 = arith.addf %105, %106 : vector<16x32xf32>
    %cst_50 = arith.constant 0.000000e+00 : f32
    %108 = vector.broadcast %cst_50 : f32 to vector<16x32xf32>
    %109 = arith.maximumf %107, %108 : vector<16x32xf32>
    %110 = vector.extract_strided_slice %95 {offsets = [0, 64], sizes = [16, 32], strides = [1, 1]} : vector<16x96xf32> to vector<16x32xf32>
    %cst_51 = arith.constant dense<0.000000e+00> : vector<16x32xf32>
    %111 = tpu.matmul %64, %110, %cst_51 {dimension_numbers = #tpu.dot_dimension_numbers<[1], [0], [0], [1], [0, 0, 1, 1], [], []>} : vector<16x16xf32>, vector<16x32xf32>, vector<16x32xf32> -> vector<16x32xf32>
    %112 = vector.extract_strided_slice %97 {offsets = [0, 64], sizes = [16, 32], strides = [1, 1]} : vector<16x96xf32> to vector<16x32xf32>
    %113 = arith.addf %111, %112 : vector<16x32xf32>
    %cst_52 = arith.constant 0.000000e+00 : f32
    %114 = vector.broadcast %cst_52 : f32 to vector<16x32xf32>
    %115 = arith.maximumf %113, %114 : vector<16x32xf32>
    %116 = tpu.concatenate %103, %109, %115 in 1 : vector<16x32xf32>, vector<16x32xf32>, vector<16x32xf32> -> vector<16x96xf32>
    %c0_53 = arith.constant 0 : index
    %c0_54 = arith.constant 0 : index
    %117 = vector.load %arg12[%c0_53, %c0_54] : memref<96x96xf32, #tpu.memory_space<vmem>>, vector<96x96xf32>
    %cst_55 = arith.constant dense<0.000000e+00> : vector<16x96xf32>
    %118 = tpu.matmul %116, %117, %cst_55 {dimension_numbers = #tpu.dot_dimension_numbers<[1], [0], [0], [1], [0, 0, 1, 1], [], []>} : vector<16x96xf32>, vector<96x96xf32>, vector<16x96xf32> -> vector<16x96xf32>
    %119 = vector.extract_strided_slice %118 {offsets = [0, 0], sizes = [16, 32], strides = [1, 1]} : vector<16x96xf32> to vector<16x32xf32>
    %cst_56 = arith.constant dense<0.000000e+00> : vector<16x32xf32>
    %120 = tpu.matmul %92, %119, %cst_56 {dimension_numbers = #tpu.dot_dimension_numbers<[1], [0], [0], [1], [0, 0, 1, 1], [], []>} : vector<16x16xf32>, vector<16x32xf32>, vector<16x32xf32> -> vector<16x32xf32>
    %121 = vector.extract_strided_slice %116 {offsets = [0, 0], sizes = [16, 32], strides = [1, 1]} : vector<16x96xf32> to vector<16x32xf32>
    %122 = arith.addf %120, %121 : vector<16x32xf32>
    %cst_57 = arith.constant 0.000000e+00 : f32
    %123 = vector.broadcast %cst_57 : f32 to vector<16x32xf32>
    %124 = arith.maximumf %122, %123 : vector<16x32xf32>
    %125 = vector.extract_strided_slice %118 {offsets = [0, 32], sizes = [16, 32], strides = [1, 1]} : vector<16x96xf32> to vector<16x32xf32>
    %cst_58 = arith.constant dense<0.000000e+00> : vector<16x32xf32>
    %126 = tpu.matmul %93, %125, %cst_58 {dimension_numbers = #tpu.dot_dimension_numbers<[1], [0], [0], [1], [0, 0, 1, 1], [], []>} : vector<16x16xf32>, vector<16x32xf32>, vector<16x32xf32> -> vector<16x32xf32>
    %127 = vector.extract_strided_slice %116 {offsets = [0, 32], sizes = [16, 32], strides = [1, 1]} : vector<16x96xf32> to vector<16x32xf32>
    %128 = arith.addf %126, %127 : vector<16x32xf32>
    %cst_59 = arith.constant 0.000000e+00 : f32
    %129 = vector.broadcast %cst_59 : f32 to vector<16x32xf32>
    %130 = arith.maximumf %128, %129 : vector<16x32xf32>
    %131 = vector.extract_strided_slice %118 {offsets = [0, 64], sizes = [16, 32], strides = [1, 1]} : vector<16x96xf32> to vector<16x32xf32>
    %cst_60 = arith.constant dense<0.000000e+00> : vector<16x32xf32>
    %132 = tpu.matmul %64, %131, %cst_60 {dimension_numbers = #tpu.dot_dimension_numbers<[1], [0], [0], [1], [0, 0, 1, 1], [], []>} : vector<16x16xf32>, vector<16x32xf32>, vector<16x32xf32> -> vector<16x32xf32>
    %133 = vector.extract_strided_slice %116 {offsets = [0, 64], sizes = [16, 32], strides = [1, 1]} : vector<16x96xf32> to vector<16x32xf32>
    %134 = arith.addf %132, %133 : vector<16x32xf32>
    %cst_61 = arith.constant 0.000000e+00 : f32
    %135 = vector.broadcast %cst_61 : f32 to vector<16x32xf32>
    %136 = arith.maximumf %134, %135 : vector<16x32xf32>
    %137 = tpu.concatenate %124, %130, %136 in 1 : vector<16x32xf32>, vector<16x32xf32>, vector<16x32xf32> -> vector<16x96xf32>
    %c0_62 = arith.constant 0 : index
    %c0_63 = arith.constant 0 : index
    %138 = vector.load %arg13[%c0_62, %c0_63] : memref<96x2xf32, #tpu.memory_space<vmem>>, vector<96x2xf32>
    %cst_64 = arith.constant dense<0.000000e+00> : vector<16x2xf32>
    %139 = tpu.matmul %137, %138, %cst_64 {dimension_numbers = #tpu.dot_dimension_numbers<[1], [0], [0], [1], [0, 0, 1, 1], [], []>} : vector<16x96xf32>, vector<96x2xf32>, vector<16x2xf32> -> vector<16x2xf32>
    %c0_65 = arith.constant 0 : index
    %c0_66 = arith.constant 0 : index
    %140 = vector.load %arg14[%c0_65, %c0_66] : memref<1x2xf32, #tpu.memory_space<vmem>>, vector<1x2xf32>
    %141 = vector.broadcast %140 : vector<1x2xf32> to vector<16x2xf32>
    %142 = arith.addf %139, %141 : vector<16x2xf32>
    %c0_67 = arith.constant 0 : index
    %c0_68 = arith.constant 0 : index
    %c0_69 = arith.constant 0 : index
    %143 = vector.load %arg16[%c0_67, %c0_68, %c0_69] : memref<1x16x2xf32, #tpu.memory_space<vmem>>, vector<1x16x2xf32>
    %144 = vector.shape_cast %143 : vector<1x16x2xf32> to vector<16x2xf32>
    %145 = vector.shape_cast %142 : vector<16x2xf32> to vector<1x16x2xf32>
    tpu.vector_store %arg16[%c0_67, %c0_68, %c0_69], %145 {strides = array<i32>} : memref<1x16x2xf32, #tpu.memory_space<vmem>>, vector<1x16x2xf32>,
    return
  }
  func.func @transform_0(%arg0: i32) -> (i32, i32, i32) {
    %c0_i32 = arith.constant 0 : i32
    %c0_i32_0 = arith.constant 0 : i32
    %c0_i32_1 = arith.constant 0 : i32
    return %arg0, %c0_i32, %c0_i32_0 : i32, i32, i32
  }
  func.func @transform_1(%arg0: i32) -> (i32, i32, i32) {
    %c0_i32 = arith.constant 0 : i32
    %c0_i32_0 = arith.constant 0 : i32
    %c0_i32_1 = arith.constant 0 : i32
    return %arg0, %c0_i32, %c0_i32_0 : i32, i32, i32
  }
  func.func @transform_2(%arg0: i32) -> (i32, i32) {
    %c0_i32 = arith.constant 0 : i32
    %c0_i32_0 = arith.constant 0 : i32
    %c0_i32_1 = arith.constant 0 : i32
    return %c0_i32, %c0_i32_0 : i32, i32
  }
  func.func @transform_3(%arg0: i32) -> (i32, i32) {
    %c0_i32 = arith.constant 0 : i32
    %c0_i32_0 = arith.constant 0 : i32
    %c0_i32_1 = arith.constant 0 : i32
    return %c0_i32, %c0_i32_0 : i32, i32
  }
  func.func @transform_4(%arg0: i32) -> (i32, i32) {
    %c0_i32 = arith.constant 0 : i32
    %c0_i32_0 = arith.constant 0 : i32
    %c0_i32_1 = arith.constant 0 : i32
    return %c0_i32, %c0_i32_0 : i32, i32
  }
  func.func @transform_5(%arg0: i32) -> (i32, i32) {
    %c0_i32 = arith.constant 0 : i32
    %c0_i32_0 = arith.constant 0 : i32
    %c0_i32_1 = arith.constant 0 : i32
    return %c0_i32, %c0_i32_0 : i32, i32
  }
  func.func @transform_6(%arg0: i32) -> (i32, i32) {
    %c0_i32 = arith.constant 0 : i32
    %c0_i32_0 = arith.constant 0 : i32
    %c0_i32_1 = arith.constant 0 : i32
    return %c0_i32, %c0_i32_0 : i32, i32
  }
  func.func @transform_7(%arg0: i32) -> (i32, i32) {
    %c0_i32 = arith.constant 0 : i32
    %c0_i32_0 = arith.constant 0 : i32
    %c0_i32_1 = arith.constant 0 : i32
    return %c0_i32, %c0_i32_0 : i32, i32
  }
  func.func @transform_8(%arg0: i32) -> (i32, i32) {
    %c0_i32 = arith.constant 0 : i32
    %c0_i32_0 = arith.constant 0 : i32
    %c0_i32_1 = arith.constant 0 : i32
    return %c0_i32, %c0_i32_0 : i32, i32
  }
  func.func @transform_9(%arg0: i32) -> (i32, i32) {
    %c0_i32 = arith.constant 0 : i32
    %c0_i32_0 = arith.constant 0 : i32
    %c0_i32_1 = arith.constant 0 : i32
    return %c0_i32, %c0_i32_0 : i32, i32
  }
  func.func @transform_10(%arg0: i32) -> (i32, i32) {
    %c0_i32 = arith.constant 0 : i32
    %c0_i32_0 = arith.constant 0 : i32
    %c0_i32_1 = arith.constant 0 : i32
    return %c0_i32, %c0_i32_0 : i32, i32
  }
  func.func @transform_11(%arg0: i32) -> (i32, i32) {
    %c0_i32 = arith.constant 0 : i32
    %c0_i32_0 = arith.constant 0 : i32
    %c0_i32_1 = arith.constant 0 : i32
    return %c0_i32, %c0_i32_0 : i32, i32
  }
  func.func @transform_12(%arg0: i32) -> (i32, i32) {
    %c0_i32 = arith.constant 0 : i32
    %c0_i32_0 = arith.constant 0 : i32
    %c0_i32_1 = arith.constant 0 : i32
    return %c0_i32, %c0_i32_0 : i32, i32
  }
  func.func @transform_13(%arg0: i32) -> (i32, i32) {
    %c0_i32 = arith.constant 0 : i32
    %c0_i32_0 = arith.constant 0 : i32
    %c0_i32_1 = arith.constant 0 : i32
    return %c0_i32, %c0_i32_0 : i32, i32
  }
  func.func @transform_14(%arg0: i32) -> (i32, i32, i32) {
    %c0_i32 = arith.constant 0 : i32
    %c0_i32_0 = arith.constant 0 : i32
    %c0_i32_1 = arith.constant 0 : i32
    return %arg0, %c0_i32, %c0_i32_0 : i32, i32, i32
  }
  func.func @transform_15(%arg0: i32) -> (i32, i32, i32) {
    %c0_i32 = arith.constant 0 : i32
    %c0_i32_0 = arith.constant 0 : i32
    %c0_i32_1 = arith.constant 0 : i32
    return %arg0, %c0_i32, %c0_i32_0 : i32, i32, i32
  }
}

</mosaic_0001>

<llo_original>
// kernel: model_forward.2
$region0: #{model_forward.2}
  #allocation0 [shape = 'u32[]', space=smem, size = 0x4, offset = 0x4, fixed_abs, tag = 'smem constant byte address 0x4 - core index']
  #allocation1 [shape = 'u32[144,128]{1,0:T(1,128)}', space=vmem, size = 0x12000, scoped, tag = 'internal scratch']
  %s0 = inlined_call_operand.vmem [shape: f32[32,64], index: 0, kind: input, shape index: {}]
  %s1 = inlined_call_operand.hbm [shape: bf16[64,512], index: 1, kind: input, shape index: {}]
  %s2 = inlined_call_operand.vmem [shape: f32[1,512], index: 2, kind: input, shape index: {}]
  %s3 = inlined_call_operand.hbm [shape: bf16[512,128], index: 3, kind: input, shape index: {}]
  %s4 = inlined_call_operand.vmem [shape: f32[1,128], index: 4, kind: input, shape index: {}]
  %s5 = inlined_call_operand.vmem [shape: f32[32,128], index: 5, kind: output, shape index: {}]
  %s6 = sld [smem:[#allocation0]]
  $region61: #{model_forward.2} parent=0
    _
  %s8 = ssub.s32 1, %s6
  %s9 = scalar_select 0, %s8, %s6
  $region1: #{model_forward.2} parent=0
    #allocation2 [shape = 'u8[65536]{0}', space=vmem, size = 0x10000, scoped, tag = 'input window, operand 1, single buffered']
    #allocation3 [shape = 's32[2]{0}', space=sflag, size = 0x8, scoped, tag = 'scoped memory for model_forward.2']
    #allocation4 [shape = 'u8[131072]{0}', space=vmem, size = 0x20000, scoped, tag = 'input window, operand 3, single buffered']
    #allocation5 [shape = 's32[1]{0}', space=sflag, size = 0x4, scoped, tag = 'scoped memory for model_forward.2']
    %10 = vsyncpa [#allocation3], 0
    %11 = vsyncpa [#allocation5], 0
    loop: start=0, step=1, limit=4
    $region2: #{model_forward.2} parent=1 // loop_pre_header
      _
    $region3: #{model_forward.2} parent=1 // loop_header
      %s13 = sphi 0, %s17
      %p14 = scmp.ge.s32.totalorder %s13, 4
      %s23 = sphi 0, %s25
      %s26 = sphi 0, %s23
      %s27 = sphi 0, %s26
      %s43 = sphi 0, %s27
      %s47 = sphi 0, %s47
      %s49 = sphi 0, %s47
      %s50 = sphi 0, %s49
      %s64 = sphi 0, %s50
      %s68 = sphi 0, %s68
      %s70 = sphi 0, %s68
      %s71 = sphi 0, %s70
      %s85 = sphi 0, %s71
      %s89 = sphi 0, %s89
      %s91 = sphi 0, %s89
      %s92 = sphi 0, %s91
      %s106 = sphi 0, %s92
      %s110 = sphi 0, %s110
      %s112 = sphi 0, %s110
      %s113 = sphi 0, %s112
      %s127 = sphi 0, %s113
      %s133 = sphi 0, %s135
      %s136 = sphi 0, %s133
      %s137 = sphi 0, %s136
      %s153 = sphi 0, %s137
    $region4: #{model_forward.2} parent=1 // loop_header_branch
      %16 = sbr.rel (%p14) target = $region8
    $region5: #{model_forward.2} parent=1 // loop_body
      %s18 = ssub.s32 %s13, 1
      %s19 = ssub.s32 %s13, 2
      %s20 = sadd.s32 %s13, 1
      %s21 = ssub.s32 %s13, %s20
      %p22 = scmp.eq.s32.totalorder %s21, 0
      %s24 = sadd.s32 %s23, 1
      %s25 = scalar_select %p22, %s23, %s24
      %p28 = pneg %p22
      %p29 = scmp.eq.s32.totalorder %s13, 1
      %p30 = por %p28, %p29
      %p31 = scmp.ne.s32.totalorder %s23, %s26
      %p32 = scmp.eq.s32.totalorder %s13, 0
      %p33 = por %p31, %p32
      %p34 = scmp.ne.s32.totalorder %s23, %s26
      %p35 = scmp.eq.s32.totalorder %s18, 1
      %p36 = por %p34, %p35
      %p37 = scmp.ne.s32.totalorder %s26, %s27
      %p38 = scmp.eq.s32.totalorder %s18, 0
      %p39 = por %p37, %p38
      %p40 = scmp.ne.s32.totalorder %s26, %s27
      %p41 = scmp.eq.s32.totalorder %s19, 1
      %p42 = por %p40, %p41
      %p44 = scmp.ne.s32.totalorder %s27, %s43
      %p45 = scmp.eq.s32.totalorder %s19, 0
      %p46 = por %p44, %p45
      %s48 = sadd.s32 %s47, 1
      %p51 = scmp.eq.s32.totalorder %s13, 1
      %p52 = scmp.ne.s32.totalorder %s47, %s49
      %p53 = scmp.eq.s32.totalorder %s13, 0
      %p54 = por %p52, %p53
      %p55 = scmp.ne.s32.totalorder %s47, %s49
      %p56 = scmp.eq.s32.totalorder %s18, 1
      %p57 = por %p55, %p56
      %p58 = scmp.ne.s32.totalorder %s49, %s50
      %p59 = scmp.eq.s32.totalorder %s18, 0
      %p60 = por %p58, %p59
      %p61 = scmp.ne.s32.totalorder %s49, %s50
      %p62 = scmp.eq.s32.totalorder %s19, 1
      %p63 = por %p61, %p62
      %p65 = scmp.ne.s32.totalorder %s50, %s64
      %p66 = scmp.eq.s32.totalorder %s19, 0
      %p67 = por %p65, %p66
      %s69 = sadd.s32 %s68, 1
      %p72 = scmp.eq.s32.totalorder %s13, 1
      %p73 = scmp.ne.s32.totalorder %s68, %s70
      %p74 = scmp.eq.s32.totalorder %s13, 0
      %p75 = por %p73, %p74
      %p76 = scmp.ne.s32.totalorder %s68, %s70
      %p77 = scmp.eq.s32.totalorder %s18, 1
      %p78 = por %p76, %p77
      %p79 = scmp.ne.s32.totalorder %s70, %s71
      %p80 = scmp.eq.s32.totalorder %s18, 0
      %p81 = por %p79, %p80
      %p82 = scmp.ne.s32.totalorder %s70, %s71
      %p83 = scmp.eq.s32.totalorder %s19, 1
      %p84 = por %p82, %p83
      %p86 = scmp.ne.s32.totalorder %s71, %s85
      %p87 = scmp.eq.s32.totalorder %s19, 0
      %p88 = por %p86, %p87
      %s90 = sadd.s32 %s89, 1
      %p93 = scmp.eq.s32.totalorder %s13, 1
      %p94 = scmp.ne.s32.totalorder %s89, %s91
      %p95 = scmp.eq.s32.totalorder %s13, 0
      %p96 = por %p94, %p95
      %p97 = scmp.ne.s32.totalorder %s89, %s91
      %p98 = scmp.eq.s32.totalorder %s18, 1
      %p99 = por %p97, %p98
      %p100 = scmp.ne.s32.totalorder %s91, %s92
      %p101 = scmp.eq.s32.totalorder %s18, 0
      %p102 = por %p100, %p101
      %p103 = scmp.ne.s32.totalorder %s91, %s92
      %p104 = scmp.eq.s32.totalorder %s19, 1
      %p105 = por %p103, %p104
      %p107 = scmp.ne.s32.totalorder %s92, %s106
      %p108 = scmp.eq.s32.totalorder %s19, 0
      %p109 = por %p107, %p108
      %s111 = sadd.s32 %s110, 1
      %p114 = scmp.eq.s32.totalorder %s13, 1
      %p115 = scmp.ne.s32.totalorder %s110, %s112
      %p116 = scmp.eq.s32.totalorder %s13, 0
      %p117 = por %p115, %p116
      %p118 = scmp.ne.s32.totalorder %s110, %s112
      %p119 = scmp.eq.s32.totalorder %s18, 1
      %p120 = por %p118, %p119
      %p121 = scmp.ne.s32.totalorder %s112, %s113
      %p122 = scmp.eq.s32.totalorder %s18, 0
      %p123 = por %p121, %p122
      %p124 = scmp.ne.s32.totalorder %s112, %s113
      %p125 = scmp.eq.s32.totalorder %s19, 1
      %p126 = por %p124, %p125
      %p128 = scmp.ne.s32.totalorder %s113, %s127
      %p129 = scmp.eq.s32.totalorder %s19, 0
      %p130 = por %p128, %p129
      %s131 = ssub.s32 %s13, %s20
      %p132 = scmp.eq.s32.totalorder %s131, 0
      %s134 = sadd.s32 %s133, 1
      %s135 = scalar_select %p132, %s133, %s134
      %p138 = pneg %p132
      %p139 = scmp.eq.s32.totalorder %s13, 1
      %p140 = por %p138, %p139
      %p141 = scmp.ne.s32.totalorder %s133, %s136
      %p142 = scmp.eq.s32.totalorder %s13, 0
      %p143 = por %p141, %p142
      %p144 = scmp.ne.s32.totalorder %s133, %s136
      %p145 = scmp.eq.s32.totalorder %s18, 1
      %p146 = por %p144, %p145
      %p147 = scmp.ne.s32.totalorder %s136, %s137
      %p148 = scmp.eq.s32.totalorder %s18, 0
      %p149 = por %p147, %p148
      %p150 = scmp.ne.s32.totalorder %s136, %s137
      %p151 = scmp.eq.s32.totalorder %s19, 1
      %p152 = por %p150, %p151
      %p154 = scmp.ne.s32.totalorder %s137, %s153
      %p155 = scmp.eq.s32.totalorder %s19, 0
      %p156 = por %p154, %p155
      %p157 = scmp.le.s32.totalorder 1, %s13
      %p158 = scmp.lt.s32.totalorder %s13, 3
      %p159 = pnand %p157, %p158
      %p160 = pneg %p159
      // Predicated region
      $region9: #{model_forward.2} parent=5 // pred_check
        _
      $region10: #{model_forward.2} parent=5 // pred_check_branch
        %162 = sbr.rel (%p159) target = $region12
      $region11: #{model_forward.2} parent=5 // pred_region
        %s163 = ssub.s32 %s13, 1
        // Predicated region
        $region13: #{model_forward.2} parent=11 // pred_check
          %p164 = pneg %p60
        $region14: #{model_forward.2} parent=11 // pred_check_branch
          %166 = sbr.rel (%p164) target = $region16
        $region15: #{model_forward.2} parent=11 // pred_region
          %s168 = ssub.s32 2048, 2048
          %169 = vsyncadd [#allocation3], %s168
          %s170 = sshll.u32 [#allocation2], 4
          %s171 = int_to_ptr.vmem [resolvable:$true] %s170
          %176 = dma.hbm_to_vmem [thread:$0]  %s1, 2048, %s171, [#allocation3], 256, 256, 16
        $region16: #{model_forward.2} parent=11 // pred_fallthru
          _
        // Predicated region
        $region17: #{model_forward.2} parent=11 // pred_check
          %p177 = pneg %p81
        $region18: #{model_forward.2} parent=11 // pred_check_branch
          %179 = sbr.rel (%p177) target = $region20
        $region19: #{model_forward.2} parent=11 // pred_region
          _
        $region20: #{model_forward.2} parent=11 // pred_fallthru
          _
        // Predicated region
        $region21: #{model_forward.2} parent=11 // pred_check
          %p180 = pneg %p102
        $region22: #{model_forward.2} parent=11 // pred_check_branch
          %182 = sbr.rel (%p180) target = $region24
        $region23: #{model_forward.2} parent=11 // pred_region
          %s184 = ssub.s32 4096, 4096
          %185 = vsyncadd [#allocation5], %s184
          %s186 = sshll.u32 [#allocation4], 4
          %s187 = int_to_ptr.vmem [resolvable:$true] %s186
          %192 = dma.hbm_to_vmem [thread:$0]  %s3, 4096, %s187, [#allocation5], 64, 64, 4
        $region24: #{model_forward.2} parent=11 // pred_fallthru
          _
        // Predicated region
        $region25: #{model_forward.2} parent=11 // pred_check
          %p193 = pneg %p123
        $region26: #{model_forward.2} parent=11 // pred_check_branch
          %195 = sbr.rel (%p193) target = $region28
        $region27: #{model_forward.2} parent=11 // pred_region
          _
        $region28: #{model_forward.2} parent=11 // pred_fallthru
          _
      $region12: #{model_forward.2} parent=5 // pred_fallthru
        _
      %p196 = scmp.lt.s32.totalorder %s13, 2
      // Predicated region
      $region29: #{model_forward.2} parent=5 // pred_check
        %p197 = pneg %p196
      $region30: #{model_forward.2} parent=5 // pred_check_branch
        %199 = sbr.rel (%p197) target = $region32
      $region31: #{model_forward.2} parent=5 // pred_region
        // Predicated region
        $region33: #{model_forward.2} parent=31 // pred_check
          %p200 = pneg %p33
        $region34: #{model_forward.2} parent=31 // pred_check_branch
          %202 = sbr.rel (%p200) target = $region36
        $region35: #{model_forward.2} parent=31 // pred_region
          %s203 = smul.u32 2, %s13
          %p204 = scmp.lt.s32.totalorder %s203, 3
          %s205 = scalar_select %p204, %s203, 3
          %s206 = smul.addr %s205, 8
          %s207 = scalar_lea.vmem %s0, %s206
          %s208 = smul.u32 2, %s13
        $region36: #{model_forward.2} parent=31 // pred_fallthru
          _
      $region32: #{model_forward.2} parent=5 // pred_fallthru
        _
      %p209 = scmp.le.s32.totalorder 1, %s13
      %p210 = scmp.lt.s32.totalorder %s13, 3
      %p211 = pnand %p209, %p210
      %p212 = pneg %p211
      // Predicated region
      $region37: #{model_forward.2} parent=5 // pred_check
        _
      $region38: #{model_forward.2} parent=5 // pred_check_branch
        %214 = sbr.rel (%p211) target = $region40
      $region39: #{model_forward.2} parent=5 // pred_region
        %s215 = ssub.s32 %s13, 1
        // Predicated region
        $region41: #{model_forward.2} parent=39 // pred_check
          %p216 = pneg %p60
        $region42: #{model_forward.2} parent=39 // pred_check_branch
          %218 = sbr.rel (%p216) target = $region44
        $region43: #{model_forward.2} parent=39 // pred_region
          %219 = dma.done [#allocation3], 2048
        $region44: #{model_forward.2} parent=39 // pred_fallthru
          _
        // Predicated region
        $region45: #{model_forward.2} parent=39 // pred_check
          %p220 = pneg %p102
        $region46: #{model_forward.2} parent=39 // pred_check_branch
          %222 = sbr.rel (%p220) target = $region48
        $region47: #{model_forward.2} parent=39 // pred_region
          %223 = dma.done [#allocation5], 4096
        $region48: #{model_forward.2} parent=39 // pred_fallthru
          _
        %s224 = smul.u32 2, %s18
        %p225 = scmp.lt.s32.totalorder %s224, 3
        %s226 = scalar_select %p225, %s224, 3
        %s227 = smul.addr %s226, 8
        %s228 = scalar_lea.vmem %s0, %s227
        %p229 = pneg %p39
        %p230 = pneg %p36
        %p231 = pneg %p60
        %p232 = pneg %p57
        %p233 = pneg %p81
        %p234 = pneg %p78
        %p235 = pneg %p102
        %p236 = pneg %p99
        %p237 = pneg %p123
        %p238 = pneg %p120
        %p239 = pneg %p149
        %p240 = pneg %p146
        %s241 = smul.u32 2, %s18
        %p242 = scmp.lt.s32.totalorder %s241, 3
        %s243 = scalar_select %p242, %s241, 3
        %s244 = smul.addr %s243, 8
        %s245 = scalar_lea.vmem %s5, %s244
        %s246 = smul.u32 2, %s18
        %p247 = scmp.lt.s32.totalorder %s246, 3
        %s248 = scalar_select %p247, %s246, 3
        %s249 = smul.addr %s248, 8
        %s250 = scalar_lea.vmem %s0, %s249
        %s251 = smul.u32 2, %s18
        %s252 = smul.u32 2, %s18
        %p253 = scmp.lt.s32.totalorder %s252, 3
        %s254 = scalar_select %p253, %s252, 3
        %s255 = smul.addr %s254, 8
        %s256 = scalar_lea.vmem %s5, %s255
        %s257 = smul.u32 2, %s18
        %v259 = vld [vmem:[%s250] sm:$0xff]
        %v260 = vld [vmem:[%s250 + $0x8] sm:$0xff]
        %v261 = vpack.c.bf16 %v260, %v259
        %v262 = vld [vmem:[#allocation2] sm:$0xff]
        %v263 = vld [vmem:[#allocation2 + $0x8] sm:$0xff]
        %v264 = vld [vmem:[#allocation2 + $0x10] sm:$0xff]
        %v265 = vld [vmem:[#allocation2 + $0x18] sm:$0xff]
        %v266 = vld [vmem:[#allocation2 + $0x20] sm:$0xff]
        %v267 = vld [vmem:[#allocation2 + $0x28] sm:$0xff]
        %v268 = vld [vmem:[#allocation2 + $0x30] sm:$0xff]
        %v269 = vld [vmem:[#allocation2 + $0x38] sm:$0xff]
        %v270 = vld [vmem:[#allocation2 + $0x40] sm:$0xff]
        %v271 = vld [vmem:[#allocation2 + $0x48] sm:$0xff]
        %v272 = vld [vmem:[#allocation2 + $0x50] sm:$0xff]
        %v273 = vld [vmem:[#allocation2 + $0x58] sm:$0xff]
        %v274 = vld [vmem:[#allocation2 + $0x60] sm:$0xff]
        %v275 = vld [vmem:[#allocation2 + $0x68] sm:$0xff]
        %v276 = vld [vmem:[#allocation2 + $0x70] sm:$0xff]
        %v277 = vld [vmem:[#allocation2 + $0x78] sm:$0xff]
        %v278 = vld [vmem:[%s2] sm:$0xf]
        %v280 = vlaneseq
        %v281 = vshrl.u32 %v280, 7
        %v282 = vsub.s32 0, %v281
        %v283 = vrot.slane %v278, %v282
        %v284 = vlaneseq
        %v285 = vshrl.u32 %v284, 7
        %v286 = vsub.s32 1, %v285
        %v287 = vrot.slane %v278, %v286
        %v288 = vlaneseq
        %v289 = vshrl.u32 %v288, 7
        %v290 = vsub.s32 2, %v289
        %v291 = vrot.slane %v278, %v290
        %v292 = vlaneseq
        %v293 = vshrl.u32 %v292, 7
        %v294 = vsub.s32 3, %v293
        %v295 = vrot.slane %v278, %v294
        %v316 = vunpack.c.l.b16 %v262
        %v317 = vunpack.c.h.b16 %v262
        %v318 = vunpack.c.l.b16 %v263
        %v319 = vunpack.c.h.b16 %v263
        %v320 = vunpack.c.l.b16 %v264
        %v321 = vunpack.c.h.b16 %v264
        %v322 = vunpack.c.l.b16 %v265
        %v323 = vunpack.c.h.b16 %v265
        %v324 = vunpack.c.l.b16 %v266
        %v325 = vunpack.c.h.b16 %v266
        %v326 = vunpack.c.l.b16 %v267
        %v327 = vunpack.c.h.b16 %v267
        %v328 = vunpack.c.l.b16 %v268
        %v329 = vunpack.c.h.b16 %v268
        %v330 = vunpack.c.l.b16 %v269
        %v331 = vunpack.c.h.b16 %v269
        %v332 = vunpack.c.l.b16 %v270
        %v333 = vunpack.c.h.b16 %v270
        %v334 = vunpack.c.l.b16 %v271
        %v335 = vunpack.c.h.b16 %v271
        %v336 = vunpack.c.l.b16 %v272
        %v337 = vunpack.c.h.b16 %v272
        %v338 = vunpack.c.l.b16 %v273
        %v339 = vunpack.c.h.b16 %v273
        %v340 = vunpack.c.l.b16 %v274
        %v341 = vunpack.c.h.b16 %v274
        %v342 = vunpack.c.l.b16 %v275
        %v343 = vunpack.c.h.b16 %v275
        %v344 = vunpack.c.l.b16 %v276
        %v345 = vunpack.c.h.b16 %v276
        %v346 = vunpack.c.l.b16 %v277
        %v347 = vunpack.c.h.b16 %v277
        %v348 = vpack.c.b16 %v320, %v316
        %v349 = vpack.c.b16 %v321, %v317
        %v350 = vpack.c.b16 %v322, %v318
        %v351 = vpack.c.b16 %v323, %v319
        %v352 = vpack.c.b16 %v328, %v324
        %v353 = vpack.c.b16 %v329, %v325
        %v354 = vpack.c.b16 %v330, %v326
        %v355 = vpack.c.b16 %v331, %v327
        %v356 = vpack.c.b16 %v336, %v332
        %v357 = vpack.c.b16 %v337, %v333
        %v358 = vpack.c.b16 %v338, %v334
        %v359 = vpack.c.b16 %v339, %v335
        %v360 = vpack.c.b16 %v344, %v340
        %v361 = vpack.c.b16 %v345, %v341
        %v362 = vpack.c.b16 %v346, %v342
        %v363 = vpack.c.b16 %v347, %v343
        %vm380 = vcmask 523264
        %v382 = vsel %vm380, %v261, 0
        %384 = vmatprep.subr.bf16.mxu0 %v349
        %385 = vmatpush1.bf16.msra.mxu0 %v348
        %386 = vmatprep.subr.bf16.mxu0 %v353
        %387 = vmatpush1.bf16.msra.mxu0 %v352
        %388 = vmatprep.subr.bf16.mxu0 %v357
        %389 = vmatpush1.bf16.msra.mxu0 %v356
        %390 = vmatprep.subr.bf16.mxu0 %v361
        %391 = vmatpush1.bf16.msra.mxu0 %v360
        %392 = vmatprep.subr.bf16.mxu0 0
        %393 = vmatpush1.bf16.msra.mxu0 0
        %394 = vmatprep.subr.bf16.mxu0 0
        %395 = vmatpush1.bf16.msra.mxu0 0
        %396 = vmatprep.subr.bf16.mxu0 0
        %397 = vmatpush1.bf16.msra.mxu0 0
        %398 = vmatprep.subr.bf16.mxu0 0
        %399 = vmatpush1.bf16.msra.mxu0 0
        %400 = vmatprep.subr.bf16.mxu0 0
        %401 = vmatpush1.bf16.msra.mxu0 0
        %402 = vmatprep.subr.bf16.mxu0 0
        %403 = vmatpush1.bf16.msra.mxu0 0
        %404 = vmatprep.subr.bf16.mxu0 0
        %405 = vmatpush1.bf16.msra.mxu0 0
        %406 = vmatprep.subr.bf16.mxu0 0
        %407 = vmatpush1.bf16.msra.mxu0 0
        %408 = vmatprep.subr.bf16.mxu0 0
        %409 = vmatpush1.bf16.msra.mxu0 0
        %410 = vmatprep.subr.bf16.mxu0 0
        %411 = vmatpush1.bf16.msra.mxu0 0
        %412 = vmatprep.subr.bf16.mxu0 0
        %413 = vmatpush1.bf16.msra.mxu0 0
        %414 = vmatprep.subr.bf16.mxu0 0
        %415 = vmatpush1.bf16.msra.mxu0 0
        %416 = vmatprep.mubr.bf16.mxu0 0
        %417 = vmatmul.mubr.bf16.gmra.mrb[0].mxu0 %v382
        %v418 = vpop.f32.mrb[0].mxu0
        %v419 = vadd.f32 %v283, %v418
        %v420 = vpop.f32.mrb[0].mxu0
        %v421 = vadd.f32 %v287, %v420
        %v422 = vpop.f32.mrb[0].mxu0
        %v423 = vadd.f32 %v283, %v422
        %v424 = vpop.f32.mrb[0].mxu0
        %v425 = vadd.f32 %v287, %v424
        %426 = vdwg.mxu0
        %427 = vmatprep.subr.bf16.mxu0 %v351
        %428 = vmatpush1.bf16.msra.mxu0 %v350
        %429 = vmatprep.subr.bf16.mxu0 %v355
        %430 = vmatpush1.bf16.msra.mxu0 %v354
        %431 = vmatprep.subr.bf16.mxu0 %v359
        %432 = vmatpush1.bf16.msra.mxu0 %v358
        %433 = vmatprep.subr.bf16.mxu0 %v363
        %434 = vmatpush1.bf16.msra.mxu0 %v362
        %435 = vmatprep.subr.bf16.mxu0 0
        %436 = vmatpush1.bf16.msra.mxu0 0
        %437 = vmatprep.subr.bf16.mxu0 0
        %438 = vmatpush1.bf16.msra.mxu0 0
        %439 = vmatprep.subr.bf16.mxu0 0
        %440 = vmatpush1.bf16.msra.mxu0 0
        %441 = vmatprep.subr.bf16.mxu0 0
        %442 = vmatpush1.bf16.msra.mxu0 0
        %443 = vmatprep.subr.bf16.mxu0 0
        %444 = vmatpush1.bf16.msra.mxu0 0
        %445 = vmatprep.subr.bf16.mxu0 0
        %446 = vmatpush1.bf16.msra.mxu0 0
        %447 = vmatprep.subr.bf16.mxu0 0
        %448 = vmatpush1.bf16.msra.mxu0 0
        %449 = vmatprep.subr.bf16.mxu0 0
        %450 = vmatpush1.bf16.msra.mxu0 0
        %451 = vmatprep.subr.bf16.mxu0 0
        %452 = vmatpush1.bf16.msra.mxu0 0
        %453 = vmatprep.subr.bf16.mxu0 0
        %454 = vmatpush1.bf16.msra.mxu0 0
        %455 = vmatprep.subr.bf16.mxu0 0
        %456 = vmatpush1.bf16.msra.mxu0 0
        %457 = vmatprep.subr.bf16.mxu0 0
        %458 = vmatpush1.bf16.msra.mxu0 0
        %459 = vmatprep.mubr.bf16.mxu0 0
        %460 = vmatmul.mubr.bf16.gmra.mrb[0].mxu0 %v382
        %v461 = vpop.f32.mrb[0].mxu0
        %v462 = vadd.f32 %v291, %v461
        %v463 = vpop.f32.mrb[0].mxu0
        %v464 = vadd.f32 %v295, %v463
        %v465 = vpop.f32.mrb[0].mxu0
        %v466 = vadd.f32 %v291, %v465
        %v467 = vpop.f32.mrb[0].mxu0
        %v468 = vadd.f32 %v295, %v467
        %469 = vdwg.mxu0
        %v470 = vmax.f32 %v419, 0.0
        %v471 = vmax.f32 %v421, 0.0
        %v472 = vmax.f32 %v462, 0.0
        %v473 = vmax.f32 %v464, 0.0
        %v474 = vmax.f32 %v423, 0.0
        %v475 = vmax.f32 %v425, 0.0
        %v476 = vmax.f32 %v466, 0.0
        %v477 = vmax.f32 %v468, 0.0
        %v478 = vpack.c.bf16 %v474, %v470
        %v479 = vpack.c.bf16 %v475, %v471
        %v480 = vpack.c.bf16 %v476, %v472
        %v481 = vpack.c.bf16 %v477, %v473
        %v482 = vld [vmem:[#allocation4] sm:$0xf]
        %v483 = vld [vmem:[#allocation4 + $0x4] sm:$0xf]
        %v484 = vld [vmem:[#allocation4 + $0x8] sm:$0xf]
        %v485 = vld [vmem:[#allocation4 + $0xc] sm:$0xf]
        %v486 = vld [vmem:[#allocation4 + $0x10] sm:$0xf]
        %v487 = vld [vmem:[#allocation4 + $0x14] sm:$0xf]
        %v488 = vld [vmem:[#allocation4 + $0x18] sm:$0xf]
        %v489 = vld [vmem:[#allocation4 + $0x1c] sm:$0xf]
        %v490 = vld [vmem:[#allocation4 + $0x20] sm:$0xf]
        %v491 = vld [vmem:[#allocation4 + $0x24] sm:$0xf]
        %v492 = vld [vmem:[#allocation4 + $0x28] sm:$0xf]
        %v493 = vld [vmem:[#allocation4 + $0x2c] sm:$0xf]
        %v494 = vld [vmem:[#allocation4 + $0x30] sm:$0xf]
        %v495 = vld [vmem:[#allocation4 + $0x34] sm:$0xf]
        %v496 = vld [vmem:[#allocation4 + $0x38] sm:$0xf]
        %v497 = vld [vmem:[#allocation4 + $0x3c] sm:$0xf]
        %v498 = vld [vmem:[#allocation4 + $0x40] sm:$0xf]
        %v499 = vld [vmem:[#allocation4 + $0x44] sm:$0xf]
        %v500 = vld [vmem:[#allocation4 + $0x48] sm:$0xf]
        %v501 = vld [vmem:[#allocation4 + $0x4c] sm:$0xf]
        %v502 = vld [vmem:[#allocation4 + $0x50] sm:$0xf]
        %v503 = vld [vmem:[#allocation4 + $0x54] sm:$0xf]
        %v504 = vld [vmem:[#allocation4 + $0x58] sm:$0xf]
        %v505 = vld [vmem:[#allocation4 + $0x5c] sm:$0xf]
        %v506 = vld [vmem:[#allocation4 + $0x60] sm:$0xf]
        %v507 = vld [vmem:[#allocation4 + $0x64] sm:$0xf]
        %v508 = vld [vmem:[#allocation4 + $0x68] sm:$0xf]
        %v509 = vld [vmem:[#allocation4 + $0x6c] sm:$0xf]
        %v510 = vld [vmem:[#allocation4 + $0x70] sm:$0xf]
        %v511 = vld [vmem:[#allocation4 + $0x74] sm:$0xf]
        %v512 = vld [vmem:[#allocation4 + $0x78] sm:$0xf]
        %v513 = vld [vmem:[#allocation4 + $0x7c] sm:$0xf]
        %v514 = vld [vmem:[#allocation4 + $0x80] sm:$0xf]
        %v515 = vld [vmem:[#allocation4 + $0x84] sm:$0xf]
        %v516 = vld [vmem:[#allocation4 + $0x88] sm:$0xf]
        %v517 = vld [vmem:[#allocation4 + $0x8c] sm:$0xf]
        %v518 = vld [vmem:[#allocation4 + $0x90] sm:$0xf]
        %v519 = vld [vmem:[#allocation4 + $0x94] sm:$0xf]
        %v520 = vld [vmem:[#allocation4 + $0x98] sm:$0xf]
        %v521 = vld [vmem:[#allocation4 + $0x9c] sm:$0xf]
        %v522 = vld [vmem:[#allocation4 + $0xa0] sm:$0xf]
        %v523 = vld [vmem:[#allocation4 + $0xa4] sm:$0xf]
        %v524 = vld [vmem:[#allocation4 + $0xa8] sm:$0xf]
        %v525 = vld [vmem:[#allocation4 + $0xac] sm:$0xf]
        %v526 = vld [vmem:[#allocation4 + $0xb0] sm:$0xf]
        %v527 = vld [vmem:[#allocation4 + $0xb4] sm:$0xf]
        %v528 = vld [vmem:[#allocation4 + $0xb8] sm:$0xf]
        %v529 = vld [vmem:[#allocation4 + $0xbc] sm:$0xf]
        %v530 = vld [vmem:[#allocation4 + $0xc0] sm:$0xf]
        %v531 = vld [vmem:[#allocation4 + $0xc4] sm:$0xf]
        %v532 = vld [vmem:[#allocation4 + $0xc8] sm:$0xf]
        %v533 = vld [vmem:[#allocation4 + $0xcc] sm:$0xf]
        %v534 = vld [vmem:[#allocation4 + $0xd0] sm:$0xf]
        %v535 = vld [vmem:[#allocation4 + $0xd4] sm:$0xf]
        %v536 = vld [vmem:[#allocation4 + $0xd8] sm:$0xf]
        %v537 = vld [vmem:[#allocation4 + $0xdc] sm:$0xf]
        %v538 = vld [vmem:[#allocation4 + $0xe0] sm:$0xf]
        %v539 = vld [vmem:[#allocation4 + $0xe4] sm:$0xf]
        %v540 = vld [vmem:[#allocation4 + $0xe8] sm:$0xf]
        %v541 = vld [vmem:[#allocation4 + $0xec] sm:$0xf]
        %v542 = vld [vmem:[#allocation4 + $0xf0] sm:$0xf]
        %v543 = vld [vmem:[#allocation4 + $0xf4] sm:$0xf]
        %v544 = vld [vmem:[#allocation4 + $0xf8] sm:$0xf]
        %v545 = vld [vmem:[#allocation4 + $0xfc] sm:$0xf]
        %v546 = vld [vmem:[%s4] sm:$0x1]
        %v548 = vlaneseq
        %v549 = vshrl.u32 %v548, 7
        %v550 = vsub.s32 0, %v549
        %v551 = vrot.slane %v546, %v550
        %v617 = vunpack.c.l.b16 %v482
        %v618 = vunpack.c.l.b16 %v483
        %v619 = vunpack.c.l.b16 %v484
        %v620 = vunpack.c.l.b16 %v485
        %v621 = vunpack.c.l.b16 %v486
        %v622 = vunpack.c.l.b16 %v487
        %v623 = vunpack.c.l.b16 %v488
        %v624 = vunpack.c.l.b16 %v489
        %v625 = vunpack.c.l.b16 %v490
        %v626 = vunpack.c.l.b16 %v491
        %v627 = vunpack.c.l.b16 %v492
        %v628 = vunpack.c.l.b16 %v493
        %v629 = vunpack.c.l.b16 %v494
        %v630 = vunpack.c.l.b16 %v495
        %v631 = vunpack.c.l.b16 %v496
        %v632 = vunpack.c.l.b16 %v497
        %v633 = vunpack.c.l.b16 %v498
        %v634 = vunpack.c.l.b16 %v499
        %v635 = vunpack.c.l.b16 %v500
        %v636 = vunpack.c.l.b16 %v501
        %v637 = vunpack.c.l.b16 %v502
        %v638 = vunpack.c.l.b16 %v503
        %v639 = vunpack.c.l.b16 %v504
        %v640 = vunpack.c.l.b16 %v505
        %v641 = vunpack.c.l.b16 %v506
        %v642 = vunpack.c.l.b16 %v507
        %v643 = vunpack.c.l.b16 %v508
        %v644 = vunpack.c.l.b16 %v509
        %v645 = vunpack.c.l.b16 %v510
        %v646 = vunpack.c.l.b16 %v511
        %v647 = vunpack.c.l.b16 %v512
        %v648 = vunpack.c.l.b16 %v513
        %v649 = vunpack.c.l.b16 %v514
        %v650 = vunpack.c.l.b16 %v515
        %v651 = vunpack.c.l.b16 %v516
        %v652 = vunpack.c.l.b16 %v517
        %v653 = vunpack.c.l.b16 %v518
        %v654 = vunpack.c.l.b16 %v519
        %v655 = vunpack.c.l.b16 %v520
        %v656 = vunpack.c.l.b16 %v521
        %v657 = vunpack.c.l.b16 %v522
        %v658 = vunpack.c.l.b16 %v523
        %v659 = vunpack.c.l.b16 %v524
        %v660 = vunpack.c.l.b16 %v525
        %v661 = vunpack.c.l.b16 %v526
        %v662 = vunpack.c.l.b16 %v527
        %v663 = vunpack.c.l.b16 %v528
        %v664 = vunpack.c.l.b16 %v529
        %v665 = vunpack.c.l.b16 %v530
        %v666 = vunpack.c.l.b16 %v531
        %v667 = vunpack.c.l.b16 %v532
        %v668 = vunpack.c.l.b16 %v533
        %v669 = vunpack.c.l.b16 %v534
        %v670 = vunpack.c.l.b16 %v535
        %v671 = vunpack.c.l.b16 %v536
        %v672 = vunpack.c.l.b16 %v537
        %v673 = vunpack.c.l.b16 %v538
        %v674 = vunpack.c.l.b16 %v539
        %v675 = vunpack.c.l.b16 %v540
        %v676 = vunpack.c.l.b16 %v541
        %v677 = vunpack.c.l.b16 %v542
        %v678 = vunpack.c.l.b16 %v543
        %v679 = vunpack.c.l.b16 %v544
        %v680 = vunpack.c.l.b16 %v545
        %v681 = vpack.c.b16 %v618, %v617
        %v682 = vpack.c.b16 %v620, %v619
        %v683 = vpack.c.b16 %v622, %v621
        %v684 = vpack.c.b16 %v624, %v623
        %v685 = vpack.c.b16 %v626, %v625
        %v686 = vpack.c.b16 %v628, %v627
        %v687 = vpack.c.b16 %v630, %v629
        %v688 = vpack.c.b16 %v632, %v631
        %v689 = vpack.c.b16 %v634, %v633
        %v690 = vpack.c.b16 %v636, %v635
        %v691 = vpack.c.b16 %v638, %v637
        %v692 = vpack.c.b16 %v640, %v639
        %v693 = vpack.c.b16 %v642, %v641
        %v694 = vpack.c.b16 %v644, %v643
        %v695 = vpack.c.b16 %v646, %v645
        %v696 = vpack.c.b16 %v648, %v647
        %v697 = vpack.c.b16 %v650, %v649
        %v698 = vpack.c.b16 %v652, %v651
        %v699 = vpack.c.b16 %v654, %v653
        %v700 = vpack.c.b16 %v656, %v655
        %v701 = vpack.c.b16 %v658, %v657
        %v702 = vpack.c.b16 %v660, %v659
        %v703 = vpack.c.b16 %v662, %v661
        %v704 = vpack.c.b16 %v664, %v663
        %v705 = vpack.c.b16 %v666, %v665
        %v706 = vpack.c.b16 %v668, %v667
        %v707 = vpack.c.b16 %v670, %v669
        %v708 = vpack.c.b16 %v672, %v671
        %v709 = vpack.c.b16 %v674, %v673
        %v710 = vpack.c.b16 %v676, %v675
        %v711 = vpack.c.b16 %v678, %v677
        %v712 = vpack.c.b16 %v680, %v679
        %745 = vmatprep.subr.bf16.mxu0 0
        %746 = vmatpush1.bf16.msra.mxu0 %v681
        %747 = vmatprep.subr.bf16.mxu0 0
        %748 = vmatpush1.bf16.msra.mxu0 %v682
        %749 = vmatprep.subr.bf16.mxu0 0
        %750 = vmatpush1.bf16.msra.mxu0 %v683
        %751 = vmatprep.subr.bf16.mxu0 0
        %752 = vmatpush1.bf16.msra.mxu0 %v684
        %753 = vmatprep.subr.bf16.mxu0 0
        %754 = vmatpush1.bf16.msra.mxu0 %v685
        %755 = vmatprep.subr.bf16.mxu0 0
        %756 = vmatpush1.bf16.msra.mxu0 %v686
        %757 = vmatprep.subr.bf16.mxu0 0
        %758 = vmatpush1.bf16.msra.mxu0 %v687
        %759 = vmatprep.subr.bf16.mxu0 0
        %760 = vmatpush1.bf16.msra.mxu0 %v688
        %761 = vmatprep.subr.bf16.mxu0 0
        %762 = vmatpush1.bf16.msra.mxu0 %v689
        %763 = vmatprep.subr.bf16.mxu0 0
        %764 = vmatpush1.bf16.msra.mxu0 %v690
        %765 = vmatprep.subr.bf16.mxu0 0
        %766 = vmatpush1.bf16.msra.mxu0 %v691
        %767 = vmatprep.subr.bf16.mxu0 0
        %768 = vmatpush1.bf16.msra.mxu0 %v692
        %769 = vmatprep.subr.bf16.mxu0 0
        %770 = vmatpush1.bf16.msra.mxu0 %v693
        %771 = vmatprep.subr.bf16.mxu0 0
        %772 = vmatpush1.bf16.msra.mxu0 %v694
        %773 = vmatprep.subr.bf16.mxu0 0
        %774 = vmatpush1.bf16.msra.mxu0 %v695
        %775 = vmatprep.subr.bf16.mxu0 0
        %776 = vmatpush1.bf16.msra.mxu0 %v696
        %777 = vmatprep.mubr.bf16.mxu0 %v479
        %778 = vmatmul.mubr.bf16.gmra.mrb[0].mxu0 %v478
        %v779 = vpop.f32.mrb[0].mxu0
        %v780 = vadd.f32 %v551, %v779
        %v781 = vpop.f32.mrb[0].mxu0
        %v782 = vpop.f32.mrb[0].mxu0
        %v783 = vadd.f32 %v551, %v782
        %v784 = vpop.f32.mrb[0].mxu0
        %785 = vdwg.mxu0
        %786 = vmatprep.subr.bf16.mxu0 0
        %787 = vmatpush1.bf16.msra.mxu0 %v697
        %788 = vmatprep.subr.bf16.mxu0 0
        %789 = vmatpush1.bf16.msra.mxu0 %v698
        %790 = vmatprep.subr.bf16.mxu0 0
        %791 = vmatpush1.bf16.msra.mxu0 %v699
        %792 = vmatprep.subr.bf16.mxu0 0
        %793 = vmatpush1.bf16.msra.mxu0 %v700
        %794 = vmatprep.subr.bf16.mxu0 0
        %795 = vmatpush1.bf16.msra.mxu0 %v701
        %796 = vmatprep.subr.bf16.mxu0 0
        %797 = vmatpush1.bf16.msra.mxu0 %v702
        %798 = vmatprep.subr.bf16.mxu0 0
        %799 = vmatpush1.bf16.msra.mxu0 %v703
        %800 = vmatprep.subr.bf16.mxu0 0
        %801 = vmatpush1.bf16.msra.mxu0 %v704
        %802 = vmatprep.subr.bf16.mxu0 0
        %803 = vmatpush1.bf16.msra.mxu0 %v705
        %804 = vmatprep.subr.bf16.mxu0 0
        %805 = vmatpush1.bf16.msra.mxu0 %v706
        %806 = vmatprep.subr.bf16.mxu0 0
        %807 = vmatpush1.bf16.msra.mxu0 %v707
        %808 = vmatprep.subr.bf16.mxu0 0
        %809 = vmatpush1.bf16.msra.mxu0 %v708
        %810 = vmatprep.subr.bf16.mxu0 0
        %811 = vmatpush1.bf16.msra.mxu0 %v709
        %812 = vmatprep.subr.bf16.mxu0 0
        %813 = vmatpush1.bf16.msra.mxu0 %v710
        %814 = vmatprep.subr.bf16.mxu0 0
        %815 = vmatpush1.bf16.msra.mxu0 %v711
        %816 = vmatprep.subr.bf16.mxu0 0
        %817 = vmatpush1.bf16.msra.mxu0 %v712
        %818 = vmatprep.mubr.bf16.mxu0 %v481
        %819 = vmatmul.mubr.bf16.gmra.mrb[0].mxu0 %v480
        %v820 = vpop.f32.mrb[0].mxu0
        %v821 = vadd.f32 %v780, %v820
        %v822 = vpop.f32.mrb[0].mxu0
        %v823 = vpop.f32.mrb[0].mxu0
        %v824 = vadd.f32 %v783, %v823
        %v825 = vpop.f32.mrb[0].mxu0
        %826 = vdwg.mxu0
        %v827 = vmax.f32 %v821, 0.0
        %v828 = vmax.f32 %v824, 0.0
        %829 = vst [vmem:[%s256] sm:$0xff] %v827
        %830 = vst [vmem:[%s256 + $0x8] sm:$0xff] %v828
        %s831 = smul.u32 2, %s18
        %p832 = scmp.lt.s32.totalorder %s831, 3
        %s833 = scalar_select %p832, %s831, 3
        %s834 = smul.addr %s833, 8
        %s835 = scalar_lea.vmem %s5, %s834
        // Predicated region
        $region49: #{model_forward.2} parent=39 // pred_check
          %p836 = pneg %p146
        $region50: #{model_forward.2} parent=39 // pred_check_branch
          %838 = sbr.rel (%p836) target = $region52
        $region51: #{model_forward.2} parent=39 // pred_region
          %s839 = smul.u32 2, %s18
        $region52: #{model_forward.2} parent=39 // pred_fallthru
          _
      $region40: #{model_forward.2} parent=5 // pred_fallthru
        _
      %p840 = scmp.le.s32.totalorder 2, %s13
      // Predicated region
      $region53: #{model_forward.2} parent=5 // pred_check
        %p841 = pneg %p840
      $region54: #{model_forward.2} parent=5 // pred_check_branch
        %843 = sbr.rel (%p841) target = $region56
      $region55: #{model_forward.2} parent=5 // pred_region
        %s844 = ssub.s32 %s13, 2
        // Predicated region
        $region57: #{model_forward.2} parent=55 // pred_check
          %p845 = pneg %p152
        $region58: #{model_forward.2} parent=55 // pred_check_branch
          %847 = sbr.rel (%p845) target = $region60
        $region59: #{model_forward.2} parent=55 // pred_region
          %s848 = smul.u32 2, %s19
          %p849 = scmp.lt.s32.totalorder %s848, 3
          %s850 = scalar_select %p849, %s848, 3
          %s851 = smul.addr %s850, 8
          %s852 = scalar_lea.vmem %s5, %s851
        $region60: #{model_forward.2} parent=55 // pred_fallthru
          _
      $region56: #{model_forward.2} parent=5 // pred_fallthru
        _
    $region6: #{model_forward.2} parent=1 // loop_footer
      %s17 = sadd.s32 1, %s13
    $region7: #{model_forward.2} parent=1 // loop_footer_branch
      %12 = sbr.rel target = $region3
    $region8: #{model_forward.2} parent=1 // loop_exit
      _
    %853 = vsyncpa [#allocation3], 1
    %s854 = scalar_lea.sflag [#allocation3], 1
    %855 = vsyncpa %s854, 1
    %856 = vsyncpa [#allocation5], 1

// kernel: model_forward.3
$region0: #{model_forward.3}
  #allocation0 [shape = 'u32[]', space=smem, size = 0x4, offset = 0x4, fixed_abs, tag = 'smem constant byte address 0x4 - core index']
  #allocation1 [shape = 'u32[144,128]{1,0:T(1,128)}', space=vmem, size = 0x12000, scoped, tag = 'internal scratch']
  #allocation2 [shape = 'f32[1,1]{1,0:T(1,128)S(1)}', space=vmem, size = 0x200, scoped, tag = 'scoped memory for model_forward.3']
  %s0 = inlined_call_operand.vmem [shape: f32[2,16,64], index: 0, kind: input, shape index: {}]
  %s1 = inlined_call_operand.vmem [shape: f32[2,16,128], index: 1, kind: input, shape index: {}]
  %s2 = inlined_call_operand.vmem [shape: f32[16,16], index: 2, kind: input, shape index: {}]
  %s3 = inlined_call_operand.vmem [shape: f32[128,64], index: 3, kind: input, shape index: {}]
  %s4 = inlined_call_operand.vmem [shape: f32[1,64], index: 4, kind: input, shape index: {}]
  %s5 = inlined_call_operand.vmem [shape: f32[64,32], index: 5, kind: input, shape index: {}]
  %s6 = inlined_call_operand.vmem [shape: f32[1,32], index: 6, kind: input, shape index: {}]
  %s7 = inlined_call_operand.vmem [shape: f32[32,5], index: 7, kind: input, shape index: {}]
  %s8 = inlined_call_operand.<no memory space> [shape: f32[1,1], index: 8, kind: input, shape index: {}]
  %s9 = inlined_call_operand.vmem [shape: f32[128,96], index: 9, kind: input, shape index: {}]
  %s10 = inlined_call_operand.vmem [shape: f32[128,96], index: 10, kind: input, shape index: {}]
  %s11 = inlined_call_operand.vmem [shape: f32[96,96], index: 11, kind: input, shape index: {}]
  %s12 = inlined_call_operand.vmem [shape: f32[96,2], index: 12, kind: input, shape index: {}]
  %s13 = inlined_call_operand.vmem [shape: f32[1,2], index: 13, kind: input, shape index: {}]
  %s14 = inlined_call_operand.vmem [shape: f32[2,16,1], index: 14, kind: output, shape index: {0}]
  %s15 = inlined_call_operand.vmem [shape: f32[2,16,2], index: 15, kind: output, shape index: {1}]
  %16 = xla_tuple %s14, %s15
  %s17 = sld [smem:[#allocation0]]
  $region97: #{model_forward.3} parent=0
    _
  %s19 = ssub.s32 1, %s17
  %s20 = scalar_select 0, %s19, %s17
  %v21 = vstv %s8
  %22 = vst [vmem:[#allocation2] sm:$0x1] %v21
  loop: start=0, step=1, limit=4
  $region2: #{model_forward.3} parent=0 // loop_pre_header
    _
  $region3: #{model_forward.3} parent=0 // loop_header
    %s24 = sphi 0, %s28
    %p25 = scmp.ge.s32.totalorder %s24, 4
    %s34 = sphi 0, %s36
    %s37 = sphi 0, %s34
    %s38 = sphi 0, %s37
    %s54 = sphi 0, %s38
    %s60 = sphi 0, %s62
    %s63 = sphi 0, %s60
    %s64 = sphi 0, %s63
    %s80 = sphi 0, %s64
    %s84 = sphi 0, %s84
    %s86 = sphi 0, %s84
    %s87 = sphi 0, %s86
    %s101 = sphi 0, %s87
    %s105 = sphi 0, %s105
    %s107 = sphi 0, %s105
    %s108 = sphi 0, %s107
    %s122 = sphi 0, %s108
    %s126 = sphi 0, %s126
    %s128 = sphi 0, %s126
    %s129 = sphi 0, %s128
    %s143 = sphi 0, %s129
    %s147 = sphi 0, %s147
    %s149 = sphi 0, %s147
    %s150 = sphi 0, %s149
    %s164 = sphi 0, %s150
    %s168 = sphi 0, %s168
    %s170 = sphi 0, %s168
    %s171 = sphi 0, %s170
    %s185 = sphi 0, %s171
    %s189 = sphi 0, %s189
    %s191 = sphi 0, %s189
    %s192 = sphi 0, %s191
    %s206 = sphi 0, %s192
    %s210 = sphi 0, %s210
    %s212 = sphi 0, %s210
    %s213 = sphi 0, %s212
    %s227 = sphi 0, %s213
    %s231 = sphi 0, %s231
    %s233 = sphi 0, %s231
    %s234 = sphi 0, %s233
    %s248 = sphi 0, %s234
    %s252 = sphi 0, %s252
    %s254 = sphi 0, %s252
    %s255 = sphi 0, %s254
    %s269 = sphi 0, %s255
    %s273 = sphi 0, %s273
    %s275 = sphi 0, %s273
    %s276 = sphi 0, %s275
    %s290 = sphi 0, %s276
    %s294 = sphi 0, %s294
    %s296 = sphi 0, %s294
    %s297 = sphi 0, %s296
    %s311 = sphi 0, %s297
    %s315 = sphi 0, %s315
    %s317 = sphi 0, %s315
    %s318 = sphi 0, %s317
    %s332 = sphi 0, %s318
    %s338 = sphi 0, %s340
    %s341 = sphi 0, %s338
    %s342 = sphi 0, %s341
    %s358 = sphi 0, %s342
    %s364 = sphi 0, %s366
    %s367 = sphi 0, %s364
    %s368 = sphi 0, %s367
    %s384 = sphi 0, %s368
  $region4: #{model_forward.3} parent=0 // loop_header_branch
    %27 = sbr.rel (%p25) target = $region8
  $region5: #{model_forward.3} parent=0 // loop_body
    %s29 = ssub.s32 %s24, 1
    %s30 = ssub.s32 %s24, 2
    %s31 = sadd.s32 %s24, 1
    %s32 = ssub.s32 %s24, %s31
    %p33 = scmp.eq.s32.totalorder %s32, 0
    %s35 = sadd.s32 %s34, 1
    %s36 = scalar_select %p33, %s34, %s35
    %p39 = pneg %p33
    %p40 = scmp.eq.s32.totalorder %s24, 1
    %p41 = por %p39, %p40
    %p42 = scmp.ne.s32.totalorder %s34, %s37
    %p43 = scmp.eq.s32.totalorder %s24, 0
    %p44 = por %p42, %p43
    %p45 = scmp.ne.s32.totalorder %s34, %s37
    %p46 = scmp.eq.s32.totalorder %s29, 1
    %p47 = por %p45, %p46
    %p48 = scmp.ne.s32.totalorder %s37, %s38
    %p49 = scmp.eq.s32.totalorder %s29, 0
    %p50 = por %p48, %p49
    %p51 = scmp.ne.s32.totalorder %s37, %s38
    %p52 = scmp.eq.s32.totalorder %s30, 1
    %p53 = por %p51, %p52
    %p55 = scmp.ne.s32.totalorder %s38, %s54
    %p56 = scmp.eq.s32.totalorder %s30, 0
    %p57 = por %p55, %p56
    %s58 = ssub.s32 %s24, %s31
    %p59 = scmp.eq.s32.totalorder %s58, 0
    %s61 = sadd.s32 %s60, 1
    %s62 = scalar_select %p59, %s60, %s61
    %p65 = pneg %p59
    %p66 = scmp.eq.s32.totalorder %s24, 1
    %p67 = por %p65, %p66
    %p68 = scmp.ne.s32.totalorder %s60, %s63
    %p69 = scmp.eq.s32.totalorder %s24, 0
    %p70 = por %p68, %p69
    %p71 = scmp.ne.s32.totalorder %s60, %s63
    %p72 = scmp.eq.s32.totalorder %s29, 1
    %p73 = por %p71, %p72
    %p74 = scmp.ne.s32.totalorder %s63, %s64
    %p75 = scmp.eq.s32.totalorder %s29, 0
    %p76 = por %p74, %p75
    %p77 = scmp.ne.s32.totalorder %s63, %s64
    %p78 = scmp.eq.s32.totalorder %s30, 1
    %p79 = por %p77, %p78
    %p81 = scmp.ne.s32.totalorder %s64, %s80
    %p82 = scmp.eq.s32.totalorder %s30, 0
    %p83 = por %p81, %p82
    %s85 = sadd.s32 %s84, 1
    %p88 = scmp.eq.s32.totalorder %s24, 1
    %p89 = scmp.ne.s32.totalorder %s84, %s86
    %p90 = scmp.eq.s32.totalorder %s24, 0
    %p91 = por %p89, %p90
    %p92 = scmp.ne.s32.totalorder %s84, %s86
    %p93 = scmp.eq.s32.totalorder %s29, 1
    %p94 = por %p92, %p93
    %p95 = scmp.ne.s32.totalorder %s86, %s87
    %p96 = scmp.eq.s32.totalorder %s29, 0
    %p97 = por %p95, %p96
    %p98 = scmp.ne.s32.totalorder %s86, %s87
    %p99 = scmp.eq.s32.totalorder %s30, 1
    %p100 = por %p98, %p99
    %p102 = scmp.ne.s32.totalorder %s87, %s101
    %p103 = scmp.eq.s32.totalorder %s30, 0
    %p104 = por %p102, %p103
    %s106 = sadd.s32 %s105, 1
    %p109 = scmp.eq.s32.totalorder %s24, 1
    %p110 = scmp.ne.s32.totalorder %s105, %s107
    %p111 = scmp.eq.s32.totalorder %s24, 0
    %p112 = por %p110, %p111
    %p113 = scmp.ne.s32.totalorder %s105, %s107
    %p114 = scmp.eq.s32.totalorder %s29, 1
    %p115 = por %p113, %p114
    %p116 = scmp.ne.s32.totalorder %s107, %s108
    %p117 = scmp.eq.s32.totalorder %s29, 0
    %p118 = por %p116, %p117
    %p119 = scmp.ne.s32.totalorder %s107, %s108
    %p120 = scmp.eq.s32.totalorder %s30, 1
    %p121 = por %p119, %p120
    %p123 = scmp.ne.s32.totalorder %s108, %s122
    %p124 = scmp.eq.s32.totalorder %s30, 0
    %p125 = por %p123, %p124
    %s127 = sadd.s32 %s126, 1
    %p130 = scmp.eq.s32.totalorder %s24, 1
    %p131 = scmp.ne.s32.totalorder %s126, %s128
    %p132 = scmp.eq.s32.totalorder %s24, 0
    %p133 = por %p131, %p132
    %p134 = scmp.ne.s32.totalorder %s126, %s128
    %p135 = scmp.eq.s32.totalorder %s29, 1
    %p136 = por %p134, %p135
    %p137 = scmp.ne.s32.totalorder %s128, %s129
    %p138 = scmp.eq.s32.totalorder %s29, 0
    %p139 = por %p137, %p138
    %p140 = scmp.ne.s32.totalorder %s128, %s129
    %p141 = scmp.eq.s32.totalorder %s30, 1
    %p142 = por %p140, %p141
    %p144 = scmp.ne.s32.totalorder %s129, %s143
    %p145 = scmp.eq.s32.totalorder %s30, 0
    %p146 = por %p144, %p145
    %s148 = sadd.s32 %s147, 1
    %p151 = scmp.eq.s32.totalorder %s24, 1
    %p152 = scmp.ne.s32.totalorder %s147, %s149
    %p153 = scmp.eq.s32.totalorder %s24, 0
    %p154 = por %p152, %p153
    %p155 = scmp.ne.s32.totalorder %s147, %s149
    %p156 = scmp.eq.s32.totalorder %s29, 1
    %p157 = por %p155, %p156
    %p158 = scmp.ne.s32.totalorder %s149, %s150
    %p159 = scmp.eq.s32.totalorder %s29, 0
    %p160 = por %p158, %p159
    %p161 = scmp.ne.s32.totalorder %s149, %s150
    %p162 = scmp.eq.s32.totalorder %s30, 1
    %p163 = por %p161, %p162
    %p165 = scmp.ne.s32.totalorder %s150, %s164
    %p166 = scmp.eq.s32.totalorder %s30, 0
    %p167 = por %p165, %p166
    %s169 = sadd.s32 %s168, 1
    %p172 = scmp.eq.s32.totalorder %s24, 1
    %p173 = scmp.ne.s32.totalorder %s168, %s170
    %p174 = scmp.eq.s32.totalorder %s24, 0
    %p175 = por %p173, %p174
    %p176 = scmp.ne.s32.totalorder %s168, %s170
    %p177 = scmp.eq.s32.totalorder %s29, 1
    %p178 = por %p176, %p177
    %p179 = scmp.ne.s32.totalorder %s170, %s171
    %p180 = scmp.eq.s32.totalorder %s29, 0
    %p181 = por %p179, %p180
    %p182 = scmp.ne.s32.totalorder %s170, %s171
    %p183 = scmp.eq.s32.totalorder %s30, 1
    %p184 = por %p182, %p183
    %p186 = scmp.ne.s32.totalorder %s171, %s185
    %p187 = scmp.eq.s32.totalorder %s30, 0
    %p188 = por %p186, %p187
    %s190 = sadd.s32 %s189, 1
    %p193 = scmp.eq.s32.totalorder %s24, 1
    %p194 = scmp.ne.s32.totalorder %s189, %s191
    %p195 = scmp.eq.s32.totalorder %s24, 0
    %p196 = por %p194, %p195
    %p197 = scmp.ne.s32.totalorder %s189, %s191
    %p198 = scmp.eq.s32.totalorder %s29, 1
    %p199 = por %p197, %p198
    %p200 = scmp.ne.s32.totalorder %s191, %s192
    %p201 = scmp.eq.s32.totalorder %s29, 0
    %p202 = por %p200, %p201
    %p203 = scmp.ne.s32.totalorder %s191, %s192
    %p204 = scmp.eq.s32.totalorder %s30, 1
    %p205 = por %p203, %p204
    %p207 = scmp.ne.s32.totalorder %s192, %s206
    %p208 = scmp.eq.s32.totalorder %s30, 0
    %p209 = por %p207, %p208
    %s211 = sadd.s32 %s210, 1
    %p214 = scmp.eq.s32.totalorder %s24, 1
    %p215 = scmp.ne.s32.totalorder %s210, %s212
    %p216 = scmp.eq.s32.totalorder %s24, 0
    %p217 = por %p215, %p216
    %p218 = scmp.ne.s32.totalorder %s210, %s212
    %p219 = scmp.eq.s32.totalorder %s29, 1
    %p220 = por %p218, %p219
    %p221 = scmp.ne.s32.totalorder %s212, %s213
    %p222 = scmp.eq.s32.totalorder %s29, 0
    %p223 = por %p221, %p222
    %p224 = scmp.ne.s32.totalorder %s212, %s213
    %p225 = scmp.eq.s32.totalorder %s30, 1
    %p226 = por %p224, %p225
    %p228 = scmp.ne.s32.totalorder %s213, %s227
    %p229 = scmp.eq.s32.totalorder %s30, 0
    %p230 = por %p228, %p229
    %s232 = sadd.s32 %s231, 1
    %p235 = scmp.eq.s32.totalorder %s24, 1
    %p236 = scmp.ne.s32.totalorder %s231, %s233
    %p237 = scmp.eq.s32.totalorder %s24, 0
    %p238 = por %p236, %p237
    %p239 = scmp.ne.s32.totalorder %s231, %s233
    %p240 = scmp.eq.s32.totalorder %s29, 1
    %p241 = por %p239, %p240
    %p242 = scmp.ne.s32.totalorder %s233, %s234
    %p243 = scmp.eq.s32.totalorder %s29, 0
    %p244 = por %p242, %p243
    %p245 = scmp.ne.s32.totalorder %s233, %s234
    %p246 = scmp.eq.s32.totalorder %s30, 1
    %p247 = por %p245, %p246
    %p249 = scmp.ne.s32.totalorder %s234, %s248
    %p250 = scmp.eq.s32.totalorder %s30, 0
    %p251 = por %p249, %p250
    %s253 = sadd.s32 %s252, 1
    %p256 = scmp.eq.s32.totalorder %s24, 1
    %p257 = scmp.ne.s32.totalorder %s252, %s254
    %p258 = scmp.eq.s32.totalorder %s24, 0
    %p259 = por %p257, %p258
    %p260 = scmp.ne.s32.totalorder %s252, %s254
    %p261 = scmp.eq.s32.totalorder %s29, 1
    %p262 = por %p260, %p261
    %p263 = scmp.ne.s32.totalorder %s254, %s255
    %p264 = scmp.eq.s32.totalorder %s29, 0
    %p265 = por %p263, %p264
    %p266 = scmp.ne.s32.totalorder %s254, %s255
    %p267 = scmp.eq.s32.totalorder %s30, 1
    %p268 = por %p266, %p267
    %p270 = scmp.ne.s32.totalorder %s255, %s269
    %p271 = scmp.eq.s32.totalorder %s30, 0
    %p272 = por %p270, %p271
    %s274 = sadd.s32 %s273, 1
    %p277 = scmp.eq.s32.totalorder %s24, 1
    %p278 = scmp.ne.s32.totalorder %s273, %s275
    %p279 = scmp.eq.s32.totalorder %s24, 0
    %p280 = por %p278, %p279
    %p281 = scmp.ne.s32.totalorder %s273, %s275
    %p282 = scmp.eq.s32.totalorder %s29, 1
    %p283 = por %p281, %p282
    %p284 = scmp.ne.s32.totalorder %s275, %s276
    %p285 = scmp.eq.s32.totalorder %s29, 0
    %p286 = por %p284, %p285
    %p287 = scmp.ne.s32.totalorder %s275, %s276
    %p288 = scmp.eq.s32.totalorder %s30, 1
    %p289 = por %p287, %p288
    %p291 = scmp.ne.s32.totalorder %s276, %s290
    %p292 = scmp.eq.s32.totalorder %s30, 0
    %p293 = por %p291, %p292
    %s295 = sadd.s32 %s294, 1
    %p298 = scmp.eq.s32.totalorder %s24, 1
    %p299 = scmp.ne.s32.totalorder %s294, %s296
    %p300 = scmp.eq.s32.totalorder %s24, 0
    %p301 = por %p299, %p300
    %p302 = scmp.ne.s32.totalorder %s294, %s296
    %p303 = scmp.eq.s32.totalorder %s29, 1
    %p304 = por %p302, %p303
    %p305 = scmp.ne.s32.totalorder %s296, %s297
    %p306 = scmp.eq.s32.totalorder %s29, 0
    %p307 = por %p305, %p306
    %p308 = scmp.ne.s32.totalorder %s296, %s297
    %p309 = scmp.eq.s32.totalorder %s30, 1
    %p310 = por %p308, %p309
    %p312 = scmp.ne.s32.totalorder %s297, %s311
    %p313 = scmp.eq.s32.totalorder %s30, 0
    %p314 = por %p312, %p313
    %s316 = sadd.s32 %s315, 1
    %p319 = scmp.eq.s32.totalorder %s24, 1
    %p320 = scmp.ne.s32.totalorder %s315, %s317
    %p321 = scmp.eq.s32.totalorder %s24, 0
    %p322 = por %p320, %p321
    %p323 = scmp.ne.s32.totalorder %s315, %s317
    %p324 = scmp.eq.s32.totalorder %s29, 1
    %p325 = por %p323, %p324
    %p326 = scmp.ne.s32.totalorder %s317, %s318
    %p327 = scmp.eq.s32.totalorder %s29, 0
    %p328 = por %p326, %p327
    %p329 = scmp.ne.s32.totalorder %s317, %s318
    %p330 = scmp.eq.s32.totalorder %s30, 1
    %p331 = por %p329, %p330
    %p333 = scmp.ne.s32.totalorder %s318, %s332
    %p334 = scmp.eq.s32.totalorder %s30, 0
    %p335 = por %p333, %p334
    %s336 = ssub.s32 %s24, %s31
    %p337 = scmp.eq.s32.totalorder %s336, 0
    %s339 = sadd.s32 %s338, 1
    %s340 = scalar_select %p337, %s338, %s339
    %p343 = pneg %p337
    %p344 = scmp.eq.s32.totalorder %s24, 1
    %p345 = por %p343, %p344
    %p346 = scmp.ne.s32.totalorder %s338, %s341
    %p347 = scmp.eq.s32.totalorder %s24, 0
    %p348 = por %p346, %p347
    %p349 = scmp.ne.s32.totalorder %s338, %s341
    %p350 = scmp.eq.s32.totalorder %s29, 1
    %p351 = por %p349, %p350
    %p352 = scmp.ne.s32.totalorder %s341, %s342
    %p353 = scmp.eq.s32.totalorder %s29, 0
    %p354 = por %p352, %p353
    %p355 = scmp.ne.s32.totalorder %s341, %s342
    %p356 = scmp.eq.s32.totalorder %s30, 1
    %p357 = por %p355, %p356
    %p359 = scmp.ne.s32.totalorder %s342, %s358
    %p360 = scmp.eq.s32.totalorder %s30, 0
    %p361 = por %p359, %p360
    %s362 = ssub.s32 %s24, %s31
    %p363 = scmp.eq.s32.totalorder %s362, 0
    %s365 = sadd.s32 %s364, 1
    %s366 = scalar_select %p363, %s364, %s365
    %p369 = pneg %p363
    %p370 = scmp.eq.s32.totalorder %s24, 1
    %p371 = por %p369, %p370
    %p372 = scmp.ne.s32.totalorder %s364, %s367
    %p373 = scmp.eq.s32.totalorder %s24, 0
    %p374 = por %p372, %p373
    %p375 = scmp.ne.s32.totalorder %s364, %s367
    %p376 = scmp.eq.s32.totalorder %s29, 1
    %p377 = por %p375, %p376
    %p378 = scmp.ne.s32.totalorder %s367, %s368
    %p379 = scmp.eq.s32.totalorder %s29, 0
    %p380 = por %p378, %p379
    %p381 = scmp.ne.s32.totalorder %s367, %s368
    %p382 = scmp.eq.s32.totalorder %s30, 1
    %p383 = por %p381, %p382
    %p385 = scmp.ne.s32.totalorder %s368, %s384
    %p386 = scmp.eq.s32.totalorder %s30, 0
    %p387 = por %p385, %p386
    %p388 = scmp.le.s32.totalorder 1, %s24
    %p389 = scmp.lt.s32.totalorder %s24, 3
    %p390 = pnand %p388, %p389
    %p391 = pneg %p390
    // Predicated region
    $region9: #{model_forward.3} parent=5 // pred_check
      _
    $region10: #{model_forward.3} parent=5 // pred_check_branch
      %393 = sbr.rel (%p390) target = $region12
    $region11: #{model_forward.3} parent=5 // pred_region
      %s394 = ssub.s32 %s24, 1
      // Predicated region
      $region13: #{model_forward.3} parent=11 // pred_check
        %p395 = pneg %p97
      $region14: #{model_forward.3} parent=11 // pred_check_branch
        %397 = sbr.rel (%p395) target = $region16
      $region15: #{model_forward.3} parent=11 // pred_region
        _
      $region16: #{model_forward.3} parent=11 // pred_fallthru
        _
      // Predicated region
      $region17: #{model_forward.3} parent=11 // pred_check
        %p398 = pneg %p118
      $region18: #{model_forward.3} parent=11 // pred_check_branch
        %400 = sbr.rel (%p398) target = $region20
      $region19: #{model_forward.3} parent=11 // pred_region
        _
      $region20: #{model_forward.3} parent=11 // pred_fallthru
        _
      // Predicated region
      $region21: #{model_forward.3} parent=11 // pred_check
        %p401 = pneg %p139
      $region22: #{model_forward.3} parent=11 // pred_check_branch
        %403 = sbr.rel (%p401) target = $region24
      $region23: #{model_forward.3} parent=11 // pred_region
        _
      $region24: #{model_forward.3} parent=11 // pred_fallthru
        _
      // Predicated region
      $region25: #{model_forward.3} parent=11 // pred_check
        %p404 = pneg %p160
      $region26: #{model_forward.3} parent=11 // pred_check_branch
        %406 = sbr.rel (%p404) target = $region28
      $region27: #{model_forward.3} parent=11 // pred_region
        _
      $region28: #{model_forward.3} parent=11 // pred_fallthru
        _
      // Predicated region
      $region29: #{model_forward.3} parent=11 // pred_check
        %p407 = pneg %p181
      $region30: #{model_forward.3} parent=11 // pred_check_branch
        %409 = sbr.rel (%p407) target = $region32
      $region31: #{model_forward.3} parent=11 // pred_region
        _
      $region32: #{model_forward.3} parent=11 // pred_fallthru
        _
      // Predicated region
      $region33: #{model_forward.3} parent=11 // pred_check
        %p410 = pneg %p202
      $region34: #{model_forward.3} parent=11 // pred_check_branch
        %412 = sbr.rel (%p410) target = $region36
      $region35: #{model_forward.3} parent=11 // pred_region
        _
      $region36: #{model_forward.3} parent=11 // pred_fallthru
        _
      // Predicated region
      $region37: #{model_forward.3} parent=11 // pred_check
        %p413 = pneg %p223
      $region38: #{model_forward.3} parent=11 // pred_check_branch
        %415 = sbr.rel (%p413) target = $region40
      $region39: #{model_forward.3} parent=11 // pred_region
        _
      $region40: #{model_forward.3} parent=11 // pred_fallthru
        _
      // Predicated region
      $region41: #{model_forward.3} parent=11 // pred_check
        %p416 = pneg %p244
      $region42: #{model_forward.3} parent=11 // pred_check_branch
        %418 = sbr.rel (%p416) target = $region44
      $region43: #{model_forward.3} parent=11 // pred_region
        _
      $region44: #{model_forward.3} parent=11 // pred_fallthru
        _
      // Predicated region
      $region45: #{model_forward.3} parent=11 // pred_check
        %p419 = pneg %p265
      $region46: #{model_forward.3} parent=11 // pred_check_branch
        %421 = sbr.rel (%p419) target = $region48
      $region47: #{model_forward.3} parent=11 // pred_region
        _
      $region48: #{model_forward.3} parent=11 // pred_fallthru
        _
      // Predicated region
      $region49: #{model_forward.3} parent=11 // pred_check
        %p422 = pneg %p286
      $region50: #{model_forward.3} parent=11 // pred_check_branch
        %424 = sbr.rel (%p422) target = $region52
      $region51: #{model_forward.3} parent=11 // pred_region
        _
      $region52: #{model_forward.3} parent=11 // pred_fallthru
        _
      // Predicated region
      $region53: #{model_forward.3} parent=11 // pred_check
        %p425 = pneg %p307
      $region54: #{model_forward.3} parent=11 // pred_check_branch
        %427 = sbr.rel (%p425) target = $region56
      $region55: #{model_forward.3} parent=11 // pred_region
        _
      $region56: #{model_forward.3} parent=11 // pred_fallthru
        _
      // Predicated region
      $region57: #{model_forward.3} parent=11 // pred_check
        %p428 = pneg %p328
      $region58: #{model_forward.3} parent=11 // pred_check_branch
        %430 = sbr.rel (%p428) target = $region60
      $region59: #{model_forward.3} parent=11 // pred_region
        _
      $region60: #{model_forward.3} parent=11 // pred_fallthru
        _
    $region12: #{model_forward.3} parent=5 // pred_fallthru
      _
    %p431 = scmp.lt.s32.totalorder %s24, 2
    // Predicated region
    $region61: #{model_forward.3} parent=5 // pred_check
      %p432 = pneg %p431
    $region62: #{model_forward.3} parent=5 // pred_check_branch
      %434 = sbr.rel (%p432) target = $region64
    $region63: #{model_forward.3} parent=5 // pred_region
      // Predicated region
      $region65: #{model_forward.3} parent=63 // pred_check
        %p435 = pneg %p44
      $region66: #{model_forward.3} parent=63 // pred_check_branch
        %437 = sbr.rel (%p435) target = $region68
      $region67: #{model_forward.3} parent=63 // pred_region
        %p438 = scmp.lt.s32.totalorder %s24, 1
        %s439 = scalar_select %p438, %s24, 1
        %s440 = smul.addr %s439, 2
        %s441 = smul.addr %s440, 8
        %s442 = scalar_lea.vmem %s0, %s441
      $region68: #{model_forward.3} parent=63 // pred_fallthru
        _
      // Predicated region
      $region69: #{model_forward.3} parent=63 // pred_check
        %p443 = pneg %p70
      $region70: #{model_forward.3} parent=63 // pred_check_branch
        %445 = sbr.rel (%p443) target = $region72
      $region71: #{model_forward.3} parent=63 // pred_region
        %p446 = scmp.lt.s32.totalorder %s24, 1
        %s447 = scalar_select %p446, %s24, 1
        %s448 = smul.addr %s447, 2
        %s449 = smul.addr %s448, 8
        %s450 = scalar_lea.vmem %s1, %s449
      $region72: #{model_forward.3} parent=63 // pred_fallthru
        _
    $region64: #{model_forward.3} parent=5 // pred_fallthru
      _
    %p451 = scmp.le.s32.totalorder 1, %s24
    %p452 = scmp.lt.s32.totalorder %s24, 3
    %p453 = pnand %p451, %p452
    %p454 = pneg %p453
    // Predicated region
    $region73: #{model_forward.3} parent=5 // pred_check
      _
    $region74: #{model_forward.3} parent=5 // pred_check_branch
      %456 = sbr.rel (%p453) target = $region76
    $region75: #{model_forward.3} parent=5 // pred_region
      %s457 = ssub.s32 %s24, 1
      %p458 = scmp.lt.s32.totalorder %s29, 1
      %s459 = scalar_select %p458, %s29, 1
      %s460 = smul.addr %s459, 2
      %s461 = smul.addr %s460, 8
      %s462 = scalar_lea.vmem %s0, %s461
      %p463 = pneg %p50
      %p464 = pneg %p47
      %p465 = scmp.lt.s32.totalorder %s29, 1
      %s466 = scalar_select %p465, %s29, 1
      %s467 = smul.addr %s466, 2
      %s468 = smul.addr %s467, 8
      %s469 = scalar_lea.vmem %s1, %s468
      %p470 = pneg %p76
      %p471 = pneg %p73
      %p472 = pneg %p97
      %p473 = pneg %p94
      %p474 = pneg %p118
      %p475 = pneg %p115
      %p476 = pneg %p139
      %p477 = pneg %p136
      %p478 = pneg %p160
      %p479 = pneg %p157
      %p480 = pneg %p181
      %p481 = pneg %p178
      %p482 = pneg %p202
      %p483 = pneg %p199
      %p484 = pneg %p223
      %p485 = pneg %p220
      %p486 = pneg %p244
      %p487 = pneg %p241
      %p488 = pneg %p265
      %p489 = pneg %p262
      %p490 = pneg %p286
      %p491 = pneg %p283
      %p492 = pneg %p307
      %p493 = pneg %p304
      %p494 = pneg %p328
      %p495 = pneg %p325
      %p496 = pneg %p354
      %p497 = pneg %p351
      %p498 = scmp.lt.s32.totalorder %s29, 1
      %s499 = scalar_select %p498, %s29, 1
      %s500 = smul.addr %s499, 2
      %s501 = smul.addr %s500, 8
      %s502 = scalar_lea.vmem %s14, %s501
      %p503 = pneg %p380
      %p504 = pneg %p377
      %p505 = scmp.lt.s32.totalorder %s29, 1
      %s506 = scalar_select %p505, %s29, 1
      %s507 = smul.addr %s506, 2
      %s508 = smul.addr %s507, 8
      %s509 = scalar_lea.vmem %s15, %s508
      %p510 = scmp.lt.s32.totalorder %s29, 1
      %s511 = scalar_select %p510, %s29, 1
      %s512 = smul.addr %s511, 2
      %s513 = smul.addr %s512, 8
      %s514 = scalar_lea.vmem %s0, %s513
      %p515 = scmp.lt.s32.totalorder %s29, 1
      %s516 = scalar_select %p515, %s29, 1
      %s517 = smul.addr %s516, 2
      %s518 = smul.addr %s517, 8
      %s519 = scalar_lea.vmem %s1, %s518
      %p520 = scmp.lt.s32.totalorder %s29, 1
      %s521 = scalar_select %p520, %s29, 1
      %s522 = smul.addr %s521, 2
      %s523 = smul.addr %s522, 8
      %s524 = scalar_lea.vmem %s14, %s523
      %p525 = scmp.lt.s32.totalorder %s29, 1
      %s526 = scalar_select %p525, %s29, 1
      %s527 = smul.addr %s526, 2
      %s528 = smul.addr %s527, 8
      %s529 = scalar_lea.vmem %s15, %s528
      %v531 = vld [vmem:[%s519] sm:$0xff]
      %v532 = vld [vmem:[%s519 + $0x8] sm:$0xff]
      %v533 = vld [vmem:[%s3] sm:$0xff]
      %v534 = vld [vmem:[%s3 + $0x8] sm:$0xff]
      %v535 = vld [vmem:[%s3 + $0x10] sm:$0xff]
      %v536 = vld [vmem:[%s3 + $0x18] sm:$0xff]
      %v537 = vld [vmem:[%s3 + $0x20] sm:$0xff]
      %v538 = vld [vmem:[%s3 + $0x28] sm:$0xff]
      %v539 = vld [vmem:[%s3 + $0x30] sm:$0xff]
      %v540 = vld [vmem:[%s3 + $0x38] sm:$0xff]
      %v541 = vld [vmem:[%s3 + $0x40] sm:$0xff]
      %v542 = vld [vmem:[%s3 + $0x48] sm:$0xff]
      %v543 = vld [vmem:[%s3 + $0x50] sm:$0xff]
      %v544 = vld [vmem:[%s3 + $0x58] sm:$0xff]
      %v545 = vld [vmem:[%s3 + $0x60] sm:$0xff]
      %v546 = vld [vmem:[%s3 + $0x68] sm:$0xff]
      %v547 = vld [vmem:[%s3 + $0x70] sm:$0xff]
      %v548 = vld [vmem:[%s3 + $0x78] sm:$0xff]
      %v549 = vld [vmem:[%s4] sm:$0x1]
      %v551 = vlaneseq
      %v552 = vshrl.u32 %v551, 7
      %v553 = vsub.s32 0, %v552
      %v554 = vrot.slane %v549, %v553
      %556 = vmatprep.subr.mxu0 0.0
      %557 = vmatpush1.msra.mxu0 %v533
      %558 = vmatprep.subr.mxu0 0.0
      %559 = vmatpush1.msra.mxu0 %v534
      %560 = vmatprep.subr.mxu0 0.0
      %561 = vmatpush1.msra.mxu0 %v535
      %562 = vmatprep.subr.mxu0 0.0
      %563 = vmatpush1.msra.mxu0 %v536
      %564 = vmatprep.subr.mxu0 0.0
      %565 = vmatpush1.msra.mxu0 %v537
      %566 = vmatprep.subr.mxu0 0.0
      %567 = vmatpush1.msra.mxu0 %v538
      %568 = vmatprep.subr.mxu0 0.0
      %569 = vmatpush1.msra.mxu0 %v539
      %570 = vmatprep.subr.mxu0 0.0
      %571 = vmatpush1.msra.mxu0 %v540
      %572 = vmatprep.subr.mxu0 0.0
      %573 = vmatpush1.msra.mxu0 %v541
      %574 = vmatprep.subr.mxu0 0.0
      %575 = vmatpush1.msra.mxu0 %v542
      %576 = vmatprep.subr.mxu0 0.0
      %577 = vmatpush1.msra.mxu0 %v543
      %578 = vmatprep.subr.mxu0 0.0
      %579 = vmatpush1.msra.mxu0 %v544
      %580 = vmatprep.subr.mxu0 0.0
      %581 = vmatpush1.msra.mxu0 %v545
      %582 = vmatprep.subr.mxu0 0.0
      %583 = vmatpush1.msra.mxu0 %v546
      %584 = vmatprep.subr.mxu0 0.0
      %585 = vmatpush1.msra.mxu0 %v547
      %586 = vmatprep.subr.mxu0 0.0
      %587 = vmatpush1.msra.mxu0 %v548
      %588 = vmatprep.subr.mxu0 0.0
      %589 = vmatpush1.msra.mxu0 0.0
      %590 = vmatprep.subr.mxu0 0.0
      %591 = vmatpush1.msra.mxu0 0.0
      %592 = vmatprep.subr.mxu0 0.0
      %593 = vmatpush1.msra.mxu0 0.0
      %594 = vmatprep.subr.mxu0 0.0
      %595 = vmatpush1.msra.mxu0 0.0
      %596 = vmatprep.subr.mxu0 0.0
      %597 = vmatpush1.msra.mxu0 0.0
      %598 = vmatprep.subr.mxu0 0.0
      %599 = vmatpush1.msra.mxu0 0.0
      %600 = vmatprep.subr.mxu0 0.0
      %601 = vmatpush1.msra.mxu0 0.0
      %602 = vmatprep.subr.mxu0 0.0
      %603 = vmatpush1.msra.mxu0 0.0
      %604 = vmatprep.subr.mxu0 0.0
      %605 = vmatpush1.msra.mxu0 0.0
      %606 = vmatprep.subr.mxu0 0.0
      %607 = vmatpush1.msra.mxu0 0.0
      %608 = vmatprep.subr.mxu0 0.0
      %609 = vmatpush1.msra.mxu0 0.0
      %610 = vmatprep.subr.mxu0 0.0
      %611 = vmatpush1.msra.mxu0 0.0
      %612 = vmatprep.subr.mxu0 0.0
      %613 = vmatpush1.msra.mxu0 0.0
      %614 = vmatprep.subr.mxu0 0.0
      %615 = vmatpush1.msra.mxu0 0.0
      %616 = vmatprep.subr.mxu0 0.0
      %617 = vmatpush1.msra.mxu0 0.0
      %618 = vmatprep.subr.mxu0 0.0
      %619 = vmatpush1.msra.mxu0 0.0
      %620 = vmatprep.mubr.f32.mxu0 0.0
      %621 = vmatmul.mubr.f32.gmra.mrb[0].mxu0 %v531
      %v622 = vpop.f32.mrb[0].mxu0
      %v623 = vadd.f32 %v554, %v622
      %v624 = vpop.f32.mrb[0].mxu0
      %625 = vmatprep.mubr.f32.mxu0 0.0
      %626 = vmatmul.mubr.f32.gmra.mrb[0].mxu0 %v532
      %v627 = vpop.f32.mrb[0].mxu0
      %v628 = vadd.f32 %v554, %v627
      %v629 = vpop.f32.mrb[0].mxu0
      %630 = vdwg.mxu0
      %v631 = vmax.f32 %v623, 0.0
      %v632 = vmax.f32 %v628, 0.0
      %v633 = vld [vmem:[%s5] sm:$0xff]
      %v634 = vld [vmem:[%s5 + $0x8] sm:$0xff]
      %v635 = vld [vmem:[%s5 + $0x10] sm:$0xff]
      %v636 = vld [vmem:[%s5 + $0x18] sm:$0xff]
      %v637 = vld [vmem:[%s5 + $0x20] sm:$0xff]
      %v638 = vld [vmem:[%s5 + $0x28] sm:$0xff]
      %v639 = vld [vmem:[%s5 + $0x30] sm:$0xff]
      %v640 = vld [vmem:[%s5 + $0x38] sm:$0xff]
      %v641 = vld [vmem:[%s6] sm:$0x1]
      %v643 = vlaneseq
      %v644 = vshrl.u32 %v643, 7
      %v645 = vsub.s32 0, %v644
      %v646 = vrot.slane %v641, %v645
      %vm648 = vcmask 523264
      %v650 = vsel %vm648, %v631, 0
      %v653 = vsel %vm648, %v632, 0
      %655 = vmatprep.subr.mxu0 0.0
      %656 = vmatpush1.msra.mxu0 %v633
      %657 = vmatprep.subr.mxu0 0.0
      %658 = vmatpush1.msra.mxu0 %v634
      %659 = vmatprep.subr.mxu0 0.0
      %660 = vmatpush1.msra.mxu0 %v635
      %661 = vmatprep.subr.mxu0 0.0
      %662 = vmatpush1.msra.mxu0 %v636
      %663 = vmatprep.subr.mxu0 0.0
      %664 = vmatpush1.msra.mxu0 %v637
      %665 = vmatprep.subr.mxu0 0.0
      %666 = vmatpush1.msra.mxu0 %v638
      %667 = vmatprep.subr.mxu0 0.0
      %668 = vmatpush1.msra.mxu0 %v639
      %669 = vmatprep.subr.mxu0 0.0
      %670 = vmatpush1.msra.mxu0 %v640
      %671 = vmatprep.subr.mxu0 0.0
      %672 = vmatpush1.msra.mxu0 0.0
      %673 = vmatprep.subr.mxu0 0.0
      %674 = vmatpush1.msra.mxu0 0.0
      %675 = vmatprep.subr.mxu0 0.0
      %676 = vmatpush1.msra.mxu0 0.0
      %677 = vmatprep.subr.mxu0 0.0
      %678 = vmatpush1.msra.mxu0 0.0
      %679 = vmatprep.subr.mxu0 0.0
      %680 = vmatpush1.msra.mxu0 0.0
      %681 = vmatprep.subr.mxu0 0.0
      %682 = vmatpush1.msra.mxu0 0.0
      %683 = vmatprep.subr.mxu0 0.0
      %684 = vmatpush1.msra.mxu0 0.0
      %685 = vmatprep.subr.mxu0 0.0
      %686 = vmatpush1.msra.mxu0 0.0
      %687 = vmatprep.subr.mxu0 0.0
      %688 = vmatpush1.msra.mxu0 0.0
      %689 = vmatprep.subr.mxu0 0.0
      %690 = vmatpush1.msra.mxu0 0.0
      %691 = vmatprep.subr.mxu0 0.0
      %692 = vmatpush1.msra.mxu0 0.0
      %693 = vmatprep.subr.mxu0 0.0
      %694 = vmatpush1.msra.mxu0 0.0
      %695 = vmatprep.subr.mxu0 0.0
      %696 = vmatpush1.msra.mxu0 0.0
      %697 = vmatprep.subr.mxu0 0.0
      %698 = vmatpush1.msra.mxu0 0.0
      %699 = vmatprep.subr.mxu0 0.0
      %700 = vmatpush1.msra.mxu0 0.0
      %701 = vmatprep.subr.mxu0 0.0
      %702 = vmatpush1.msra.mxu0 0.0
      %703 = vmatprep.subr.mxu0 0.0
      %704 = vmatpush1.msra.mxu0 0.0
      %705 = vmatprep.subr.mxu0 0.0
      %706 = vmatpush1.msra.mxu0 0.0
      %707 = vmatprep.subr.mxu0 0.0
      %708 = vmatpush1.msra.mxu0 0.0
      %709 = vmatprep.subr.mxu0 0.0
      %710 = vmatpush1.msra.mxu0 0.0
      %711 = vmatprep.subr.mxu0 0.0
      %712 = vmatpush1.msra.mxu0 0.0
      %713 = vmatprep.subr.mxu0 0.0
      %714 = vmatpush1.msra.mxu0 0.0
      %715 = vmatprep.subr.mxu0 0.0
      %716 = vmatpush1.msra.mxu0 0.0
      %717 = vmatprep.subr.mxu0 0.0
      %718 = vmatpush1.msra.mxu0 0.0
      %719 = vmatprep.mubr.f32.mxu0 0.0
      %720 = vmatmul.mubr.f32.gmra.mrb[0].mxu0 %v650
      %v721 = vpop.f32.mrb[0].mxu0
      %v722 = vadd.f32 %v646, %v721
      %v723 = vpop.f32.mrb[0].mxu0
      %724 = vmatprep.mubr.f32.mxu0 0.0
      %725 = vmatmul.mubr.f32.gmra.mrb[0].mxu0 %v653
      %v726 = vpop.f32.mrb[0].mxu0
      %v727 = vadd.f32 %v646, %v726
      %v728 = vpop.f32.mrb[0].mxu0
      %729 = vdwg.mxu0
      %v730 = vmax.f32 %v722, 0.0
      %v731 = vmax.f32 %v727, 0.0
      %v732 = vld [vmem:[%s7] sm:$0xff]
      %v733 = vld [vmem:[%s7 + $0x8] sm:$0xff]
      %v734 = vld [vmem:[%s7 + $0x10] sm:$0xff]
      %v735 = vld [vmem:[%s7 + $0x18] sm:$0xff]
      %vm736 = vcmask 261120
      %v738 = vsel %vm736, %v730, 0
      %v741 = vsel %vm736, %v731, 0
      %743 = vmatprep.subr.mxu0 0.0
      %744 = vmatpush1.msra.mxu0 %v732
      %745 = vmatprep.subr.mxu0 0.0
      %746 = vmatpush1.msra.mxu0 %v733
      %747 = vmatprep.subr.mxu0 0.0
      %748 = vmatpush1.msra.mxu0 %v734
      %749 = vmatprep.subr.mxu0 0.0
      %750 = vmatpush1.msra.mxu0 %v735
      %751 = vmatprep.subr.mxu0 0.0
      %752 = vmatpush1.msra.mxu0 0.0
      %753 = vmatprep.subr.mxu0 0.0
      %754 = vmatpush1.msra.mxu0 0.0
      %755 = vmatprep.subr.mxu0 0.0
      %756 = vmatpush1.msra.mxu0 0.0
      %757 = vmatprep.subr.mxu0 0.0
      %758 = vmatpush1.msra.mxu0 0.0
      %759 = vmatprep.subr.mxu0 0.0
      %760 = vmatpush1.msra.mxu0 0.0
      %761 = vmatprep.subr.mxu0 0.0
      %762 = vmatpush1.msra.mxu0 0.0
      %763 = vmatprep.subr.mxu0 0.0
      %764 = vmatpush1.msra.mxu0 0.0
      %765 = vmatprep.subr.mxu0 0.0
      %766 = vmatpush1.msra.mxu0 0.0
      %767 = vmatprep.subr.mxu0 0.0
      %768 = vmatpush1.msra.mxu0 0.0
      %769 = vmatprep.subr.mxu0 0.0
      %770 = vmatpush1.msra.mxu0 0.0
      %771 = vmatprep.subr.mxu0 0.0
      %772 = vmatpush1.msra.mxu0 0.0
      %773 = vmatprep.subr.mxu0 0.0
      %774 = vmatpush1.msra.mxu0 0.0
      %775 = vmatprep.subr.mxu0 0.0
      %776 = vmatpush1.msra.mxu0 0.0
      %777 = vmatprep.subr.mxu0 0.0
      %778 = vmatpush1.msra.mxu0 0.0
      %779 = vmatprep.subr.mxu0 0.0
      %780 = vmatpush1.msra.mxu0 0.0
      %781 = vmatprep.subr.mxu0 0.0
      %782 = vmatpush1.msra.mxu0 0.0
      %783 = vmatprep.subr.mxu0 0.0
      %784 = vmatpush1.msra.mxu0 0.0
      %785 = vmatprep.subr.mxu0 0.0
      %786 = vmatpush1.msra.mxu0 0.0
      %787 = vmatprep.subr.mxu0 0.0
      %788 = vmatpush1.msra.mxu0 0.0
      %789 = vmatprep.subr.mxu0 0.0
      %790 = vmatpush1.msra.mxu0 0.0
      %791 = vmatprep.subr.mxu0 0.0
      %792 = vmatpush1.msra.mxu0 0.0
      %793 = vmatprep.subr.mxu0 0.0
      %794 = vmatpush1.msra.mxu0 0.0
      %795 = vmatprep.subr.mxu0 0.0
      %796 = vmatpush1.msra.mxu0 0.0
      %797 = vmatprep.subr.mxu0 0.0
      %798 = vmatpush1.msra.mxu0 0.0
      %799 = vmatprep.subr.mxu0 0.0
      %800 = vmatpush1.msra.mxu0 0.0
      %801 = vmatprep.subr.mxu0 0.0
      %802 = vmatpush1.msra.mxu0 0.0
      %803 = vmatprep.subr.mxu0 0.0
      %804 = vmatpush1.msra.mxu0 0.0
      %805 = vmatprep.subr.mxu0 0.0
      %806 = vmatpush1.msra.mxu0 0.0
      %807 = vmatprep.mubr.f32.mxu0 0.0
      %808 = vmatmul.mubr.f32.gmra.mrb[0].mxu0 %v738
      %v809 = vpop.f32.mrb[0].mxu0
      %v810 = vadd.f32 0.0, %v809
      %v811 = vpop.f32.mrb[0].mxu0
      %812 = vmatprep.mubr.f32.mxu0 0.0
      %813 = vmatmul.mubr.f32.gmra.mrb[0].mxu0 %v741
      %v814 = vpop.f32.mrb[0].mxu0
      %v815 = vadd.f32 0.0, %v814
      %v816 = vpop.f32.mrb[0].mxu0
      %817 = vdwg.mxu0
      %vm820 = vcmask 1043456
      %v821 = vrot.slane %v810, 4
      %v822 = vrot.slane %v815, 4
      %v823 = vsel %vm820, %v821, %v822
      %v826 = vsel %vm820, 0.0, %v821
      %vm828 = vcmask 1046528
      %v829 = vrot.slane %v826, 1
      %v830 = vrot.slane %v823, 1
      %v831 = vsel %vm828, %v829, %v830
      %v832 = vrot.slane %v822, 1
      %v833 = vsel %vm828, %v830, %v832
      %834 = vrot.lane.b32.xlu0 %v831, 127
      %v835 = vpop.permute.xlu0 %834
      %836 = vrot.lane.b32.xlu0 %v833, 127
      %v837 = vpop.permute.xlu0 %836
      %v840 = vadd.f32 %v826, %v835
      %v841 = vadd.f32 %v823, %v837
      %vm842 = vcmask 1045504
      %v843 = vrot.slane %v826, 2
      %v844 = vrot.slane %v823, 2
      %v845 = vsel %vm842, %v843, %v844
      %v846 = vrot.slane %v822, 2
      %v847 = vsel %vm842, %v844, %v846
      %848 = vrot.lane.b32.xlu0 %v845, 126
      %v849 = vpop.permute.xlu0 %848
      %850 = vrot.lane.b32.xlu0 %v847, 126
      %v851 = vpop.permute.xlu0 %850
      %v854 = vadd.f32 %v840, %v849
      %v855 = vadd.f32 %v841, %v851
      %vm856 = vcmask 1044480
      %v857 = vrot.slane %v826, 3
      %v858 = vrot.slane %v823, 3
      %v859 = vsel %vm856, %v857, %v858
      %v860 = vrot.slane %v822, 3
      %v861 = vsel %vm856, %v858, %v860
      %862 = vrot.lane.b32.xlu0 %v859, 125
      %v863 = vpop.permute.xlu0 %862
      %864 = vrot.lane.b32.xlu0 %v861, 125
      %v865 = vpop.permute.xlu0 %864
      %v868 = vadd.f32 %v854, %v863
      %v869 = vadd.f32 %v855, %v865
      %v870 = vrot.slane %v826, 4
      %v871 = vrot.slane %v823, 4
      %v872 = vsel %vm820, %v870, %v871
      %v873 = vrot.slane %v822, 4
      %v874 = vsel %vm820, %v871, %v873
      %875 = vrot.lane.b32.xlu0 %v872, 124
      %v876 = vpop.permute.xlu0 %875
      %877 = vrot.lane.b32.xlu0 %v874, 124
      %v878 = vpop.permute.xlu0 %877
      %v881 = vadd.f32 %v868, %v876
      %v882 = vadd.f32 %v869, %v878
      %v883 = vld [vmem:[#allocation2] sm:$0x1]
      %v885 = vlaneseq
      %v886 = vshrl.u32 %v885, 7
      %v887 = vsub.s32 0, %v886
      %v888 = vrot.slane %v883, %v887
      %v890 = vadd.f32 %v881, %v888
      %v891 = vadd.f32 %v882, %v888
      %vm892 = vcmask 7168
      %893 = vst.msk [vmem:[%s524] sm:$0xff] %vm892, %v890
      %894 = vst.msk [vmem:[%s524 + $0x8] sm:$0xff] %vm892, %v891
      %v895 = vxor.u32 %v890, 2147483648
      %v896 = vxor.u32 %v891, 2147483648
      %v897 = vmul.f32 %v895, 1.442695
      %v898 = vpow.pop %v897
      %v899 = vmul.f32 %v896, 1.442695
      %v900 = vpow.pop %v899
      %v901 = vadd.f32 %v898, 1.0
      %v902 = vadd.f32 %v900, 1.0
      %v903 = vrcp.pop %v901
      %v904 = vmul.f32 1.0, %v903
      %v905 = vrcp.pop %v902
      %v906 = vmul.f32 1.0, %v905
      %907 = vxpose.xlu0.b32.start [1/16] %v904, 128
      %908 = vxpose.xlu0.b32.cont [2/16] %v906, 128
      %909 = vxpose.xlu0.b32.cont [3/16] 0.0, 128
      %910 = vxpose.xlu0.b32.cont [4/16] 0.0, 128
      %911 = vxpose.xlu0.b32.cont [5/16] 0.0, 128
      %912 = vxpose.xlu0.b32.cont [6/16] 0.0, 128
      %913 = vxpose.xlu0.b32.cont [7/16] 0.0, 128
      %914 = vxpose.xlu0.b32.cont [8/16] 0.0, 128
      %915 = vxpose.xlu0.b32.cont [9/16] 0.0, 128
      %916 = vxpose.xlu0.b32.cont [10/16] 0.0, 128
      %917 = vxpose.xlu0.b32.cont [11/16] 0.0, 128
      %918 = vxpose.xlu0.b32.cont [12/16] 0.0, 128
      %919 = vxpose.xlu0.b32.cont [13/16] 0.0, 128
      %920 = vxpose.xlu0.b32.cont [14/16] 0.0, 128
      %921 = vxpose.xlu0.b32.cont [15/16] 0.0, 128
      %922 = vxpose.xlu0.b32.end [16/16] 0.0, 128
      %v923 = vpop.trf.xlu0
      %v924 = vpop.trf.xlu0
      %v925 = vpop.trf.xlu0
      %v926 = vpop.trf.xlu0
      %v927 = vpop.trf.xlu0
      %v928 = vpop.trf.xlu0
      %v929 = vpop.trf.xlu0
      %v930 = vpop.trf.xlu0
      %v931 = vpop.trf.xlu0
      %v932 = vpop.trf.xlu0
      %v933 = vpop.trf.xlu0
      %v934 = vpop.trf.xlu0
      %v935 = vpop.trf.xlu0
      %v936 = vpop.trf.xlu0
      %v937 = vpop.trf.xlu0
      %v938 = vpop.trf.xlu0
      %940 = vset.pattern.permute.xlu0 0
      %941 = vperm.xlu0 %940, %v904
      %v942 = vpop.permute.xlu0 %941
      %945 = vset.pattern.permute.xlu0 0
      %946 = vperm.xlu0 %945, %v906
      %v947 = vpop.permute.xlu0 %946
      %v949 = vlaneseq
      %v950 = vshrl.u32 %v949, 7
      %v951 = vsub.s32 0, %v950
      %v952 = vrot.slane %v923, %v951
      %v953 = vsub.f32 %v942, %v952
      %v954 = vsub.f32 %v947, %v952
      %v955 = vand.u32 2147483647, %v953
      %v956 = vand.u32 2147483647, %v954
      %v957 = vsub.f32 1.0, %v955
      %v958 = vsub.f32 1.0, %v956
      %v959 = vsub.f32 %v957, 0.5
      %v960 = vsub.f32 %v958, 0.5
      %v961 = vmul.f32 %v959, 10.0
      %v962 = vmul.f32 %v960, 10.0
      %v963 = vxor.u32 %v961, 2147483648
      %v964 = vxor.u32 %v962, 2147483648
      %v965 = vmul.f32 %v963, 1.442695
      %v966 = vpow.pop %v965
      %v967 = vmul.f32 %v964, 1.442695
      %v968 = vpow.pop %v967
      %v969 = vadd.f32 %v966, 1.0
      %v970 = vadd.f32 %v968, 1.0
      %v971 = vrcp.pop %v969
      %v972 = vmul.f32 1.0, %v971
      %v973 = vrcp.pop %v970
      %v974 = vmul.f32 1.0, %v973
      %vm975 = vcmask 130048
      %v976 = vsel %vm975, %v972, -inf
      %977 = vmax.xlane.f32.xlu0 %v976
      %v978 = vpop.xlane.xlu0 %977
      %v979 = vsel %vm975, %v974, -inf
      %980 = vmax.xlane.f32.xlu0 %v979
      %v981 = vpop.xlane.xlu0 %980
      %v982 = vsub.f32 %v972, %v978
      %v983 = vsub.f32 %v974, %v981
      %v984 = vmul.f32 %v982, 1.442695
      %v985 = vpow.pop %v984
      %v986 = vmul.f32 %v983, 1.442695
      %v987 = vpow.pop %v986
      %v988 = vsel %vm975, %v985, 0.0
      %989 = vadd.xlane.f32.xlu0 %v988
      %v990 = vpop.xlane.xlu0 %989
      %v991 = vsel %vm975, %v987, 0.0
      %992 = vadd.xlane.f32.xlu0 %v991
      %v993 = vpop.xlane.xlu0 %992
      %v994 = vrcp.pop %v990
      %v995 = vmul.f32 %v985, %v994
      %v996 = vrcp.pop %v993
      %v997 = vmul.f32 %v987, %v996
      %v998 = vld [vmem:[%s514] sm:$0xff]
      %v999 = vld [vmem:[%s514 + $0x8] sm:$0xff]
      %v1000 = vpack.c.bf16 %v999, %v998
      %v1002 = vsel %vm648, %v1000, 0
      %1004 = vmatprep.subr.bf16.mxu0 0
      %1005 = vmatpush1.bf16.xpose.msra.mxu0 %v1002
      %1006 = vmatprep.subr.bf16.mxu0 0
      %1007 = vmatpush1.bf16.xpose.msra.mxu0 0
      %1008 = vmatprep.subr.bf16.mxu0 0
      %1009 = vmatpush1.bf16.xpose.msra.mxu0 0
      %1010 = vmatprep.subr.bf16.mxu0 0
      %1011 = vmatpush1.bf16.xpose.msra.mxu0 0
      %1012 = vmatprep.subr.bf16.mxu0 0
      %1013 = vmatpush1.bf16.xpose.msra.mxu0 0
      %1014 = vmatprep.subr.bf16.mxu0 0
      %1015 = vmatpush1.bf16.xpose.msra.mxu0 0
      %1016 = vmatprep.subr.bf16.mxu0 0
      %1017 = vmatpush1.bf16.xpose.msra.mxu0 0
      %1018 = vmatprep.subr.bf16.mxu0 0
      %1019 = vmatpush1.bf16.xpose.msra.mxu0 0
      %1020 = vmatprep.subr.bf16.mxu0 0
      %1021 = vmatpush1.bf16.xpose.msra.mxu0 0
      %1022 = vmatprep.subr.bf16.mxu0 0
      %1023 = vmatpush1.bf16.xpose.msra.mxu0 0
      %1024 = vmatprep.subr.bf16.mxu0 0
      %1025 = vmatpush1.bf16.xpose.msra.mxu0 0
      %1026 = vmatprep.subr.bf16.mxu0 0
      %1027 = vmatpush1.bf16.xpose.msra.mxu0 0
      %1028 = vmatprep.subr.bf16.mxu0 0
      %1029 = vmatpush1.bf16.xpose.msra.mxu0 0
      %1030 = vmatprep.subr.bf16.mxu0 0
      %1031 = vmatpush1.bf16.xpose.msra.mxu0 0
      %1032 = vmatprep.subr.bf16.mxu0 0
      %1033 = vmatpush1.bf16.xpose.msra.mxu0 0
      %1034 = vmatprep.subr.bf16.mxu0 0
      %1035 = vmatpush1.bf16.xpose.msra.mxu0 0
      %1036 = vmatprep.mubr.bf16.mxu0 0
      %1037 = vmatmul.mubr.bf16.gmra.mrb[0].mxu0 %v1002
      %v1038 = vpop.f32.mrb[0].mxu0
      %v1039 = vadd.f32 0.0, %v1038
      %v1040 = vpop.f32.mrb[0].mxu0
      %v1041 = vpop.f32.mrb[0].mxu0
      %v1042 = vadd.f32 0.0, %v1041
      %v1043 = vpop.f32.mrb[0].mxu0
      %1044 = vdwg.mxu0
      %v1045 = vmul.f32 %v998, %v998
      %v1046 = vmul.f32 %v999, %v999
      %v1047 = vsel %vm648, %v1045, 0.0
      %1048 = vadd.xlane.f32.xlu0 %v1047
      %v1049 = vpop.xlane.xlu0 %1048
      %v1050 = vsel %vm648, %v1046, 0.0
      %1051 = vadd.xlane.f32.xlu0 %v1050
      %v1052 = vpop.xlane.xlu0 %1051
      %v1053 = vrsqrt.pop %v1049
      %v1054 = vmul.f32 %v1049, %v1053
      %vm1055 = vcmp.eq.f32.partialorder %v1049, inf
      %v1056 = vsel %vm1055, %v1049, %v1054
      %vm1057 = vcmp.eq.f32.partialorder %v1049, 0.0
      %v1058 = vand.u32 %v1049, 2147483648
      %v1059 = vsel %vm1057, %v1058, %v1056
      %v1060 = vrsqrt.pop %v1052
      %v1061 = vmul.f32 %v1052, %v1060
      %vm1062 = vcmp.eq.f32.partialorder %v1052, inf
      %v1063 = vsel %vm1062, %v1052, %v1061
      %vm1064 = vcmp.eq.f32.partialorder %v1052, 0.0
      %v1065 = vand.u32 %v1052, 2147483648
      %v1066 = vsel %vm1064, %v1065, %v1063
      %1067 = vxpose.xlu0.b32.start [1/16] %v1059, 128
      %1068 = vxpose.xlu0.b32.cont [2/16] %v1066, 128
      %1069 = vxpose.xlu0.b32.cont [3/16] 0.0, 128
      %1070 = vxpose.xlu0.b32.cont [4/16] 0.0, 128
      %1071 = vxpose.xlu0.b32.cont [5/16] 0.0, 128
      %1072 = vxpose.xlu0.b32.cont [6/16] 0.0, 128
      %1073 = vxpose.xlu0.b32.cont [7/16] 0.0, 128
      %1074 = vxpose.xlu0.b32.cont [8/16] 0.0, 128
      %1075 = vxpose.xlu0.b32.cont [9/16] 0.0, 128
      %1076 = vxpose.xlu0.b32.cont [10/16] 0.0, 128
      %1077 = vxpose.xlu0.b32.cont [11/16] 0.0, 128
      %1078 = vxpose.xlu0.b32.cont [12/16] 0.0, 128
      %1079 = vxpose.xlu0.b32.cont [13/16] 0.0, 128
      %1080 = vxpose.xlu0.b32.cont [14/16] 0.0, 128
      %1081 = vxpose.xlu0.b32.cont [15/16] 0.0, 128
      %1082 = vxpose.xlu0.b32.end [16/16] 0.0, 128
      %v1083 = vpop.trf.xlu0
      %v1084 = vpop.trf.xlu0
      %v1085 = vpop.trf.xlu0
      %v1086 = vpop.trf.xlu0
      %v1087 = vpop.trf.xlu0
      %v1088 = vpop.trf.xlu0
      %v1089 = vpop.trf.xlu0
      %v1090 = vpop.trf.xlu0
      %v1091 = vpop.trf.xlu0
      %v1092 = vpop.trf.xlu0
      %v1093 = vpop.trf.xlu0
      %v1094 = vpop.trf.xlu0
      %v1095 = vpop.trf.xlu0
      %v1096 = vpop.trf.xlu0
      %v1097 = vpop.trf.xlu0
      %v1098 = vpop.trf.xlu0
      %v1099 = vlaneseq
      %v1100 = vshrl.u32 %v1099, 7
      %v1101 = vsub.s32 0, %v1100
      %v1102 = vrot.slane %v1083, %v1101
      %v1103 = vmul.f32 %v1059, %v1102
      %v1104 = vmul.f32 %v1066, %v1102
      %v1105 = vadd.f32 %v1103, 1e-20
      %v1106 = vadd.f32 %v1104, 1e-20
      %v1107 = vrcp.pop %v1105
      %v1108 = vmul.f32 %v1039, %v1107
      %v1109 = vrcp.pop %v1106
      %v1110 = vmul.f32 %v1042, %v1109
      %vm1111 = vcmp.gt.f32.partialorder %v1108, 0.7
      %vm1112 = vcmp.gt.f32.partialorder %v1110, 0.7
      %v1113 = vsel %vm1111, %v1108, 0.0
      %v1114 = vsel %vm1112, %v1110, 0.0
      %v1115 = vsel %vm975, %v1113, -inf
      %1116 = vmax.xlane.f32.xlu0 %v1115
      %v1117 = vpop.xlane.xlu0 %1116
      %v1118 = vsel %vm975, %v1114, -inf
      %1119 = vmax.xlane.f32.xlu0 %v1118
      %v1120 = vpop.xlane.xlu0 %1119
      %v1121 = vsub.f32 %v1113, %v1117
      %v1122 = vsub.f32 %v1114, %v1120
      %v1123 = vmul.f32 %v1121, 1.442695
      %v1124 = vpow.pop %v1123
      %v1125 = vmul.f32 %v1122, 1.442695
      %v1126 = vpow.pop %v1125
      %v1127 = vsel %vm975, %v1124, 0.0
      %1128 = vadd.xlane.f32.xlu0 %v1127
      %v1129 = vpop.xlane.xlu0 %1128
      %v1130 = vsel %vm975, %v1126, 0.0
      %1131 = vadd.xlane.f32.xlu0 %v1130
      %v1132 = vpop.xlane.xlu0 %1131
      %v1133 = vrcp.pop %v1129
      %v1134 = vmul.f32 %v1124, %v1133
      %v1135 = vrcp.pop %v1132
      %v1136 = vmul.f32 %v1126, %v1135
      %v1137 = vld [vmem:[%s2] sm:$0xff]
      %v1138 = vld [vmem:[%s2 + $0x8] sm:$0xff]
      %v1139 = vld [vmem:[%s9] sm:$0xff]
      %v1140 = vld [vmem:[%s9 + $0x8] sm:$0xff]
      %v1141 = vld [vmem:[%s9 + $0x10] sm:$0xff]
      %v1142 = vld [vmem:[%s9 + $0x18] sm:$0xff]
      %v1143 = vld [vmem:[%s9 + $0x20] sm:$0xff]
      %v1144 = vld [vmem:[%s9 + $0x28] sm:$0xff]
      %v1145 = vld [vmem:[%s9 + $0x30] sm:$0xff]
      %v1146 = vld [vmem:[%s9 + $0x38] sm:$0xff]
      %v1147 = vld [vmem:[%s9 + $0x40] sm:$0xff]
      %v1148 = vld [vmem:[%s9 + $0x48] sm:$0xff]
      %v1149 = vld [vmem:[%s9 + $0x50] sm:$0xff]
      %v1150 = vld [vmem:[%s9 + $0x58] sm:$0xff]
      %v1151 = vld [vmem:[%s9 + $0x60] sm:$0xff]
      %v1152 = vld [vmem:[%s9 + $0x68] sm:$0xff]
      %v1153 = vld [vmem:[%s9 + $0x70] sm:$0xff]
      %v1154 = vld [vmem:[%s9 + $0x78] sm:$0xff]
      %1155 = vmatprep.subr.mxu0 0.0
      %1156 = vmatpush1.msra.mxu0 %v1139
      %1157 = vmatprep.subr.mxu0 0.0
      %1158 = vmatpush1.msra.mxu0 %v1140
      %1159 = vmatprep.subr.mxu0 0.0
      %1160 = vmatpush1.msra.mxu0 %v1141
      %1161 = vmatprep.subr.mxu0 0.0
      %1162 = vmatpush1.msra.mxu0 %v1142
      %1163 = vmatprep.subr.mxu0 0.0
      %1164 = vmatpush1.msra.mxu0 %v1143
      %1165 = vmatprep.subr.mxu0 0.0
      %1166 = vmatpush1.msra.mxu0 %v1144
      %1167 = vmatprep.subr.mxu0 0.0
      %1168 = vmatpush1.msra.mxu0 %v1145
      %1169 = vmatprep.subr.mxu0 0.0
      %1170 = vmatpush1.msra.mxu0 %v1146
      %1171 = vmatprep.subr.mxu0 0.0
      %1172 = vmatpush1.msra.mxu0 %v1147
      %1173 = vmatprep.subr.mxu0 0.0
      %1174 = vmatpush1.msra.mxu0 %v1148
      %1175 = vmatprep.subr.mxu0 0.0
      %1176 = vmatpush1.msra.mxu0 %v1149
      %1177 = vmatprep.subr.mxu0 0.0
      %1178 = vmatpush1.msra.mxu0 %v1150
      %1179 = vmatprep.subr.mxu0 0.0
      %1180 = vmatpush1.msra.mxu0 %v1151
      %1181 = vmatprep.subr.mxu0 0.0
      %1182 = vmatpush1.msra.mxu0 %v1152
      %1183 = vmatprep.subr.mxu0 0.0
      %1184 = vmatpush1.msra.mxu0 %v1153
      %1185 = vmatprep.subr.mxu0 0.0
      %1186 = vmatpush1.msra.mxu0 %v1154
      %1187 = vmatprep.subr.mxu0 0.0
      %1188 = vmatpush1.msra.mxu0 0.0
      %1189 = vmatprep.subr.mxu0 0.0
      %1190 = vmatpush1.msra.mxu0 0.0
      %1191 = vmatprep.subr.mxu0 0.0
      %1192 = vmatpush1.msra.mxu0 0.0
      %1193 = vmatprep.subr.mxu0 0.0
      %1194 = vmatpush1.msra.mxu0 0.0
      %1195 = vmatprep.subr.mxu0 0.0
      %1196 = vmatpush1.msra.mxu0 0.0
      %1197 = vmatprep.subr.mxu0 0.0
      %1198 = vmatpush1.msra.mxu0 0.0
      %1199 = vmatprep.subr.mxu0 0.0
      %1200 = vmatpush1.msra.mxu0 0.0
      %1201 = vmatprep.subr.mxu0 0.0
      %1202 = vmatpush1.msra.mxu0 0.0
      %1203 = vmatprep.subr.mxu0 0.0
      %1204 = vmatpush1.msra.mxu0 0.0
      %1205 = vmatprep.subr.mxu0 0.0
      %1206 = vmatpush1.msra.mxu0 0.0
      %1207 = vmatprep.subr.mxu0 0.0
      %1208 = vmatpush1.msra.mxu0 0.0
      %1209 = vmatprep.subr.mxu0 0.0
      %1210 = vmatpush1.msra.mxu0 0.0
      %1211 = vmatprep.subr.mxu0 0.0
      %1212 = vmatpush1.msra.mxu0 0.0
      %1213 = vmatprep.subr.mxu0 0.0
      %1214 = vmatpush1.msra.mxu0 0.0
      %1215 = vmatprep.subr.mxu0 0.0
      %1216 = vmatpush1.msra.mxu0 0.0
      %1217 = vmatprep.subr.mxu0 0.0
      %1218 = vmatpush1.msra.mxu0 0.0
      %1219 = vmatprep.mubr.f32.mxu0 0.0
      %1220 = vmatmul.mubr.f32.gmra.mrb[0].mxu0 %v531
      %v1221 = vpop.f32.mrb[0].mxu0
      %v1222 = vadd.f32 0.0, %v1221
      %v1223 = vpop.f32.mrb[0].mxu0
      %1224 = vmatprep.mubr.f32.mxu0 0.0
      %1225 = vmatmul.mubr.f32.gmra.mrb[0].mxu0 %v532
      %v1226 = vpop.f32.mrb[0].mxu0
      %v1227 = vadd.f32 0.0, %v1226
      %v1228 = vpop.f32.mrb[0].mxu0
      %1229 = vdwg.mxu0
      %v1230 = vld [vmem:[%s10] sm:$0xff]
      %v1231 = vld [vmem:[%s10 + $0x8] sm:$0xff]
      %v1232 = vld [vmem:[%s10 + $0x10] sm:$0xff]
      %v1233 = vld [vmem:[%s10 + $0x18] sm:$0xff]
      %v1234 = vld [vmem:[%s10 + $0x20] sm:$0xff]
      %v1235 = vld [vmem:[%s10 + $0x28] sm:$0xff]
      %v1236 = vld [vmem:[%s10 + $0x30] sm:$0xff]
      %v1237 = vld [vmem:[%s10 + $0x38] sm:$0xff]
      %v1238 = vld [vmem:[%s10 + $0x40] sm:$0xff]
      %v1239 = vld [vmem:[%s10 + $0x48] sm:$0xff]
      %v1240 = vld [vmem:[%s10 + $0x50] sm:$0xff]
      %v1241 = vld [vmem:[%s10 + $0x58] sm:$0xff]
      %v1242 = vld [vmem:[%s10 + $0x60] sm:$0xff]
      %v1243 = vld [vmem:[%s10 + $0x68] sm:$0xff]
      %v1244 = vld [vmem:[%s10 + $0x70] sm:$0xff]
      %v1245 = vld [vmem:[%s10 + $0x78] sm:$0xff]
      %1246 = vmatprep.subr.mxu0 0.0
      %1247 = vmatpush1.msra.mxu0 %v1230
      %1248 = vmatprep.subr.mxu0 0.0
      %1249 = vmatpush1.msra.mxu0 %v1231
      %1250 = vmatprep.subr.mxu0 0.0
      %1251 = vmatpush1.msra.mxu0 %v1232
      %1252 = vmatprep.subr.mxu0 0.0
      %1253 = vmatpush1.msra.mxu0 %v1233
      %1254 = vmatprep.subr.mxu0 0.0
      %1255 = vmatpush1.msra.mxu0 %v1234
      %1256 = vmatprep.subr.mxu0 0.0
      %1257 = vmatpush1.msra.mxu0 %v1235
      %1258 = vmatprep.subr.mxu0 0.0
      %1259 = vmatpush1.msra.mxu0 %v1236
      %1260 = vmatprep.subr.mxu0 0.0
      %1261 = vmatpush1.msra.mxu0 %v1237
      %1262 = vmatprep.subr.mxu0 0.0
      %1263 = vmatpush1.msra.mxu0 %v1238
      %1264 = vmatprep.subr.mxu0 0.0
      %1265 = vmatpush1.msra.mxu0 %v1239
      %1266 = vmatprep.subr.mxu0 0.0
      %1267 = vmatpush1.msra.mxu0 %v1240
      %1268 = vmatprep.subr.mxu0 0.0
      %1269 = vmatpush1.msra.mxu0 %v1241
      %1270 = vmatprep.subr.mxu0 0.0
      %1271 = vmatpush1.msra.mxu0 %v1242
      %1272 = vmatprep.subr.mxu0 0.0
      %1273 = vmatpush1.msra.mxu0 %v1243
      %1274 = vmatprep.subr.mxu0 0.0
      %1275 = vmatpush1.msra.mxu0 %v1244
      %1276 = vmatprep.subr.mxu0 0.0
      %1277 = vmatpush1.msra.mxu0 %v1245
      %1278 = vmatprep.subr.mxu0 0.0
      %1279 = vmatpush1.msra.mxu0 0.0
      %1280 = vmatprep.subr.mxu0 0.0
      %1281 = vmatpush1.msra.mxu0 0.0
      %1282 = vmatprep.subr.mxu0 0.0
      %1283 = vmatpush1.msra.mxu0 0.0
      %1284 = vmatprep.subr.mxu0 0.0
      %1285 = vmatpush1.msra.mxu0 0.0
      %1286 = vmatprep.subr.mxu0 0.0
      %1287 = vmatpush1.msra.mxu0 0.0
      %1288 = vmatprep.subr.mxu0 0.0
      %1289 = vmatpush1.msra.mxu0 0.0
      %1290 = vmatprep.subr.mxu0 0.0
      %1291 = vmatpush1.msra.mxu0 0.0
      %1292 = vmatprep.subr.mxu0 0.0
      %1293 = vmatpush1.msra.mxu0 0.0
      %1294 = vmatprep.subr.mxu0 0.0
      %1295 = vmatpush1.msra.mxu0 0.0
      %1296 = vmatprep.subr.mxu0 0.0
      %1297 = vmatpush1.msra.mxu0 0.0
      %1298 = vmatprep.subr.mxu0 0.0
      %1299 = vmatpush1.msra.mxu0 0.0
      %1300 = vmatprep.subr.mxu0 0.0
      %1301 = vmatpush1.msra.mxu0 0.0
      %1302 = vmatprep.subr.mxu0 0.0
      %1303 = vmatpush1.msra.mxu0 0.0
      %1304 = vmatprep.subr.mxu0 0.0
      %1305 = vmatpush1.msra.mxu0 0.0
      %1306 = vmatprep.subr.mxu0 0.0
      %1307 = vmatpush1.msra.mxu0 0.0
      %1308 = vmatprep.subr.mxu0 0.0
      %1309 = vmatpush1.msra.mxu0 0.0
      %1310 = vmatprep.mubr.f32.mxu0 0.0
      %1311 = vmatmul.mubr.f32.gmra.mrb[0].mxu0 %v531
      %v1312 = vpop.f32.mrb[0].mxu0
      %v1313 = vadd.f32 0.0, %v1312
      %v1314 = vpop.f32.mrb[0].mxu0
      %1315 = vmatprep.mubr.f32.mxu0 0.0
      %1316 = vmatmul.mubr.f32.gmra.mrb[0].mxu0 %v532
      %v1317 = vpop.f32.mrb[0].mxu0
      %v1318 = vadd.f32 0.0, %v1317
      %v1319 = vpop.f32.mrb[0].mxu0
      %1320 = vdwg.mxu0
      %v1322 = vsel %vm975, %v1134, 0
      %v1325 = vsel %vm975, %v1136, 0
      %1327 = vmatprep.subr.mxu0 0.0
      %1328 = vmatpush1.msra.mxu0 %v1222
      %1329 = vmatprep.subr.mxu0 0.0
      %1330 = vmatpush1.msra.mxu0 %v1227
      %1331 = vmatprep.subr.mxu0 0.0
      %1332 = vmatpush1.msra.mxu0 0.0
      %1333 = vmatprep.subr.mxu0 0.0
      %1334 = vmatpush1.msra.mxu0 0.0
      %1335 = vmatprep.subr.mxu0 0.0
      %1336 = vmatpush1.msra.mxu0 0.0
      %1337 = vmatprep.subr.mxu0 0.0
      %1338 = vmatpush1.msra.mxu0 0.0
      %1339 = vmatprep.subr.mxu0 0.0
      %1340 = vmatpush1.msra.mxu0 0.0
      %1341 = vmatprep.subr.mxu0 0.0
      %1342 = vmatpush1.msra.mxu0 0.0
      %1343 = vmatprep.subr.mxu0 0.0
      %1344 = vmatpush1.msra.mxu0 0.0
      %1345 = vmatprep.subr.mxu0 0.0
      %1346 = vmatpush1.msra.mxu0 0.0
      %1347 = vmatprep.subr.mxu0 0.0
      %1348 = vmatpush1.msra.mxu0 0.0
      %1349 = vmatprep.subr.mxu0 0.0
      %1350 = vmatpush1.msra.mxu0 0.0
      %1351 = vmatprep.subr.mxu0 0.0
      %1352 = vmatpush1.msra.mxu0 0.0
      %1353 = vmatprep.subr.mxu0 0.0
      %1354 = vmatpush1.msra.mxu0 0.0
      %1355 = vmatprep.subr.mxu0 0.0
      %1356 = vmatpush1.msra.mxu0 0.0
      %1357 = vmatprep.subr.mxu0 0.0
      %1358 = vmatpush1.msra.mxu0 0.0
      %1359 = vmatprep.subr.mxu0 0.0
      %1360 = vmatpush1.msra.mxu0 0.0
      %1361 = vmatprep.subr.mxu0 0.0
      %1362 = vmatpush1.msra.mxu0 0.0
      %1363 = vmatprep.subr.mxu0 0.0
      %1364 = vmatpush1.msra.mxu0 0.0
      %1365 = vmatprep.subr.mxu0 0.0
      %1366 = vmatpush1.msra.mxu0 0.0
      %1367 = vmatprep.subr.mxu0 0.0
      %1368 = vmatpush1.msra.mxu0 0.0
      %1369 = vmatprep.subr.mxu0 0.0
      %1370 = vmatpush1.msra.mxu0 0.0
      %1371 = vmatprep.subr.mxu0 0.0
      %1372 = vmatpush1.msra.mxu0 0.0
      %1373 = vmatprep.subr.mxu0 0.0
      %1374 = vmatpush1.msra.mxu0 0.0
      %1375 = vmatprep.subr.mxu0 0.0
      %1376 = vmatpush1.msra.mxu0 0.0
      %1377 = vmatprep.subr.mxu0 0.0
      %1378 = vmatpush1.msra.mxu0 0.0
      %1379 = vmatprep.subr.mxu0 0.0
      %1380 = vmatpush1.msra.mxu0 0.0
      %1381 = vmatprep.subr.mxu0 0.0
      %1382 = vmatpush1.msra.mxu0 0.0
      %1383 = vmatprep.subr.mxu0 0.0
      %1384 = vmatpush1.msra.mxu0 0.0
      %1385 = vmatprep.subr.mxu0 0.0
      %1386 = vmatpush1.msra.mxu0 0.0
      %1387 = vmatprep.subr.mxu0 0.0
      %1388 = vmatpush1.msra.mxu0 0.0
      %1389 = vmatprep.subr.mxu0 0.0
      %1390 = vmatpush1.msra.mxu0 0.0
      %1391 = vmatprep.mubr.f32.mxu0 0.0
      %1392 = vmatmul.mubr.f32.gmra.mrb[0].mxu0 %v1322
      %v1393 = vpop.f32.mrb[0].mxu0
      %v1394 = vadd.f32 %v1313, %v1393
      %v1395 = vpop.f32.mrb[0].mxu0
      %1396 = vmatprep.mubr.f32.mxu0 0.0
      %1397 = vmatmul.mubr.f32.gmra.mrb[0].mxu0 %v1325
      %v1398 = vpop.f32.mrb[0].mxu0
      %v1399 = vadd.f32 %v1318, %v1398
      %v1400 = vpop.f32.mrb[0].mxu0
      %1401 = vdwg.mxu0
      %v1402 = vmax.f32 %v1394, 0.0
      %v1403 = vmax.f32 %v1399, 0.0
      %1406 = vrot.lane.b32.xlu0 %v1222, 96
      %v1407 = vpop.permute.xlu0 %1406
      %1408 = vrot.lane.b32.xlu0 %v1227, 96
      %v1409 = vpop.permute.xlu0 %1408
      %1414 = vrot.lane.b32.xlu0 %v1313, 96
      %v1415 = vpop.permute.xlu0 %1414
      %1416 = vrot.lane.b32.xlu0 %v1318, 96
      %v1417 = vpop.permute.xlu0 %1416
      %v1421 = vsel %vm975, %v1137, 0
      %v1424 = vsel %vm975, %v1138, 0
      %1426 = vmatprep.subr.mxu0 0.0
      %1427 = vmatpush1.msra.mxu0 %v1407
      %1428 = vmatprep.subr.mxu0 0.0
      %1429 = vmatpush1.msra.mxu0 %v1409
      %1430 = vmatprep.subr.mxu0 0.0
      %1431 = vmatpush1.msra.mxu0 0.0
      %1432 = vmatprep.subr.mxu0 0.0
      %1433 = vmatpush1.msra.mxu0 0.0
      %1434 = vmatprep.subr.mxu0 0.0
      %1435 = vmatpush1.msra.mxu0 0.0
      %1436 = vmatprep.subr.mxu0 0.0
      %1437 = vmatpush1.msra.mxu0 0.0
      %1438 = vmatprep.subr.mxu0 0.0
      %1439 = vmatpush1.msra.mxu0 0.0
      %1440 = vmatprep.subr.mxu0 0.0
      %1441 = vmatpush1.msra.mxu0 0.0
      %1442 = vmatprep.subr.mxu0 0.0
      %1443 = vmatpush1.msra.mxu0 0.0
      %1444 = vmatprep.subr.mxu0 0.0
      %1445 = vmatpush1.msra.mxu0 0.0
      %1446 = vmatprep.subr.mxu0 0.0
      %1447 = vmatpush1.msra.mxu0 0.0
      %1448 = vmatprep.subr.mxu0 0.0
      %1449 = vmatpush1.msra.mxu0 0.0
      %1450 = vmatprep.subr.mxu0 0.0
      %1451 = vmatpush1.msra.mxu0 0.0
      %1452 = vmatprep.subr.mxu0 0.0
      %1453 = vmatpush1.msra.mxu0 0.0
      %1454 = vmatprep.subr.mxu0 0.0
      %1455 = vmatpush1.msra.mxu0 0.0
      %1456 = vmatprep.subr.mxu0 0.0
      %1457 = vmatpush1.msra.mxu0 0.0
      %1458 = vmatprep.subr.mxu0 0.0
      %1459 = vmatpush1.msra.mxu0 0.0
      %1460 = vmatprep.subr.mxu0 0.0
      %1461 = vmatpush1.msra.mxu0 0.0
      %1462 = vmatprep.subr.mxu0 0.0
      %1463 = vmatpush1.msra.mxu0 0.0
      %1464 = vmatprep.subr.mxu0 0.0
      %1465 = vmatpush1.msra.mxu0 0.0
      %1466 = vmatprep.subr.mxu0 0.0
      %1467 = vmatpush1.msra.mxu0 0.0
      %1468 = vmatprep.subr.mxu0 0.0
      %1469 = vmatpush1.msra.mxu0 0.0
      %1470 = vmatprep.subr.mxu0 0.0
      %1471 = vmatpush1.msra.mxu0 0.0
      %1472 = vmatprep.subr.mxu0 0.0
      %1473 = vmatpush1.msra.mxu0 0.0
      %1474 = vmatprep.subr.mxu0 0.0
      %1475 = vmatpush1.msra.mxu0 0.0
      %1476 = vmatprep.subr.mxu0 0.0
      %1477 = vmatpush1.msra.mxu0 0.0
      %1478 = vmatprep.subr.mxu0 0.0
      %1479 = vmatpush1.msra.mxu0 0.0
      %1480 = vmatprep.subr.mxu0 0.0
      %1481 = vmatpush1.msra.mxu0 0.0
      %1482 = vmatprep.subr.mxu0 0.0
      %1483 = vmatpush1.msra.mxu0 0.0
      %1484 = vmatprep.subr.mxu0 0.0
      %1485 = vmatpush1.msra.mxu0 0.0
      %1486 = vmatprep.subr.mxu0 0.0
      %1487 = vmatpush1.msra.mxu0 0.0
      %1488 = vmatprep.subr.mxu0 0.0
      %1489 = vmatpush1.msra.mxu0 0.0
      %1490 = vmatprep.mubr.f32.mxu0 0.0
      %1491 = vmatmul.mubr.f32.gmra.mrb[0].mxu0 %v1421
      %v1492 = vpop.f32.mrb[0].mxu0
      %v1493 = vadd.f32 %v1415, %v1492
      %v1494 = vpop.f32.mrb[0].mxu0
      %1495 = vmatprep.mubr.f32.mxu0 0.0
      %1496 = vmatmul.mubr.f32.gmra.mrb[0].mxu0 %v1424
      %v1497 = vpop.f32.mrb[0].mxu0
      %v1498 = vadd.f32 %v1417, %v1497
      %v1499 = vpop.f32.mrb[0].mxu0
      %1500 = vdwg.mxu0
      %v1501 = vmax.f32 %v1493, 0.0
      %v1502 = vmax.f32 %v1498, 0.0
      %1503 = vrot.lane.b32.xlu0 %v1222, 64
      %v1504 = vpop.permute.xlu0 %1503
      %1505 = vrot.lane.b32.xlu0 %v1227, 64
      %v1506 = vpop.permute.xlu0 %1505
      %1509 = vrot.lane.b32.xlu0 %v1313, 64
      %v1510 = vpop.permute.xlu0 %1509
      %1511 = vrot.lane.b32.xlu0 %v1318, 64
      %v1512 = vpop.permute.xlu0 %1511
      %v1516 = vsel %vm975, %v995, 0
      %v1519 = vsel %vm975, %v997, 0
      %1521 = vmatprep.subr.mxu0 0.0
      %1522 = vmatpush1.msra.mxu0 %v1504
      %1523 = vmatprep.subr.mxu0 0.0
      %1524 = vmatpush1.msra.mxu0 %v1506
      %1525 = vmatprep.subr.mxu0 0.0
      %1526 = vmatpush1.msra.mxu0 0.0
      %1527 = vmatprep.subr.mxu0 0.0
      %1528 = vmatpush1.msra.mxu0 0.0
      %1529 = vmatprep.subr.mxu0 0.0
      %1530 = vmatpush1.msra.mxu0 0.0
      %1531 = vmatprep.subr.mxu0 0.0
      %1532 = vmatpush1.msra.mxu0 0.0
      %1533 = vmatprep.subr.mxu0 0.0
      %1534 = vmatpush1.msra.mxu0 0.0
      %1535 = vmatprep.subr.mxu0 0.0
      %1536 = vmatpush1.msra.mxu0 0.0
      %1537 = vmatprep.subr.mxu0 0.0
      %1538 = vmatpush1.msra.mxu0 0.0
      %1539 = vmatprep.subr.mxu0 0.0
      %1540 = vmatpush1.msra.mxu0 0.0
      %1541 = vmatprep.subr.mxu0 0.0
      %1542 = vmatpush1.msra.mxu0 0.0
      %1543 = vmatprep.subr.mxu0 0.0
      %1544 = vmatpush1.msra.mxu0 0.0
      %1545 = vmatprep.subr.mxu0 0.0
      %1546 = vmatpush1.msra.mxu0 0.0
      %1547 = vmatprep.subr.mxu0 0.0
      %1548 = vmatpush1.msra.mxu0 0.0
      %1549 = vmatprep.subr.mxu0 0.0
      %1550 = vmatpush1.msra.mxu0 0.0
      %1551 = vmatprep.subr.mxu0 0.0
      %1552 = vmatpush1.msra.mxu0 0.0
      %1553 = vmatprep.subr.mxu0 0.0
      %1554 = vmatpush1.msra.mxu0 0.0
      %1555 = vmatprep.subr.mxu0 0.0
      %1556 = vmatpush1.msra.mxu0 0.0
      %1557 = vmatprep.subr.mxu0 0.0
      %1558 = vmatpush1.msra.mxu0 0.0
      %1559 = vmatprep.subr.mxu0 0.0
      %1560 = vmatpush1.msra.mxu0 0.0
      %1561 = vmatprep.subr.mxu0 0.0
      %1562 = vmatpush1.msra.mxu0 0.0
      %1563 = vmatprep.subr.mxu0 0.0
      %1564 = vmatpush1.msra.mxu0 0.0
      %1565 = vmatprep.subr.mxu0 0.0
      %1566 = vmatpush1.msra.mxu0 0.0
      %1567 = vmatprep.subr.mxu0 0.0
      %1568 = vmatpush1.msra.mxu0 0.0
      %1569 = vmatprep.subr.mxu0 0.0
      %1570 = vmatpush1.msra.mxu0 0.0
      %1571 = vmatprep.subr.mxu0 0.0
      %1572 = vmatpush1.msra.mxu0 0.0
      %1573 = vmatprep.subr.mxu0 0.0
      %1574 = vmatpush1.msra.mxu0 0.0
      %1575 = vmatprep.subr.mxu0 0.0
      %1576 = vmatpush1.msra.mxu0 0.0
      %1577 = vmatprep.subr.mxu0 0.0
      %1578 = vmatpush1.msra.mxu0 0.0
      %1579 = vmatprep.subr.mxu0 0.0
      %1580 = vmatpush1.msra.mxu0 0.0
      %1581 = vmatprep.subr.mxu0 0.0
      %1582 = vmatpush1.msra.mxu0 0.0
      %1583 = vmatprep.subr.mxu0 0.0
      %1584 = vmatpush1.msra.mxu0 0.0
      %1585 = vmatprep.mubr.f32.mxu0 0.0
      %1586 = vmatmul.mubr.f32.gmra.mrb[0].mxu0 %v1516
      %v1587 = vpop.f32.mrb[0].mxu0
      %v1588 = vadd.f32 %v1510, %v1587
      %v1589 = vpop.f32.mrb[0].mxu0
      %1590 = vmatprep.mubr.f32.mxu0 0.0
      %1591 = vmatmul.mubr.f32.gmra.mrb[0].mxu0 %v1519
      %v1592 = vpop.f32.mrb[0].mxu0
      %v1593 = vadd.f32 %v1512, %v1592
      %v1594 = vpop.f32.mrb[0].mxu0
      %1595 = vdwg.mxu0
      %v1596 = vmax.f32 %v1588, 0.0
      %v1597 = vmax.f32 %v1593, 0.0
      %1600 = vrot.lane.b32.xlu0 %v1501, 32
      %v1601 = vpop.permute.xlu0 %1600
      %1602 = vrot.lane.b32.xlu0 %v1502, 32
      %v1603 = vpop.permute.xlu0 %1602
      %1608 = vrot.lane.b32.xlu0 %v1596, 64
      %v1609 = vpop.permute.xlu0 %1608
      %1610 = vrot.lane.b32.xlu0 %v1597, 64
      %v1611 = vpop.permute.xlu0 %1610
      %v1614 = vsel %vm736, %v1402, %v1601
      %v1615 = vsel %vm736, %v1403, %v1603
      %v1616 = vsel %vm648, %v1614, %v1609
      %v1617 = vsel %vm648, %v1615, %v1611
      %v1618 = vld [vmem:[%s11] sm:$0xff]
      %v1619 = vld [vmem:[%s11 + $0x8] sm:$0xff]
      %v1620 = vld [vmem:[%s11 + $0x10] sm:$0xff]
      %v1621 = vld [vmem:[%s11 + $0x18] sm:$0xff]
      %v1622 = vld [vmem:[%s11 + $0x20] sm:$0xff]
      %v1623 = vld [vmem:[%s11 + $0x28] sm:$0xff]
      %v1624 = vld [vmem:[%s11 + $0x30] sm:$0xff]
      %v1625 = vld [vmem:[%s11 + $0x38] sm:$0xff]
      %v1626 = vld [vmem:[%s11 + $0x40] sm:$0xff]
      %v1627 = vld [vmem:[%s11 + $0x48] sm:$0xff]
      %v1628 = vld [vmem:[%s11 + $0x50] sm:$0xff]
      %v1629 = vld [vmem:[%s11 + $0x58] sm:$0xff]
      %vm1630 = vcmask 785408
      %v1632 = vsel %vm1630, %v1616, 0
      %v1635 = vsel %vm1630, %v1617, 0
      %1637 = vmatprep.subr.mxu0 0.0
      %1638 = vmatpush1.msra.mxu0 %v1618
      %1639 = vmatprep.subr.mxu0 0.0
      %1640 = vmatpush1.msra.mxu0 %v1619
      %1641 = vmatprep.subr.mxu0 0.0
      %1642 = vmatpush1.msra.mxu0 %v1620
      %1643 = vmatprep.subr.mxu0 0.0
      %1644 = vmatpush1.msra.mxu0 %v1621
      %1645 = vmatprep.subr.mxu0 0.0
      %1646 = vmatpush1.msra.mxu0 %v1622
      %1647 = vmatprep.subr.mxu0 0.0
      %1648 = vmatpush1.msra.mxu0 %v1623
      %1649 = vmatprep.subr.mxu0 0.0
      %1650 = vmatpush1.msra.mxu0 %v1624
      %1651 = vmatprep.subr.mxu0 0.0
      %1652 = vmatpush1.msra.mxu0 %v1625
      %1653 = vmatprep.subr.mxu0 0.0
      %1654 = vmatpush1.msra.mxu0 %v1626
      %1655 = vmatprep.subr.mxu0 0.0
      %1656 = vmatpush1.msra.mxu0 %v1627
      %1657 = vmatprep.subr.mxu0 0.0
      %1658 = vmatpush1.msra.mxu0 %v1628
      %1659 = vmatprep.subr.mxu0 0.0
      %1660 = vmatpush1.msra.mxu0 %v1629
      %1661 = vmatprep.subr.mxu0 0.0
      %1662 = vmatpush1.msra.mxu0 0.0
      %1663 = vmatprep.subr.mxu0 0.0
      %1664 = vmatpush1.msra.mxu0 0.0
      %1665 = vmatprep.subr.mxu0 0.0
      %1666 = vmatpush1.msra.mxu0 0.0
      %1667 = vmatprep.subr.mxu0 0.0
      %1668 = vmatpush1.msra.mxu0 0.0
      %1669 = vmatprep.subr.mxu0 0.0
      %1670 = vmatpush1.msra.mxu0 0.0
      %1671 = vmatprep.subr.mxu0 0.0
      %1672 = vmatpush1.msra.mxu0 0.0
      %1673 = vmatprep.subr.mxu0 0.0
      %1674 = vmatpush1.msra.mxu0 0.0
      %1675 = vmatprep.subr.mxu0 0.0
      %1676 = vmatpush1.msra.mxu0 0.0
      %1677 = vmatprep.subr.mxu0 0.0
      %1678 = vmatpush1.msra.mxu0 0.0
      %1679 = vmatprep.subr.mxu0 0.0
      %1680 = vmatpush1.msra.mxu0 0.0
      %1681 = vmatprep.subr.mxu0 0.0
      %1682 = vmatpush1.msra.mxu0 0.0
      %1683 = vmatprep.subr.mxu0 0.0
      %1684 = vmatpush1.msra.mxu0 0.0
      %1685 = vmatprep.subr.mxu0 0.0
      %1686 = vmatpush1.msra.mxu0 0.0
      %1687 = vmatprep.subr.mxu0 0.0
      %1688 = vmatpush1.msra.mxu0 0.0
      %1689 = vmatprep.subr.mxu0 0.0
      %1690 = vmatpush1.msra.mxu0 0.0
      %1691 = vmatprep.subr.mxu0 0.0
      %1692 = vmatpush1.msra.mxu0 0.0
      %1693 = vmatprep.subr.mxu0 0.0
      %1694 = vmatpush1.msra.mxu0 0.0
      %1695 = vmatprep.subr.mxu0 0.0
      %1696 = vmatpush1.msra.mxu0 0.0
      %1697 = vmatprep.subr.mxu0 0.0
      %1698 = vmatpush1.msra.mxu0 0.0
      %1699 = vmatprep.subr.mxu0 0.0
      %1700 = vmatpush1.msra.mxu0 0.0
      %1701 = vmatprep.mubr.f32.mxu0 0.0
      %1702 = vmatmul.mubr.f32.gmra.mrb[0].mxu0 %v1632
      %v1703 = vpop.f32.mrb[0].mxu0
      %v1704 = vadd.f32 0.0, %v1703
      %v1705 = vpop.f32.mrb[0].mxu0
      %1706 = vmatprep.mubr.f32.mxu0 0.0
      %1707 = vmatmul.mubr.f32.gmra.mrb[0].mxu0 %v1635
      %v1708 = vpop.f32.mrb[0].mxu0
      %v1709 = vadd.f32 0.0, %v1708
      %v1710 = vpop.f32.mrb[0].mxu0
      %1711 = vdwg.mxu0
      %1712 = vmatprep.subr.mxu0 0.0
      %1713 = vmatpush1.msra.mxu0 %v1704
      %1714 = vmatprep.subr.mxu0 0.0
      %1715 = vmatpush1.msra.mxu0 %v1709
      %1716 = vmatprep.subr.mxu0 0.0
      %1717 = vmatpush1.msra.mxu0 0.0
      %1718 = vmatprep.subr.mxu0 0.0
      %1719 = vmatpush1.msra.mxu0 0.0
      %1720 = vmatprep.subr.mxu0 0.0
      %1721 = vmatpush1.msra.mxu0 0.0
      %1722 = vmatprep.subr.mxu0 0.0
      %1723 = vmatpush1.msra.mxu0 0.0
      %1724 = vmatprep.subr.mxu0 0.0
      %1725 = vmatpush1.msra.mxu0 0.0
      %1726 = vmatprep.subr.mxu0 0.0
      %1727 = vmatpush1.msra.mxu0 0.0
      %1728 = vmatprep.subr.mxu0 0.0
      %1729 = vmatpush1.msra.mxu0 0.0
      %1730 = vmatprep.subr.mxu0 0.0
      %1731 = vmatpush1.msra.mxu0 0.0
      %1732 = vmatprep.subr.mxu0 0.0
      %1733 = vmatpush1.msra.mxu0 0.0
      %1734 = vmatprep.subr.mxu0 0.0
      %1735 = vmatpush1.msra.mxu0 0.0
      %1736 = vmatprep.subr.mxu0 0.0
      %1737 = vmatpush1.msra.mxu0 0.0
      %1738 = vmatprep.subr.mxu0 0.0
      %1739 = vmatpush1.msra.mxu0 0.0
      %1740 = vmatprep.subr.mxu0 0.0
      %1741 = vmatpush1.msra.mxu0 0.0
      %1742 = vmatprep.subr.mxu0 0.0
      %1743 = vmatpush1.msra.mxu0 0.0
      %1744 = vmatprep.subr.mxu0 0.0
      %1745 = vmatpush1.msra.mxu0 0.0
      %1746 = vmatprep.subr.mxu0 0.0
      %1747 = vmatpush1.msra.mxu0 0.0
      %1748 = vmatprep.subr.mxu0 0.0
      %1749 = vmatpush1.msra.mxu0 0.0
      %1750 = vmatprep.subr.mxu0 0.0
      %1751 = vmatpush1.msra.mxu0 0.0
      %1752 = vmatprep.subr.mxu0 0.0
      %1753 = vmatpush1.msra.mxu0 0.0
      %1754 = vmatprep.subr.mxu0 0.0
      %1755 = vmatpush1.msra.mxu0 0.0
      %1756 = vmatprep.subr.mxu0 0.0
      %1757 = vmatpush1.msra.mxu0 0.0
      %1758 = vmatprep.subr.mxu0 0.0
      %1759 = vmatpush1.msra.mxu0 0.0
      %1760 = vmatprep.subr.mxu0 0.0
      %1761 = vmatpush1.msra.mxu0 0.0
      %1762 = vmatprep.subr.mxu0 0.0
      %1763 = vmatpush1.msra.mxu0 0.0
      %1764 = vmatprep.subr.mxu0 0.0
      %1765 = vmatpush1.msra.mxu0 0.0
      %1766 = vmatprep.subr.mxu0 0.0
      %1767 = vmatpush1.msra.mxu0 0.0
      %1768 = vmatprep.subr.mxu0 0.0
      %1769 = vmatpush1.msra.mxu0 0.0
      %1770 = vmatprep.subr.mxu0 0.0
      %1771 = vmatpush1.msra.mxu0 0.0
      %1772 = vmatprep.subr.mxu0 0.0
      %1773 = vmatpush1.msra.mxu0 0.0
      %1774 = vmatprep.subr.mxu0 0.0
      %1775 = vmatpush1.msra.mxu0 0.0
      %1776 = vmatprep.mubr.f32.mxu0 0.0
      %1777 = vmatmul.mubr.f32.gmra.mrb[0].mxu0 %v1322
      %v1778 = vpop.f32.mrb[0].mxu0
      %v1779 = vadd.f32 %v1616, %v1778
      %v1780 = vpop.f32.mrb[0].mxu0
      %1781 = vmatprep.mubr.f32.mxu0 0.0
      %1782 = vmatmul.mubr.f32.gmra.mrb[0].mxu0 %v1325
      %v1783 = vpop.f32.mrb[0].mxu0
      %v1784 = vadd.f32 %v1617, %v1783
      %v1785 = vpop.f32.mrb[0].mxu0
      %1786 = vdwg.mxu0
      %v1787 = vmax.f32 %v1779, 0.0
      %v1788 = vmax.f32 %v1784, 0.0
      %1791 = vrot.lane.b32.xlu0 %v1704, 96
      %v1792 = vpop.permute.xlu0 %1791
      %1793 = vrot.lane.b32.xlu0 %v1709, 96
      %v1794 = vpop.permute.xlu0 %1793
      %1797 = vrot.lane.b32.xlu0 %v1616, 96
      %v1798 = vpop.permute.xlu0 %1797
      %1799 = vrot.lane.b32.xlu0 %v1617, 96
      %v1800 = vpop.permute.xlu0 %1799
      %1803 = vmatprep.subr.mxu0 0.0
      %1804 = vmatpush1.msra.mxu0 %v1792
      %1805 = vmatprep.subr.mxu0 0.0
      %1806 = vmatpush1.msra.mxu0 %v1794
      %1807 = vmatprep.subr.mxu0 0.0
      %1808 = vmatpush1.msra.mxu0 0.0
      %1809 = vmatprep.subr.mxu0 0.0
      %1810 = vmatpush1.msra.mxu0 0.0
      %1811 = vmatprep.subr.mxu0 0.0
      %1812 = vmatpush1.msra.mxu0 0.0
      %1813 = vmatprep.subr.mxu0 0.0
      %1814 = vmatpush1.msra.mxu0 0.0
      %1815 = vmatprep.subr.mxu0 0.0
      %1816 = vmatpush1.msra.mxu0 0.0
      %1817 = vmatprep.subr.mxu0 0.0
      %1818 = vmatpush1.msra.mxu0 0.0
      %1819 = vmatprep.subr.mxu0 0.0
      %1820 = vmatpush1.msra.mxu0 0.0
      %1821 = vmatprep.subr.mxu0 0.0
      %1822 = vmatpush1.msra.mxu0 0.0
      %1823 = vmatprep.subr.mxu0 0.0
      %1824 = vmatpush1.msra.mxu0 0.0
      %1825 = vmatprep.subr.mxu0 0.0
      %1826 = vmatpush1.msra.mxu0 0.0
      %1827 = vmatprep.subr.mxu0 0.0
      %1828 = vmatpush1.msra.mxu0 0.0
      %1829 = vmatprep.subr.mxu0 0.0
      %1830 = vmatpush1.msra.mxu0 0.0
      %1831 = vmatprep.subr.mxu0 0.0
      %1832 = vmatpush1.msra.mxu0 0.0
      %1833 = vmatprep.subr.mxu0 0.0
      %1834 = vmatpush1.msra.mxu0 0.0
      %1835 = vmatprep.subr.mxu0 0.0
      %1836 = vmatpush1.msra.mxu0 0.0
      %1837 = vmatprep.subr.mxu0 0.0
      %1838 = vmatpush1.msra.mxu0 0.0
      %1839 = vmatprep.subr.mxu0 0.0
      %1840 = vmatpush1.msra.mxu0 0.0
      %1841 = vmatprep.subr.mxu0 0.0
      %1842 = vmatpush1.msra.mxu0 0.0
      %1843 = vmatprep.subr.mxu0 0.0
      %1844 = vmatpush1.msra.mxu0 0.0
      %1845 = vmatprep.subr.mxu0 0.0
      %1846 = vmatpush1.msra.mxu0 0.0
      %1847 = vmatprep.subr.mxu0 0.0
      %1848 = vmatpush1.msra.mxu0 0.0
      %1849 = vmatprep.subr.mxu0 0.0
      %1850 = vmatpush1.msra.mxu0 0.0
      %1851 = vmatprep.subr.mxu0 0.0
      %1852 = vmatpush1.msra.mxu0 0.0
      %1853 = vmatprep.subr.mxu0 0.0
      %1854 = vmatpush1.msra.mxu0 0.0
      %1855 = vmatprep.subr.mxu0 0.0
      %1856 = vmatpush1.msra.mxu0 0.0
      %1857 = vmatprep.subr.mxu0 0.0
      %1858 = vmatpush1.msra.mxu0 0.0
      %1859 = vmatprep.subr.mxu0 0.0
      %1860 = vmatpush1.msra.mxu0 0.0
      %1861 = vmatprep.subr.mxu0 0.0
      %1862 = vmatpush1.msra.mxu0 0.0
      %1863 = vmatprep.subr.mxu0 0.0
      %1864 = vmatpush1.msra.mxu0 0.0
      %1865 = vmatprep.subr.mxu0 0.0
      %1866 = vmatpush1.msra.mxu0 0.0
      %1867 = vmatprep.mubr.f32.mxu0 0.0
      %1868 = vmatmul.mubr.f32.gmra.mrb[0].mxu0 %v1421
      %v1869 = vpop.f32.mrb[0].mxu0
      %v1870 = vadd.f32 %v1798, %v1869
      %v1871 = vpop.f32.mrb[0].mxu0
      %1872 = vmatprep.mubr.f32.mxu0 0.0
      %1873 = vmatmul.mubr.f32.gmra.mrb[0].mxu0 %v1424
      %v1874 = vpop.f32.mrb[0].mxu0
      %v1875 = vadd.f32 %v1800, %v1874
      %v1876 = vpop.f32.mrb[0].mxu0
      %1877 = vdwg.mxu0
      %v1878 = vmax.f32 %v1870, 0.0
      %v1879 = vmax.f32 %v1875, 0.0
      %1880 = vrot.lane.b32.xlu0 %v1704, 64
      %v1881 = vpop.permute.xlu0 %1880
      %1882 = vrot.lane.b32.xlu0 %v1709, 64
      %v1883 = vpop.permute.xlu0 %1882
      %1886 = vrot.lane.b32.xlu0 %v1616, 64
      %v1887 = vpop.permute.xlu0 %1886
      %1888 = vrot.lane.b32.xlu0 %v1617, 64
      %v1889 = vpop.permute.xlu0 %1888
      %1892 = vmatprep.subr.mxu0 0.0
      %1893 = vmatpush1.msra.mxu0 %v1881
      %1894 = vmatprep.subr.mxu0 0.0
      %1895 = vmatpush1.msra.mxu0 %v1883
      %1896 = vmatprep.subr.mxu0 0.0
      %1897 = vmatpush1.msra.mxu0 0.0
      %1898 = vmatprep.subr.mxu0 0.0
      %1899 = vmatpush1.msra.mxu0 0.0
      %1900 = vmatprep.subr.mxu0 0.0
      %1901 = vmatpush1.msra.mxu0 0.0
      %1902 = vmatprep.subr.mxu0 0.0
      %1903 = vmatpush1.msra.mxu0 0.0
      %1904 = vmatprep.subr.mxu0 0.0
      %1905 = vmatpush1.msra.mxu0 0.0
      %1906 = vmatprep.subr.mxu0 0.0
      %1907 = vmatpush1.msra.mxu0 0.0
      %1908 = vmatprep.subr.mxu0 0.0
      %1909 = vmatpush1.msra.mxu0 0.0
      %1910 = vmatprep.subr.mxu0 0.0
      %1911 = vmatpush1.msra.mxu0 0.0
      %1912 = vmatprep.subr.mxu0 0.0
      %1913 = vmatpush1.msra.mxu0 0.0
      %1914 = vmatprep.subr.mxu0 0.0
      %1915 = vmatpush1.msra.mxu0 0.0
      %1916 = vmatprep.subr.mxu0 0.0
      %1917 = vmatpush1.msra.mxu0 0.0
      %1918 = vmatprep.subr.mxu0 0.0
      %1919 = vmatpush1.msra.mxu0 0.0
      %1920 = vmatprep.subr.mxu0 0.0
      %1921 = vmatpush1.msra.mxu0 0.0
      %1922 = vmatprep.subr.mxu0 0.0
      %1923 = vmatpush1.msra.mxu0 0.0
      %1924 = vmatprep.subr.mxu0 0.0
      %1925 = vmatpush1.msra.mxu0 0.0
      %1926 = vmatprep.subr.mxu0 0.0
      %1927 = vmatpush1.msra.mxu0 0.0
      %1928 = vmatprep.subr.mxu0 0.0
      %1929 = vmatpush1.msra.mxu0 0.0
      %1930 = vmatprep.subr.mxu0 0.0
      %1931 = vmatpush1.msra.mxu0 0.0
      %1932 = vmatprep.subr.mxu0 0.0
      %1933 = vmatpush1.msra.mxu0 0.0
      %1934 = vmatprep.subr.mxu0 0.0
      %1935 = vmatpush1.msra.mxu0 0.0
      %1936 = vmatprep.subr.mxu0 0.0
      %1937 = vmatpush1.msra.mxu0 0.0
      %1938 = vmatprep.subr.mxu0 0.0
      %1939 = vmatpush1.msra.mxu0 0.0
      %1940 = vmatprep.subr.mxu0 0.0
      %1941 = vmatpush1.msra.mxu0 0.0
      %1942 = vmatprep.subr.mxu0 0.0
      %1943 = vmatpush1.msra.mxu0 0.0
      %1944 = vmatprep.subr.mxu0 0.0
      %1945 = vmatpush1.msra.mxu0 0.0
      %1946 = vmatprep.subr.mxu0 0.0
      %1947 = vmatpush1.msra.mxu0 0.0
      %1948 = vmatprep.subr.mxu0 0.0
      %1949 = vmatpush1.msra.mxu0 0.0
      %1950 = vmatprep.subr.mxu0 0.0
      %1951 = vmatpush1.msra.mxu0 0.0
      %1952 = vmatprep.subr.mxu0 0.0
      %1953 = vmatpush1.msra.mxu0 0.0
      %1954 = vmatprep.subr.mxu0 0.0
      %1955 = vmatpush1.msra.mxu0 0.0
      %1956 = vmatprep.mubr.f32.mxu0 0.0
      %1957 = vmatmul.mubr.f32.gmra.mrb[0].mxu0 %v1516
      %v1958 = vpop.f32.mrb[0].mxu0
      %v1959 = vadd.f32 %v1887, %v1958
      %v1960 = vpop.f32.mrb[0].mxu0
      %1961 = vmatprep.mubr.f32.mxu0 0.0
      %1962 = vmatmul.mubr.f32.gmra.mrb[0].mxu0 %v1519
      %v1963 = vpop.f32.mrb[0].mxu0
      %v1964 = vadd.f32 %v1889, %v1963
      %v1965 = vpop.f32.mrb[0].mxu0
      %1966 = vdwg.mxu0
      %v1967 = vmax.f32 %v1959, 0.0
      %v1968 = vmax.f32 %v1964, 0.0
      %1971 = vrot.lane.b32.xlu0 %v1878, 32
      %v1972 = vpop.permute.xlu0 %1971
      %1973 = vrot.lane.b32.xlu0 %v1879, 32
      %v1974 = vpop.permute.xlu0 %1973
      %1979 = vrot.lane.b32.xlu0 %v1967, 64
      %v1980 = vpop.permute.xlu0 %1979
      %1981 = vrot.lane.b32.xlu0 %v1968, 64
      %v1982 = vpop.permute.xlu0 %1981
      %v1985 = vsel %vm736, %v1787, %v1972
      %v1986 = vsel %vm736, %v1788, %v1974
      %v1987 = vsel %vm648, %v1985, %v1980
      %v1988 = vsel %vm648, %v1986, %v1982
      %v1989 = vld [vmem:[%s12] sm:$0xff]
      %v1990 = vld [vmem:[%s12 + $0x8] sm:$0xff]
      %v1991 = vld [vmem:[%s12 + $0x10] sm:$0xff]
      %v1992 = vld [vmem:[%s12 + $0x18] sm:$0xff]
      %v1993 = vld [vmem:[%s12 + $0x20] sm:$0xff]
      %v1994 = vld [vmem:[%s12 + $0x28] sm:$0xff]
      %v1995 = vld [vmem:[%s12 + $0x30] sm:$0xff]
      %v1996 = vld [vmem:[%s12 + $0x38] sm:$0xff]
      %v1997 = vld [vmem:[%s12 + $0x40] sm:$0xff]
      %v1998 = vld [vmem:[%s12 + $0x48] sm:$0xff]
      %v1999 = vld [vmem:[%s12 + $0x50] sm:$0xff]
      %v2000 = vld [vmem:[%s12 + $0x58] sm:$0xff]
      %v2001 = vld [vmem:[%s13] sm:$0x1]
      %v2003 = vlaneseq
      %v2004 = vshrl.u32 %v2003, 7
      %v2005 = vsub.s32 0, %v2004
      %v2006 = vrot.slane %v2001, %v2005
      %v2009 = vsel %vm1630, %v1987, 0
      %v2012 = vsel %vm1630, %v1988, 0
      %2014 = vmatprep.subr.mxu0 0.0
      %2015 = vmatpush1.msra.mxu0 %v1989
      %2016 = vmatprep.subr.mxu0 0.0
      %2017 = vmatpush1.msra.mxu0 %v1990
      %2018 = vmatprep.subr.mxu0 0.0
      %2019 = vmatpush1.msra.mxu0 %v1991
      %2020 = vmatprep.subr.mxu0 0.0
      %2021 = vmatpush1.msra.mxu0 %v1992
      %2022 = vmatprep.subr.mxu0 0.0
      %2023 = vmatpush1.msra.mxu0 %v1993
      %2024 = vmatprep.subr.mxu0 0.0
      %2025 = vmatpush1.msra.mxu0 %v1994
      %2026 = vmatprep.subr.mxu0 0.0
      %2027 = vmatpush1.msra.mxu0 %v1995
      %2028 = vmatprep.subr.mxu0 0.0
      %2029 = vmatpush1.msra.mxu0 %v1996
      %2030 = vmatprep.subr.mxu0 0.0
      %2031 = vmatpush1.msra.mxu0 %v1997
      %2032 = vmatprep.subr.mxu0 0.0
      %2033 = vmatpush1.msra.mxu0 %v1998
      %2034 = vmatprep.subr.mxu0 0.0
      %2035 = vmatpush1.msra.mxu0 %v1999
      %2036 = vmatprep.subr.mxu0 0.0
      %2037 = vmatpush1.msra.mxu0 %v2000
      %2038 = vmatprep.subr.mxu0 0.0
      %2039 = vmatpush1.msra.mxu0 0.0
      %2040 = vmatprep.subr.mxu0 0.0
      %2041 = vmatpush1.msra.mxu0 0.0
      %2042 = vmatprep.subr.mxu0 0.0
      %2043 = vmatpush1.msra.mxu0 0.0
      %2044 = vmatprep.subr.mxu0 0.0
      %2045 = vmatpush1.msra.mxu0 0.0
      %2046 = vmatprep.subr.mxu0 0.0
      %2047 = vmatpush1.msra.mxu0 0.0
      %2048 = vmatprep.subr.mxu0 0.0
      %2049 = vmatpush1.msra.mxu0 0.0
      %2050 = vmatprep.subr.mxu0 0.0
      %2051 = vmatpush1.msra.mxu0 0.0
      %2052 = vmatprep.subr.mxu0 0.0
      %2053 = vmatpush1.msra.mxu0 0.0
      %2054 = vmatprep.subr.mxu0 0.0
      %2055 = vmatpush1.msra.mxu0 0.0
      %2056 = vmatprep.subr.mxu0 0.0
      %2057 = vmatpush1.msra.mxu0 0.0
      %2058 = vmatprep.subr.mxu0 0.0
      %2059 = vmatpush1.msra.mxu0 0.0
      %2060 = vmatprep.subr.mxu0 0.0
      %2061 = vmatpush1.msra.mxu0 0.0
      %2062 = vmatprep.subr.mxu0 0.0
      %2063 = vmatpush1.msra.mxu0 0.0
      %2064 = vmatprep.subr.mxu0 0.0
      %2065 = vmatpush1.msra.mxu0 0.0
      %2066 = vmatprep.subr.mxu0 0.0
      %2067 = vmatpush1.msra.mxu0 0.0
      %2068 = vmatprep.subr.mxu0 0.0
      %2069 = vmatpush1.msra.mxu0 0.0
      %2070 = vmatprep.subr.mxu0 0.0
      %2071 = vmatpush1.msra.mxu0 0.0
      %2072 = vmatprep.subr.mxu0 0.0
      %2073 = vmatpush1.msra.mxu0 0.0
      %2074 = vmatprep.subr.mxu0 0.0
      %2075 = vmatpush1.msra.mxu0 0.0
      %2076 = vmatprep.subr.mxu0 0.0
      %2077 = vmatpush1.msra.mxu0 0.0
      %2078 = vmatprep.mubr.f32.mxu0 0.0
      %2079 = vmatmul.mubr.f32.gmra.mrb[0].mxu0 %v2009
      %v2080 = vpop.f32.mrb[0].mxu0
      %v2081 = vadd.f32 %v2006, %v2080
      %v2082 = vpop.f32.mrb[0].mxu0
      %2083 = vmatprep.mubr.f32.mxu0 0.0
      %2084 = vmatmul.mubr.f32.gmra.mrb[0].mxu0 %v2012
      %v2085 = vpop.f32.mrb[0].mxu0
      %v2086 = vadd.f32 %v2006, %v2085
      %v2087 = vpop.f32.mrb[0].mxu0
      %2088 = vdwg.mxu0
      %vm2089 = vcmask 15360
      %2090 = vst.msk [vmem:[%s529] sm:$0xff] %vm2089, %v2081
      %2091 = vst.msk [vmem:[%s529 + $0x8] sm:$0xff] %vm2089, %v2086
      %p2092 = scmp.lt.s32.totalorder %s29, 1
      %s2093 = scalar_select %p2092, %s29, 1
      %s2094 = smul.addr %s2093, 2
      %s2095 = smul.addr %s2094, 8
      %s2096 = scalar_lea.vmem %s14, %s2095
      %p2097 = scmp.lt.s32.totalorder %s29, 1
      %s2098 = scalar_select %p2097, %s29, 1
      %s2099 = smul.addr %s2098, 2
      %s2100 = smul.addr %s2099, 8
      %s2101 = scalar_lea.vmem %s15, %s2100
      // Predicated region
      $region77: #{model_forward.3} parent=75 // pred_check
        %p2102 = pneg %p351
      $region78: #{model_forward.3} parent=75 // pred_check_branch
        %2104 = sbr.rel (%p2102) target = $region80
      $region79: #{model_forward.3} parent=75 // pred_region
        _
      $region80: #{model_forward.3} parent=75 // pred_fallthru
        _
      // Predicated region
      $region81: #{model_forward.3} parent=75 // pred_check
        %p2105 = pneg %p377
      $region82: #{model_forward.3} parent=75 // pred_check_branch
        %2107 = sbr.rel (%p2105) target = $region84
      $region83: #{model_forward.3} parent=75 // pred_region
        _
      $region84: #{model_forward.3} parent=75 // pred_fallthru
        _
    $region76: #{model_forward.3} parent=5 // pred_fallthru
      _
    %p2108 = scmp.le.s32.totalorder 2, %s24
    // Predicated region
    $region85: #{model_forward.3} parent=5 // pred_check
      %p2109 = pneg %p2108
    $region86: #{model_forward.3} parent=5 // pred_check_branch
      %2111 = sbr.rel (%p2109) target = $region88
    $region87: #{model_forward.3} parent=5 // pred_region
      %s2112 = ssub.s32 %s24, 2
      // Predicated region
      $region89: #{model_forward.3} parent=87 // pred_check
        %p2113 = pneg %p357
      $region90: #{model_forward.3} parent=87 // pred_check_branch
        %2115 = sbr.rel (%p2113) target = $region92
      $region91: #{model_forward.3} parent=87 // pred_region
        %p2116 = scmp.lt.s32.totalorder %s30, 1
        %s2117 = scalar_select %p2116, %s30, 1
        %s2118 = smul.addr %s2117, 2
        %s2119 = smul.addr %s2118, 8
        %s2120 = scalar_lea.vmem %s14, %s2119
      $region92: #{model_forward.3} parent=87 // pred_fallthru
        _
      // Predicated region
      $region93: #{model_forward.3} parent=87 // pred_check
        %p2121 = pneg %p383
      $region94: #{model_forward.3} parent=87 // pred_check_branch
        %2123 = sbr.rel (%p2121) target = $region96
      $region95: #{model_forward.3} parent=87 // pred_region
        %p2124 = scmp.lt.s32.totalorder %s30, 1
        %s2125 = scalar_select %p2124, %s30, 1
        %s2126 = smul.addr %s2125, 2
        %s2127 = smul.addr %s2126, 8
        %s2128 = scalar_lea.vmem %s15, %s2127
      $region96: #{model_forward.3} parent=87 // pred_fallthru
        _
    $region88: #{model_forward.3} parent=5 // pred_fallthru
      _
  $region6: #{model_forward.3} parent=0 // loop_footer
    %s28 = sadd.s32 1, %s24
  $region7: #{model_forward.3} parent=0 // loop_footer_branch
    %23 = sbr.rel target = $region3
  $region8: #{model_forward.3} parent=0 // loop_exit
    _

</llo_original>
